<compile_context>
chip_gen: v7x
topology: tpu7x:2x2x1
jax: 0.10.0
libtpu: 0.0.40
codegen_flags: <defaults>
</compile_context>

<pallas_src>
import functools
import math

import jax
import jax.numpy as jnp
from jax.experimental import pallas as pl
from jax.experimental.pallas import tpu as pltpu


# ---------------------------------------------------------------------------
# small math helpers (pure jnp, usable both inside the kernel and in the ref)
# ---------------------------------------------------------------------------
def _layernorm(x, gamma, beta, eps=1e-5):
    mean = jnp.mean(x, axis=-1, keepdims=True)
    var = jnp.mean((x - mean) ** 2, axis=-1, keepdims=True)
    return (x - mean) * jax.lax.rsqrt(var + eps) * gamma + beta


def _l2normalize(x, eps=1e-12):
    # torch.nn.functional.normalize(x, dim=-1): x / clamp_min(||x||_2, eps)
    # rewritten as x * rsqrt(clamp_min(||x||^2, eps^2)) -> a single EUP rsqrt.
    ss = jnp.sum(x * x, axis=-1, keepdims=True)
    return x * jax.lax.rsqrt(jnp.maximum(ss, eps * eps))


# ---------------------------------------------------------------------------
# Pallas kernel: processes a tile of `tb` sequences of shape (f, c)
# ---------------------------------------------------------------------------
def _tab_kernel(x_ref,
                w_in_ref, b_in_ref, g_in_ref, be_in_ref,
                pe_ref,
                wqkv_ref, bqkv_ref,
                wo_ref, bo_ref,
                g_out_ref, be_out_ref,
                w_out_ref, b_out_ref,
                o_ref,
                *, scale, token, matmul_dtype):
    tb, f, c = x_ref.shape
    inner = w_in_ref.shape[1]

    # Optional bf16 operands for the MXU (accumulation stays f32); all
    # VPU/EUP elementwise work stays f32 (v5e has no bf16 VALU/EUP).
    cast = (lambda a: a.astype(matmul_dtype)) if matmul_dtype is not None \
        else (lambda a: a)

    def mm(a, w_ref):
        return jnp.dot(cast(a), cast(w_ref[...]),
                       preferred_element_type=jnp.float32)

    x2 = x_ref[...].astype(jnp.float32).reshape(tb * f, c)

    # proj_inner + norm_inner
    h0 = _layernorm(mm(x2, w_in_ref) + b_in_ref[...],
                    g_in_ref[...], be_in_ref[...])                  # (tb*f, inner)

    # positional encoding (dropout = identity at eval)
    xp2 = (h0.reshape(tb, f, inner) + pe_ref[...][None]).reshape(tb * f, inner)

    # fused Q|K|V projection (one MXU matmul with N = 3*token) + L2 normalize
    qkv = mm(xp2, wqkv_ref) + bqkv_ref[...]                         # (tb*f, 3*token)
    q3 = _l2normalize(qkv[:, :token]).reshape(tb, f, token)
    k3 = _l2normalize(qkv[:, token:2 * token]).reshape(tb, f, token)
    v3 = _l2normalize(qkv[:, 2 * token:]).reshape(tb, f, token)

    # scaled dot-product attention over the frame axis.
    # q/k are L2-normalized and scale = token**-0.5 <= 1, so |s| <= 1 and exp
    # cannot overflow: the usual max-subtraction is skipped (saves an XLU
    # reduction).  If _l2normalize is ever removed, restore the subtraction.
    s = jnp.einsum('bqt,bkt->bqk', cast(q3), cast(k3),
                   preferred_element_type=jnp.float32) * scale
    e = jnp.exp(s)
    p = e * pl.reciprocal(jnp.sum(e, axis=-1, keepdims=True), approx=True)
    y = jnp.einsum('bqk,bkt->bqt', cast(p), cast(v3),
                   preferred_element_type=jnp.float32)

    # to_out + residual inside TemporalAttnetionLayer, then layer residual
    attn = mm(y.reshape(tb * f, token), wo_ref) + bo_ref[...]
    h1 = attn + xp2          # x = to_out(...) + residual   (residual = x + pe)
    h1 = h1 + h0             # x = attantion_block(x) + x

    # norm_out + proj_out.  NOTE: the OUTER block residual is added in the
    # wrapper AFTER the inverse permute (adding x2 here would be wrong for
    # c != f because the entry reshape scrambles (c, f) -> (f, c)).
    h2 = _layernorm(h1, g_out_ref[...], be_out_ref[...])
    out = mm(h2, w_out_ref) + b_out_ref[...]
    o_ref[...] = out.reshape(tb, f, c).astype(o_ref.dtype)


# ---------------------------------------------------------------------------
# tiling choice
# ---------------------------------------------------------------------------
def _pick_tile_b(B, cap=512):
    """Largest divisor of B that is <= cap while keeping grid >= 2 (so both
    TensorCores on a megacore part get work).  cap=512 keeps the per-tile VMEM
    footprint safely inside v7x's 64 MiB.  Falls back to B (grid=1) only when
    no such divisor exists (B == 1)."""
    best = None
    for t in range(1, min(cap, B) + 1):
        if B % t == 0 and B // t >= 2:
            best = t
    return best if best is not None else B


# ---------------------------------------------------------------------------
# wrapper
# ---------------------------------------------------------------------------
def temporal_attention_block(x, params, *, tile_b=None, matmul_dtype=None,
                             vmem_limit_bytes=48 * 1024 * 1024):
    b, c, f, h, w = x.shape
    B = b * h * w
    if tile_b is None:
        tile_b = _pick_tile_b(B)
    assert B % tile_b == 0, "b*h*w must be divisible by tile_b"

    # Exact reproduction of: x.permute(0,3,4,1,2).reshape(b*h*w, f, c)
    x_seq = jnp.transpose(x, (0, 3, 4, 1, 2)).reshape(B, f, c)

    token = params['wo'].shape[0]
    scale = float(token) ** -0.5

    args = (x_seq,
            params['w_in'], params['b_in'], params['g_in'], params['be_in'],
            params['pe'],
            params['wqkv'], params['bqkv'],
            params['wo'], params['bo'],
            params['g_out'], params['be_out'],
            params['w_out'], params['b_out'])

    in_specs = [pl.BlockSpec((tile_b, f, c), lambda i: (i, 0, 0))] + \
               [pl.BlockSpec(a.shape, lambda i: (0, 0)) for a in args[1:]]

    out_seq = pl.pallas_call(
        functools.partial(_tab_kernel, scale=scale, token=token,
                          matmul_dtype=matmul_dtype),
        out_shape=jax.ShapeDtypeStruct((B, f, c), x.dtype),
        grid=(B // tile_b,),
        in_specs=in_specs,
        out_specs=pl.BlockSpec((tile_b, f, c), lambda i: (i, 0, 0)),
        compiler_params=pltpu.CompilerParams(
            dimension_semantics=("parallel",),
            vmem_limit_bytes=vmem_limit_bytes),
    )(*args)

    # Inverse of the entry permute, then the OUTER block residual on the
    # unscrambled 5-D tensor (matches `x = x + residual` in PyTorch).  The add
    # fuses into the transpose in XLA, so it is essentially free.
    out5 = jnp.transpose(out_seq.reshape(b, h, w, f, c), (0, 4, 3, 1, 2))
    return out5 + x


# ---------------------------------------------------------------------------
# deterministic parameter construction (matches the module's shapes)
# ---------------------------------------------------------------------------
def _init_linear(key, fan_in, fan_out):
    k1, k2 = jax.random.split(key)
    bound = 1.0 / math.sqrt(fan_in)
    wt = jax.random.uniform(k1, (fan_out, fan_in), jnp.float32, -bound, bound)
    bvec = jax.random.uniform(k2, (fan_out,), jnp.float32, -bound, bound)
    # store transposed weight (in, out) and bias as (1, out) for lane-friendly use
    return wt.T, bvec.reshape(1, fan_out)


def make_params(key, in_channels, inner_dim, token_dim, frame_count):
    ks = jax.random.split(key, 6)
    w_in, b_in = _init_linear(ks[0], in_channels, inner_dim)
    wq, bq = _init_linear(ks[1], inner_dim, token_dim)
    wk, bk = _init_linear(ks[2], inner_dim, token_dim)
    wv, bv = _init_linear(ks[3], inner_dim, token_dim)
    wo, bo = _init_linear(ks[4], token_dim, inner_dim)
    w_out, b_out = _init_linear(ks[5], inner_dim, in_channels)

    # PositionalEncoding buffer (max_len = frame_count, in_dims = inner_dim)
    position = jnp.arange(frame_count, dtype=jnp.float32)[:, None]
    div_term = jnp.exp(jnp.arange(0, inner_dim, 2, dtype=jnp.float32)
                       * (-math.log(10000.0) / inner_dim))
    pe = jnp.zeros((frame_count, inner_dim), jnp.float32)
    pe = pe.at[:, 0::2].set(jnp.sin(position * div_term))
    pe = pe.at[:, 1::2].set(jnp.cos(position * div_term))

    ones = lambda d: jnp.ones((1, d), jnp.float32)
    zeros = lambda d: jnp.zeros((1, d), jnp.float32)
    return dict(
        w_in=w_in, b_in=b_in, g_in=ones(inner_dim), be_in=zeros(inner_dim),
        pe=pe,
        # fused Q|K|V projection: one (inner, 3*token) weight, one bias
        wqkv=jnp.concatenate([wq, wk, wv], axis=1),
        bqkv=jnp.concatenate([bq, bk, bv], axis=1),
        wo=wo, bo=bo,
        g_out=ones(inner_dim), be_out=zeros(inner_dim),
        w_out=w_out, b_out=b_out,
    )


# ---------------------------------------------------------------------------
# pure-JAX reference (same math, no Pallas) for a correctness check
# ---------------------------------------------------------------------------
def ref_forward(x, p):
    with jax.default_matmul_precision("highest"):
        b, c, f, h, w = x.shape
        token = p['wo'].shape[0]
        scale = float(token) ** -0.5
        xs = jnp.transpose(x, (0, 3, 4, 1, 2)).reshape(b * h * w, f, c)
        h0 = _layernorm(xs @ p['w_in'] + p['b_in'], p['g_in'], p['be_in'])
        xp = h0 + p['pe'][None]
        qkv = xp @ p['wqkv'] + p['bqkv']
        q = _l2normalize(qkv[..., :token])
        k = _l2normalize(qkv[..., token:2 * token])
        v = _l2normalize(qkv[..., 2 * token:])
        s = jnp.einsum('bqt,bkt->bqk', q, k) * scale
        pr = jax.nn.softmax(s, axis=-1)
        y = jnp.einsum('bqk,bkt->bqt', pr, v)
        attn = y @ p['wo'] + p['bo']
        h1 = attn + xp + h0
        h2 = _layernorm(h1, p['g_out'], p['be_out'])
        out = h2 @ p['w_out'] + p['b_out']
        out5 = jnp.transpose(out.reshape(b, h, w, f, c), (0, 4, 3, 1, 2))
        return out5 + x


if __name__ == "__main__":
    # small shapes consistent with the module's forward
    B_, C_, F_, H_, W_ = 2, 16, 8, 4, 4          # (b, c, frame_count, h, w)
    INNER, TOKEN = 32, 64                        # inner_dim, token_dim

    key = jax.random.PRNGKey(0)
    kx, kp = jax.random.split(key)
    x = jax.random.normal(kx, (B_, C_, F_, H_, W_), jnp.float32)
    params = make_params(kp, C_, INNER, TOKEN, F_)

    # tile_b auto-picked: largest divisor of b*h*w (=32) <= 512 with grid >= 2
    out = temporal_attention_block(x, params)
    out = jax.block_until_ready(out)

    ref = ref_forward(x, params)
    assert out.shape == x.shape
    err = float(jnp.max(jnp.abs(out - ref)))
    # tolerance accounts for the approx-EUP reciprocal in the softmax denominator
    assert jnp.allclose(out, ref, rtol=2e-3, atol=2e-3), f"max abs err = {err}"

    print("KERNEL_OK")
</pallas_src>

<mosaic_0001>
module attributes {stable_mosaic.version = 11 : i64} {
  func.func @_tab_kernel(%arg0: i32, %arg1: memref<16x8x16xf32, #tpu.memory_space<vmem>>, %arg2: memref<16x32xf32, #tpu.memory_space<vmem>>, %arg3: memref<1x32xf32, #tpu.memory_space<vmem>>, %arg4: memref<1x32xf32, #tpu.memory_space<vmem>>, %arg5: memref<1x32xf32, #tpu.memory_space<vmem>>, %arg6: memref<8x32xf32, #tpu.memory_space<vmem>>, %arg7: memref<32x192xf32, #tpu.memory_space<vmem>>, %arg8: memref<1x192xf32, #tpu.memory_space<vmem>>, %arg9: memref<64x32xf32, #tpu.memory_space<vmem>>, %arg10: memref<1x32xf32, #tpu.memory_space<vmem>>, %arg11: memref<1x32xf32, #tpu.memory_space<vmem>>, %arg12: memref<1x32xf32, #tpu.memory_space<vmem>>, %arg13: memref<32x16xf32, #tpu.memory_space<vmem>>, %arg14: memref<1x16xf32, #tpu.memory_space<vmem>>, %arg15: memref<16x8x16xf32, #tpu.memory_space<vmem>>) attributes {dimension_semantics = [#tpu.dimension_semantics<parallel>], iteration_bounds = array<i64: 2>, scalar_prefetch = 0 : i64, scratch_operands = 0 : i64, tpu.core_type = #tpu.core_type<tc>, window_params = [{transform_indices = @transform_0, window_bounds = array<i64: 16, 8, 16>}, {pipeline_mode = #tpu.pipeline_mode<synchronous>, transform_indices = @transform_1, window_bounds = array<i64: 16, 32>}, {pipeline_mode = #tpu.pipeline_mode<synchronous>, transform_indices = @transform_2, window_bounds = array<i64: 1, 32>}, {pipeline_mode = #tpu.pipeline_mode<synchronous>, transform_indices = @transform_3, window_bounds = array<i64: 1, 32>}, {pipeline_mode = #tpu.pipeline_mode<synchronous>, transform_indices = @transform_4, window_bounds = array<i64: 1, 32>}, {pipeline_mode = #tpu.pipeline_mode<synchronous>, transform_indices = @transform_5, window_bounds = array<i64: 8, 32>}, {pipeline_mode = #tpu.pipeline_mode<synchronous>, transform_indices = @transform_6, window_bounds = array<i64: 32, 192>}, {pipeline_mode = #tpu.pipeline_mode<synchronous>, transform_indices = @transform_7, window_bounds = array<i64: 1, 192>}, {pipeline_mode = #tpu.pipeline_mode<synchronous>, transform_indices = @transform_8, window_bounds = array<i64: 64, 32>}, {pipeline_mode = #tpu.pipeline_mode<synchronous>, transform_indices = @transform_9, window_bounds = array<i64: 1, 32>}, {pipeline_mode = #tpu.pipeline_mode<synchronous>, transform_indices = @transform_10, window_bounds = array<i64: 1, 32>}, {pipeline_mode = #tpu.pipeline_mode<synchronous>, transform_indices = @transform_11, window_bounds = array<i64: 1, 32>}, {pipeline_mode = #tpu.pipeline_mode<synchronous>, transform_indices = @transform_12, window_bounds = array<i64: 32, 16>}, {pipeline_mode = #tpu.pipeline_mode<synchronous>, transform_indices = @transform_13, window_bounds = array<i64: 1, 16>}, {transform_indices = @transform_14, window_bounds = array<i64: 16, 8, 16>}]} {
    %c0 = arith.constant 0 : index
    %c0_0 = arith.constant 0 : index
    %c0_1 = arith.constant 0 : index
    %0 = vector.load %arg1[%c0, %c0_0, %c0_1] : memref<16x8x16xf32, #tpu.memory_space<vmem>>, vector<16x8x16xf32>
    %1 = vector.shape_cast %0 : vector<16x8x16xf32> to vector<128x16xf32>
    %c0_2 = arith.constant 0 : index
    %c0_3 = arith.constant 0 : index
    %2 = vector.load %arg2[%c0_2, %c0_3] : memref<16x32xf32, #tpu.memory_space<vmem>>, vector<16x32xf32>
    %cst = arith.constant dense<0.000000e+00> : vector<128x32xf32>
    %3 = tpu.matmul %1, %2, %cst {dimension_numbers = #tpu.dot_dimension_numbers<[1], [0], [0], [1], [0, 0, 1, 1], [], []>} : vector<128x16xf32>, vector<16x32xf32>, vector<128x32xf32> -> vector<128x32xf32>
    %c0_4 = arith.constant 0 : index
    %c0_5 = arith.constant 0 : index
    %4 = vector.load %arg3[%c0_4, %c0_5] : memref<1x32xf32, #tpu.memory_space<vmem>>, vector<1x32xf32>
    %5 = vector.broadcast %4 : vector<1x32xf32> to vector<128x32xf32>
    %6 = arith.addf %3, %5 : vector<128x32xf32>
    %c0_6 = arith.constant 0 : index
    %c0_7 = arith.constant 0 : index
    %7 = vector.load %arg4[%c0_6, %c0_7] : memref<1x32xf32, #tpu.memory_space<vmem>>, vector<1x32xf32>
    %c0_8 = arith.constant 0 : index
    %c0_9 = arith.constant 0 : index
    %8 = vector.load %arg5[%c0_8, %c0_9] : memref<1x32xf32, #tpu.memory_space<vmem>>, vector<1x32xf32>
    %cst_10 = arith.constant dense<0.000000e+00> : vector<128xf32>
    %9 = vector.multi_reduction <add>, %6, %cst_10 [1] : vector<128x32xf32> to vector<128xf32>
    %10 = vector.shape_cast %9 : vector<128xf32> to vector<128x1xf32>
    %cst_11 = arith.constant 3.200000e+01 : f32
    %11 = vector.broadcast %cst_11 : f32 to vector<128x1xf32>
    %12 = arith.divf %10, %11 : vector<128x1xf32>
    %13 = vector.broadcast %12 : vector<128x1xf32> to vector<128x32xf32>
    %14 = arith.subf %6, %13 : vector<128x32xf32>
    %15 = arith.mulf %14, %14 : vector<128x32xf32>
    %cst_12 = arith.constant dense<0.000000e+00> : vector<128xf32>
    %16 = vector.multi_reduction <add>, %15, %cst_12 [1] : vector<128x32xf32> to vector<128xf32>
    %17 = vector.shape_cast %16 : vector<128xf32> to vector<128x1xf32>
    %cst_13 = arith.constant 3.200000e+01 : f32
    %18 = vector.broadcast %cst_13 : f32 to vector<128x1xf32>
    %19 = arith.divf %17, %18 : vector<128x1xf32>
    %20 = vector.broadcast %12 : vector<128x1xf32> to vector<128x32xf32>
    %21 = arith.subf %6, %20 : vector<128x32xf32>
    %cst_14 = arith.constant 9.99999974E-6 : f32
    %22 = vector.broadcast %cst_14 : f32 to vector<128x1xf32>
    %23 = arith.addf %19, %22 : vector<128x1xf32>
    %24 = math.rsqrt %23 : vector<128x1xf32>
    %25 = vector.broadcast %24 : vector<128x1xf32> to vector<128x32xf32>
    %26 = arith.mulf %21, %25 : vector<128x32xf32>
    %27 = vector.broadcast %7 : vector<1x32xf32> to vector<128x32xf32>
    %28 = arith.mulf %26, %27 : vector<128x32xf32>
    %29 = vector.broadcast %8 : vector<1x32xf32> to vector<128x32xf32>
    %30 = arith.addf %28, %29 : vector<128x32xf32>
    %31 = vector.shape_cast %30 : vector<128x32xf32> to vector<16x8x32xf32>
    %c0_15 = arith.constant 0 : index
    %c0_16 = arith.constant 0 : index
    %32 = vector.load %arg6[%c0_15, %c0_16] : memref<8x32xf32, #tpu.memory_space<vmem>>, vector<8x32xf32>
    %33 = vector.shape_cast %32 : vector<8x32xf32> to vector<1x8x32xf32>
    %34 = vector.broadcast %33 : vector<1x8x32xf32> to vector<16x8x32xf32>
    %35 = arith.addf %31, %34 : vector<16x8x32xf32>
    %36 = vector.shape_cast %35 : vector<16x8x32xf32> to vector<128x32xf32>
    %c0_17 = arith.constant 0 : index
    %c0_18 = arith.constant 0 : index
    %37 = vector.load %arg7[%c0_17, %c0_18] : memref<32x192xf32, #tpu.memory_space<vmem>>, vector<32x192xf32>
    %cst_19 = arith.constant dense<0.000000e+00> : vector<128x192xf32>
    %38 = tpu.matmul %36, %37, %cst_19 {dimension_numbers = #tpu.dot_dimension_numbers<[1], [0], [0], [1], [0, 0, 1, 1], [], []>} : vector<128x32xf32>, vector<32x192xf32>, vector<128x192xf32> -> vector<128x192xf32>
    %c0_20 = arith.constant 0 : index
    %c0_21 = arith.constant 0 : index
    %39 = vector.load %arg8[%c0_20, %c0_21] : memref<1x192xf32, #tpu.memory_space<vmem>>, vector<1x192xf32>
    %40 = vector.broadcast %39 : vector<1x192xf32> to vector<128x192xf32>
    %41 = arith.addf %38, %40 : vector<128x192xf32>
    %42 = vector.extract_strided_slice %41 {offsets = [0, 0], sizes = [128, 64], strides = [1, 1]} : vector<128x192xf32> to vector<128x64xf32>
    %43 = arith.mulf %42, %42 : vector<128x64xf32>
    %cst_22 = arith.constant dense<0.000000e+00> : vector<128xf32>
    %44 = vector.multi_reduction <add>, %43, %cst_22 [1] : vector<128x64xf32> to vector<128xf32>
    %45 = vector.shape_cast %44 : vector<128xf32> to vector<128x1xf32>
    %cst_23 = arith.constant 1.000000e-24 : f32
    %46 = vector.broadcast %cst_23 : f32 to vector<128x1xf32>
    %47 = arith.maximumf %45, %46 : vector<128x1xf32>
    %48 = math.rsqrt %47 : vector<128x1xf32>
    %49 = vector.broadcast %48 : vector<128x1xf32> to vector<128x64xf32>
    %50 = arith.mulf %42, %49 : vector<128x64xf32>
    %51 = vector.shape_cast %50 : vector<128x64xf32> to vector<16x8x64xf32>
    %52 = vector.extract_strided_slice %41 {offsets = [0, 64], sizes = [128, 64], strides = [1, 1]} : vector<128x192xf32> to vector<128x64xf32>
    %53 = arith.mulf %52, %52 : vector<128x64xf32>
    %cst_24 = arith.constant dense<0.000000e+00> : vector<128xf32>
    %54 = vector.multi_reduction <add>, %53, %cst_24 [1] : vector<128x64xf32> to vector<128xf32>
    %55 = vector.shape_cast %54 : vector<128xf32> to vector<128x1xf32>
    %cst_25 = arith.constant 1.000000e-24 : f32
    %56 = vector.broadcast %cst_25 : f32 to vector<128x1xf32>
    %57 = arith.maximumf %55, %56 : vector<128x1xf32>
    %58 = math.rsqrt %57 : vector<128x1xf32>
    %59 = vector.broadcast %58 : vector<128x1xf32> to vector<128x64xf32>
    %60 = arith.mulf %52, %59 : vector<128x64xf32>
    %61 = vector.shape_cast %60 : vector<128x64xf32> to vector<16x8x64xf32>
    %62 = vector.extract_strided_slice %41 {offsets = [0, 128], sizes = [128, 64], strides = [1, 1]} : vector<128x192xf32> to vector<128x64xf32>
    %63 = arith.mulf %62, %62 : vector<128x64xf32>
    %cst_26 = arith.constant dense<0.000000e+00> : vector<128xf32>
    %64 = vector.multi_reduction <add>, %63, %cst_26 [1] : vector<128x64xf32> to vector<128xf32>
    %65 = vector.shape_cast %64 : vector<128xf32> to vector<128x1xf32>
    %cst_27 = arith.constant 1.000000e-24 : f32
    %66 = vector.broadcast %cst_27 : f32 to vector<128x1xf32>
    %67 = arith.maximumf %65, %66 : vector<128x1xf32>
    %68 = math.rsqrt %67 : vector<128x1xf32>
    %69 = vector.broadcast %68 : vector<128x1xf32> to vector<128x64xf32>
    %70 = arith.mulf %62, %69 : vector<128x64xf32>
    %71 = vector.shape_cast %70 : vector<128x64xf32> to vector<16x8x64xf32>
    "tpu.trace_start"() <{level = 10 : i32, message = "bqt,bkt->bqk"}> : () -> ()
    %cst_28 = arith.constant dense<0.000000e+00> : vector<16x8x8xf32>
    %72 = tpu.matmul %51, %61, %cst_28 {dimension_numbers = #tpu.dot_dimension_numbers<[2], [2], [1], [1], [0, 0, 0, 1, 1, 1], [0], [0]>} : vector<16x8x64xf32>, vector<16x8x64xf32>, vector<16x8x8xf32> -> vector<16x8x8xf32>
    "tpu.trace_stop"() : () -> ()
    %cst_29 = arith.constant 1.250000e-01 : f32
    %73 = vector.broadcast %cst_29 : f32 to vector<16x8x8xf32>
    %74 = arith.mulf %72, %73 : vector<16x8x8xf32>
    %75 = math.exp %74 : vector<16x8x8xf32>
    %cst_30 = arith.constant dense<0.000000e+00> : vector<16x8xf32>
    %76 = vector.multi_reduction <add>, %75, %cst_30 [2] : vector<16x8x8xf32> to vector<16x8xf32>
    %77 = vector.shape_cast %76 : vector<16x8xf32> to vector<16x8x1xf32>
    %78 = tpu.reciprocal %77 {approx = true} : vector<16x8x1xf32> -> vector<16x8x1xf32>
    %79 = vector.broadcast %78 : vector<16x8x1xf32> to vector<16x8x8xf32>
    %80 = arith.mulf %75, %79 : vector<16x8x8xf32>
    "tpu.trace_start"() <{level = 10 : i32, message = "bqk,bkt->bqt"}> : () -> ()
    %cst_31 = arith.constant dense<0.000000e+00> : vector<16x8x64xf32>
    %81 = tpu.matmul %80, %71, %cst_31 {dimension_numbers = #tpu.dot_dimension_numbers<[2], [1], [1], [2], [0, 0, 0, 1, 1, 2], [0], [0]>} : vector<16x8x8xf32>, vector<16x8x64xf32>, vector<16x8x64xf32> -> vector<16x8x64xf32>
    "tpu.trace_stop"() : () -> ()
    %82 = vector.shape_cast %81 : vector<16x8x64xf32> to vector<128x64xf32>
    %c0_32 = arith.constant 0 : index
    %c0_33 = arith.constant 0 : index
    %83 = vector.load %arg9[%c0_32, %c0_33] : memref<64x32xf32, #tpu.memory_space<vmem>>, vector<64x32xf32>
    %cst_34 = arith.constant dense<0.000000e+00> : vector<128x32xf32>
    %84 = tpu.matmul %82, %83, %cst_34 {dimension_numbers = #tpu.dot_dimension_numbers<[1], [0], [0], [1], [0, 0, 1, 1], [], []>} : vector<128x64xf32>, vector<64x32xf32>, vector<128x32xf32> -> vector<128x32xf32>
    %c0_35 = arith.constant 0 : index
    %c0_36 = arith.constant 0 : index
    %85 = vector.load %arg10[%c0_35, %c0_36] : memref<1x32xf32, #tpu.memory_space<vmem>>, vector<1x32xf32>
    %86 = vector.broadcast %85 : vector<1x32xf32> to vector<128x32xf32>
    %87 = arith.addf %84, %86 : vector<128x32xf32>
    %88 = arith.addf %87, %36 : vector<128x32xf32>
    %89 = arith.addf %88, %30 : vector<128x32xf32>
    %c0_37 = arith.constant 0 : index
    %c0_38 = arith.constant 0 : index
    %90 = vector.load %arg11[%c0_37, %c0_38] : memref<1x32xf32, #tpu.memory_space<vmem>>, vector<1x32xf32>
    %c0_39 = arith.constant 0 : index
    %c0_40 = arith.constant 0 : index
    %91 = vector.load %arg12[%c0_39, %c0_40] : memref<1x32xf32, #tpu.memory_space<vmem>>, vector<1x32xf32>
    %cst_41 = arith.constant dense<0.000000e+00> : vector<128xf32>
    %92 = vector.multi_reduction <add>, %89, %cst_41 [1] : vector<128x32xf32> to vector<128xf32>
    %93 = vector.shape_cast %92 : vector<128xf32> to vector<128x1xf32>
    %cst_42 = arith.constant 3.200000e+01 : f32
    %94 = vector.broadcast %cst_42 : f32 to vector<128x1xf32>
    %95 = arith.divf %93, %94 : vector<128x1xf32>
    %96 = vector.broadcast %95 : vector<128x1xf32> to vector<128x32xf32>
    %97 = arith.subf %89, %96 : vector<128x32xf32>
    %98 = arith.mulf %97, %97 : vector<128x32xf32>
    %cst_43 = arith.constant dense<0.000000e+00> : vector<128xf32>
    %99 = vector.multi_reduction <add>, %98, %cst_43 [1] : vector<128x32xf32> to vector<128xf32>
    %100 = vector.shape_cast %99 : vector<128xf32> to vector<128x1xf32>
    %cst_44 = arith.constant 3.200000e+01 : f32
    %101 = vector.broadcast %cst_44 : f32 to vector<128x1xf32>
    %102 = arith.divf %100, %101 : vector<128x1xf32>
    %103 = vector.broadcast %95 : vector<128x1xf32> to vector<128x32xf32>
    %104 = arith.subf %89, %103 : vector<128x32xf32>
    %cst_45 = arith.constant 9.99999974E-6 : f32
    %105 = vector.broadcast %cst_45 : f32 to vector<128x1xf32>
    %106 = arith.addf %102, %105 : vector<128x1xf32>
    %107 = math.rsqrt %106 : vector<128x1xf32>
    %108 = vector.broadcast %107 : vector<128x1xf32> to vector<128x32xf32>
    %109 = arith.mulf %104, %108 : vector<128x32xf32>
    %110 = vector.broadcast %90 : vector<1x32xf32> to vector<128x32xf32>
    %111 = arith.mulf %109, %110 : vector<128x32xf32>
    %112 = vector.broadcast %91 : vector<1x32xf32> to vector<128x32xf32>
    %113 = arith.addf %111, %112 : vector<128x32xf32>
    %c0_46 = arith.constant 0 : index
    %c0_47 = arith.constant 0 : index
    %114 = vector.load %arg13[%c0_46, %c0_47] : memref<32x16xf32, #tpu.memory_space<vmem>>, vector<32x16xf32>
    %cst_48 = arith.constant dense<0.000000e+00> : vector<128x16xf32>
    %115 = tpu.matmul %113, %114, %cst_48 {dimension_numbers = #tpu.dot_dimension_numbers<[1], [0], [0], [1], [0, 0, 1, 1], [], []>} : vector<128x32xf32>, vector<32x16xf32>, vector<128x16xf32> -> vector<128x16xf32>
    %c0_49 = arith.constant 0 : index
    %c0_50 = arith.constant 0 : index
    %116 = vector.load %arg14[%c0_49, %c0_50] : memref<1x16xf32, #tpu.memory_space<vmem>>, vector<1x16xf32>
    %117 = vector.broadcast %116 : vector<1x16xf32> to vector<128x16xf32>
    %118 = arith.addf %115, %117 : vector<128x16xf32>
    %119 = vector.shape_cast %118 : vector<128x16xf32> to vector<16x8x16xf32>
    %c0_51 = arith.constant 0 : index
    %c0_52 = arith.constant 0 : index
    %c0_53 = arith.constant 0 : index
    %120 = vector.load %arg15[%c0_51, %c0_52, %c0_53] : memref<16x8x16xf32, #tpu.memory_space<vmem>>, vector<16x8x16xf32>
    tpu.vector_store %arg15[%c0_51, %c0_52, %c0_53], %119 {strides = array<i32>} : memref<16x8x16xf32, #tpu.memory_space<vmem>>, vector<16x8x16xf32>,
    return
  }
  func.func @transform_0(%arg0: i32) -> (i32, i32, i32) {
    %c0_i32 = arith.constant 0 : i32
    %c0_i32_0 = arith.constant 0 : i32
    %c0_i32_1 = arith.constant 0 : i32
    return %arg0, %c0_i32, %c0_i32_0 : i32, i32, i32
  }
  func.func @transform_1(%arg0: i32) -> (i32, i32) {
    %c0_i32 = arith.constant 0 : i32
    %c0_i32_0 = arith.constant 0 : i32
    %c0_i32_1 = arith.constant 0 : i32
    return %c0_i32, %c0_i32_0 : i32, i32
  }
  func.func @transform_2(%arg0: i32) -> (i32, i32) {
    %c0_i32 = arith.constant 0 : i32
    %c0_i32_0 = arith.constant 0 : i32
    %c0_i32_1 = arith.constant 0 : i32
    return %c0_i32, %c0_i32_0 : i32, i32
  }
  func.func @transform_3(%arg0: i32) -> (i32, i32) {
    %c0_i32 = arith.constant 0 : i32
    %c0_i32_0 = arith.constant 0 : i32
    %c0_i32_1 = arith.constant 0 : i32
    return %c0_i32, %c0_i32_0 : i32, i32
  }
  func.func @transform_4(%arg0: i32) -> (i32, i32) {
    %c0_i32 = arith.constant 0 : i32
    %c0_i32_0 = arith.constant 0 : i32
    %c0_i32_1 = arith.constant 0 : i32
    return %c0_i32, %c0_i32_0 : i32, i32
  }
  func.func @transform_5(%arg0: i32) -> (i32, i32) {
    %c0_i32 = arith.constant 0 : i32
    %c0_i32_0 = arith.constant 0 : i32
    %c0_i32_1 = arith.constant 0 : i32
    return %c0_i32, %c0_i32_0 : i32, i32
  }
  func.func @transform_6(%arg0: i32) -> (i32, i32) {
    %c0_i32 = arith.constant 0 : i32
    %c0_i32_0 = arith.constant 0 : i32
    %c0_i32_1 = arith.constant 0 : i32
    return %c0_i32, %c0_i32_0 : i32, i32
  }
  func.func @transform_7(%arg0: i32) -> (i32, i32) {
    %c0_i32 = arith.constant 0 : i32
    %c0_i32_0 = arith.constant 0 : i32
    %c0_i32_1 = arith.constant 0 : i32
    return %c0_i32, %c0_i32_0 : i32, i32
  }
  func.func @transform_8(%arg0: i32) -> (i32, i32) {
    %c0_i32 = arith.constant 0 : i32
    %c0_i32_0 = arith.constant 0 : i32
    %c0_i32_1 = arith.constant 0 : i32
    return %c0_i32, %c0_i32_0 : i32, i32
  }
  func.func @transform_9(%arg0: i32) -> (i32, i32) {
    %c0_i32 = arith.constant 0 : i32
    %c0_i32_0 = arith.constant 0 : i32
    %c0_i32_1 = arith.constant 0 : i32
    return %c0_i32, %c0_i32_0 : i32, i32
  }
  func.func @transform_10(%arg0: i32) -> (i32, i32) {
    %c0_i32 = arith.constant 0 : i32
    %c0_i32_0 = arith.constant 0 : i32
    %c0_i32_1 = arith.constant 0 : i32
    return %c0_i32, %c0_i32_0 : i32, i32
  }
  func.func @transform_11(%arg0: i32) -> (i32, i32) {
    %c0_i32 = arith.constant 0 : i32
    %c0_i32_0 = arith.constant 0 : i32
    %c0_i32_1 = arith.constant 0 : i32
    return %c0_i32, %c0_i32_0 : i32, i32
  }
  func.func @transform_12(%arg0: i32) -> (i32, i32) {
    %c0_i32 = arith.constant 0 : i32
    %c0_i32_0 = arith.constant 0 : i32
    %c0_i32_1 = arith.constant 0 : i32
    return %c0_i32, %c0_i32_0 : i32, i32
  }
  func.func @transform_13(%arg0: i32) -> (i32, i32) {
    %c0_i32 = arith.constant 0 : i32
    %c0_i32_0 = arith.constant 0 : i32
    %c0_i32_1 = arith.constant 0 : i32
    return %c0_i32, %c0_i32_0 : i32, i32
  }
  func.func @transform_14(%arg0: i32) -> (i32, i32, i32) {
    %c0_i32 = arith.constant 0 : i32
    %c0_i32_0 = arith.constant 0 : i32
    %c0_i32_1 = arith.constant 0 : i32
    return %arg0, %c0_i32, %c0_i32_0 : i32, i32, i32
  }
}

</mosaic_0001>

<llo_original>
// kernel: tpu_custom_call.1
$region0: #{tpu_custom_call.1}
  #allocation0 [shape = 'u32[]', space=smem, size = 0x4, offset = 0x4, fixed_abs, tag = 'smem constant byte address 0x4 - core index']
  #allocation1 [shape = 'u32[144,128]{1,0:T(1,128)}', space=vmem, size = 0x12000, scoped, tag = 'internal scratch']
  %s0 = inlined_call_operand.vmem [shape: f32[32,8,16], index: 0, kind: input, shape index: {}]
  %s1 = inlined_call_operand.vmem [shape: f32[16,32], index: 1, kind: input, shape index: {}]
  %s2 = inlined_call_operand.vmem [shape: f32[1,32], index: 2, kind: input, shape index: {}]
  %s3 = inlined_call_operand.vmem [shape: f32[1,32], index: 3, kind: input, shape index: {}]
  %s4 = inlined_call_operand.vmem [shape: f32[1,32], index: 4, kind: input, shape index: {}]
  %s5 = inlined_call_operand.vmem [shape: f32[8,32], index: 5, kind: input, shape index: {}]
  %s6 = inlined_call_operand.vmem [shape: f32[32,192], index: 6, kind: input, shape index: {}]
  %s7 = inlined_call_operand.vmem [shape: f32[1,192], index: 7, kind: input, shape index: {}]
  %s8 = inlined_call_operand.vmem [shape: f32[64,32], index: 8, kind: input, shape index: {}]
  %s9 = inlined_call_operand.vmem [shape: f32[1,32], index: 9, kind: input, shape index: {}]
  %s10 = inlined_call_operand.vmem [shape: f32[1,32], index: 10, kind: input, shape index: {}]
  %s11 = inlined_call_operand.vmem [shape: f32[1,32], index: 11, kind: input, shape index: {}]
  %s12 = inlined_call_operand.vmem [shape: f32[32,16], index: 12, kind: input, shape index: {}]
  %s13 = inlined_call_operand.vmem [shape: f32[1,16], index: 13, kind: input, shape index: {}]
  %s14 = inlined_call_operand.vmem [shape: f32[32,8,16], index: 14, kind: output, shape index: {}]
  %s15 = sld [smem:[#allocation0]]
  $region89: #{tpu_custom_call.1} parent=0
    _
  %s17 = ssub.s32 1, %s15
  %s18 = scalar_select 0, %s17, %s15
  loop: start=0, step=1, limit=4
  $region2: #{tpu_custom_call.1} parent=0 // loop_pre_header
    _
  $region3: #{tpu_custom_call.1} parent=0 // loop_header
    %s20 = sphi 0, %s24
    %p21 = scmp.ge.s32.totalorder %s20, 4
    %s30 = sphi 0, %s32
    %s33 = sphi 0, %s30
    %s34 = sphi 0, %s33
    %s50 = sphi 0, %s34
    %s54 = sphi 0, %s54
    %s56 = sphi 0, %s54
    %s57 = sphi 0, %s56
    %s71 = sphi 0, %s57
    %s75 = sphi 0, %s75
    %s77 = sphi 0, %s75
    %s78 = sphi 0, %s77
    %s92 = sphi 0, %s78
    %s96 = sphi 0, %s96
    %s98 = sphi 0, %s96
    %s99 = sphi 0, %s98
    %s113 = sphi 0, %s99
    %s117 = sphi 0, %s117
    %s119 = sphi 0, %s117
    %s120 = sphi 0, %s119
    %s134 = sphi 0, %s120
    %s138 = sphi 0, %s138
    %s140 = sphi 0, %s138
    %s141 = sphi 0, %s140
    %s155 = sphi 0, %s141
    %s159 = sphi 0, %s159
    %s161 = sphi 0, %s159
    %s162 = sphi 0, %s161
    %s176 = sphi 0, %s162
    %s180 = sphi 0, %s180
    %s182 = sphi 0, %s180
    %s183 = sphi 0, %s182
    %s197 = sphi 0, %s183
    %s201 = sphi 0, %s201
    %s203 = sphi 0, %s201
    %s204 = sphi 0, %s203
    %s218 = sphi 0, %s204
    %s222 = sphi 0, %s222
    %s224 = sphi 0, %s222
    %s225 = sphi 0, %s224
    %s239 = sphi 0, %s225
    %s243 = sphi 0, %s243
    %s245 = sphi 0, %s243
    %s246 = sphi 0, %s245
    %s260 = sphi 0, %s246
    %s264 = sphi 0, %s264
    %s266 = sphi 0, %s264
    %s267 = sphi 0, %s266
    %s281 = sphi 0, %s267
    %s285 = sphi 0, %s285
    %s287 = sphi 0, %s285
    %s288 = sphi 0, %s287
    %s302 = sphi 0, %s288
    %s306 = sphi 0, %s306
    %s308 = sphi 0, %s306
    %s309 = sphi 0, %s308
    %s323 = sphi 0, %s309
    %s329 = sphi 0, %s331
    %s332 = sphi 0, %s329
    %s333 = sphi 0, %s332
    %s349 = sphi 0, %s333
  $region4: #{tpu_custom_call.1} parent=0 // loop_header_branch
    %23 = sbr.rel (%p21) target = $region8
  $region5: #{tpu_custom_call.1} parent=0 // loop_body
    %s25 = ssub.s32 %s20, 1
    %s26 = ssub.s32 %s20, 2
    %s27 = sadd.s32 %s20, 1
    %s28 = ssub.s32 %s20, %s27
    %p29 = scmp.eq.s32.totalorder %s28, 0
    %s31 = sadd.s32 %s30, 1
    %s32 = scalar_select %p29, %s30, %s31
    %p35 = pneg %p29
    %p36 = scmp.eq.s32.totalorder %s20, 1
    %p37 = por %p35, %p36
    %p38 = scmp.ne.s32.totalorder %s30, %s33
    %p39 = scmp.eq.s32.totalorder %s20, 0
    %p40 = por %p38, %p39
    %p41 = scmp.ne.s32.totalorder %s30, %s33
    %p42 = scmp.eq.s32.totalorder %s25, 1
    %p43 = por %p41, %p42
    %p44 = scmp.ne.s32.totalorder %s33, %s34
    %p45 = scmp.eq.s32.totalorder %s25, 0
    %p46 = por %p44, %p45
    %p47 = scmp.ne.s32.totalorder %s33, %s34
    %p48 = scmp.eq.s32.totalorder %s26, 1
    %p49 = por %p47, %p48
    %p51 = scmp.ne.s32.totalorder %s34, %s50
    %p52 = scmp.eq.s32.totalorder %s26, 0
    %p53 = por %p51, %p52
    %s55 = sadd.s32 %s54, 1
    %p58 = scmp.eq.s32.totalorder %s20, 1
    %p59 = scmp.ne.s32.totalorder %s54, %s56
    %p60 = scmp.eq.s32.totalorder %s20, 0
    %p61 = por %p59, %p60
    %p62 = scmp.ne.s32.totalorder %s54, %s56
    %p63 = scmp.eq.s32.totalorder %s25, 1
    %p64 = por %p62, %p63
    %p65 = scmp.ne.s32.totalorder %s56, %s57
    %p66 = scmp.eq.s32.totalorder %s25, 0
    %p67 = por %p65, %p66
    %p68 = scmp.ne.s32.totalorder %s56, %s57
    %p69 = scmp.eq.s32.totalorder %s26, 1
    %p70 = por %p68, %p69
    %p72 = scmp.ne.s32.totalorder %s57, %s71
    %p73 = scmp.eq.s32.totalorder %s26, 0
    %p74 = por %p72, %p73
    %s76 = sadd.s32 %s75, 1
    %p79 = scmp.eq.s32.totalorder %s20, 1
    %p80 = scmp.ne.s32.totalorder %s75, %s77
    %p81 = scmp.eq.s32.totalorder %s20, 0
    %p82 = por %p80, %p81
    %p83 = scmp.ne.s32.totalorder %s75, %s77
    %p84 = scmp.eq.s32.totalorder %s25, 1
    %p85 = por %p83, %p84
    %p86 = scmp.ne.s32.totalorder %s77, %s78
    %p87 = scmp.eq.s32.totalorder %s25, 0
    %p88 = por %p86, %p87
    %p89 = scmp.ne.s32.totalorder %s77, %s78
    %p90 = scmp.eq.s32.totalorder %s26, 1
    %p91 = por %p89, %p90
    %p93 = scmp.ne.s32.totalorder %s78, %s92
    %p94 = scmp.eq.s32.totalorder %s26, 0
    %p95 = por %p93, %p94
    %s97 = sadd.s32 %s96, 1
    %p100 = scmp.eq.s32.totalorder %s20, 1
    %p101 = scmp.ne.s32.totalorder %s96, %s98
    %p102 = scmp.eq.s32.totalorder %s20, 0
    %p103 = por %p101, %p102
    %p104 = scmp.ne.s32.totalorder %s96, %s98
    %p105 = scmp.eq.s32.totalorder %s25, 1
    %p106 = por %p104, %p105
    %p107 = scmp.ne.s32.totalorder %s98, %s99
    %p108 = scmp.eq.s32.totalorder %s25, 0
    %p109 = por %p107, %p108
    %p110 = scmp.ne.s32.totalorder %s98, %s99
    %p111 = scmp.eq.s32.totalorder %s26, 1
    %p112 = por %p110, %p111
    %p114 = scmp.ne.s32.totalorder %s99, %s113
    %p115 = scmp.eq.s32.totalorder %s26, 0
    %p116 = por %p114, %p115
    %s118 = sadd.s32 %s117, 1
    %p121 = scmp.eq.s32.totalorder %s20, 1
    %p122 = scmp.ne.s32.totalorder %s117, %s119
    %p123 = scmp.eq.s32.totalorder %s20, 0
    %p124 = por %p122, %p123
    %p125 = scmp.ne.s32.totalorder %s117, %s119
    %p126 = scmp.eq.s32.totalorder %s25, 1
    %p127 = por %p125, %p126
    %p128 = scmp.ne.s32.totalorder %s119, %s120
    %p129 = scmp.eq.s32.totalorder %s25, 0
    %p130 = por %p128, %p129
    %p131 = scmp.ne.s32.totalorder %s119, %s120
    %p132 = scmp.eq.s32.totalorder %s26, 1
    %p133 = por %p131, %p132
    %p135 = scmp.ne.s32.totalorder %s120, %s134
    %p136 = scmp.eq.s32.totalorder %s26, 0
    %p137 = por %p135, %p136
    %s139 = sadd.s32 %s138, 1
    %p142 = scmp.eq.s32.totalorder %s20, 1
    %p143 = scmp.ne.s32.totalorder %s138, %s140
    %p144 = scmp.eq.s32.totalorder %s20, 0
    %p145 = por %p143, %p144
    %p146 = scmp.ne.s32.totalorder %s138, %s140
    %p147 = scmp.eq.s32.totalorder %s25, 1
    %p148 = por %p146, %p147
    %p149 = scmp.ne.s32.totalorder %s140, %s141
    %p150 = scmp.eq.s32.totalorder %s25, 0
    %p151 = por %p149, %p150
    %p152 = scmp.ne.s32.totalorder %s140, %s141
    %p153 = scmp.eq.s32.totalorder %s26, 1
    %p154 = por %p152, %p153
    %p156 = scmp.ne.s32.totalorder %s141, %s155
    %p157 = scmp.eq.s32.totalorder %s26, 0
    %p158 = por %p156, %p157
    %s160 = sadd.s32 %s159, 1
    %p163 = scmp.eq.s32.totalorder %s20, 1
    %p164 = scmp.ne.s32.totalorder %s159, %s161
    %p165 = scmp.eq.s32.totalorder %s20, 0
    %p166 = por %p164, %p165
    %p167 = scmp.ne.s32.totalorder %s159, %s161
    %p168 = scmp.eq.s32.totalorder %s25, 1
    %p169 = por %p167, %p168
    %p170 = scmp.ne.s32.totalorder %s161, %s162
    %p171 = scmp.eq.s32.totalorder %s25, 0
    %p172 = por %p170, %p171
    %p173 = scmp.ne.s32.totalorder %s161, %s162
    %p174 = scmp.eq.s32.totalorder %s26, 1
    %p175 = por %p173, %p174
    %p177 = scmp.ne.s32.totalorder %s162, %s176
    %p178 = scmp.eq.s32.totalorder %s26, 0
    %p179 = por %p177, %p178
    %s181 = sadd.s32 %s180, 1
    %p184 = scmp.eq.s32.totalorder %s20, 1
    %p185 = scmp.ne.s32.totalorder %s180, %s182
    %p186 = scmp.eq.s32.totalorder %s20, 0
    %p187 = por %p185, %p186
    %p188 = scmp.ne.s32.totalorder %s180, %s182
    %p189 = scmp.eq.s32.totalorder %s25, 1
    %p190 = por %p188, %p189
    %p191 = scmp.ne.s32.totalorder %s182, %s183
    %p192 = scmp.eq.s32.totalorder %s25, 0
    %p193 = por %p191, %p192
    %p194 = scmp.ne.s32.totalorder %s182, %s183
    %p195 = scmp.eq.s32.totalorder %s26, 1
    %p196 = por %p194, %p195
    %p198 = scmp.ne.s32.totalorder %s183, %s197
    %p199 = scmp.eq.s32.totalorder %s26, 0
    %p200 = por %p198, %p199
    %s202 = sadd.s32 %s201, 1
    %p205 = scmp.eq.s32.totalorder %s20, 1
    %p206 = scmp.ne.s32.totalorder %s201, %s203
    %p207 = scmp.eq.s32.totalorder %s20, 0
    %p208 = por %p206, %p207
    %p209 = scmp.ne.s32.totalorder %s201, %s203
    %p210 = scmp.eq.s32.totalorder %s25, 1
    %p211 = por %p209, %p210
    %p212 = scmp.ne.s32.totalorder %s203, %s204
    %p213 = scmp.eq.s32.totalorder %s25, 0
    %p214 = por %p212, %p213
    %p215 = scmp.ne.s32.totalorder %s203, %s204
    %p216 = scmp.eq.s32.totalorder %s26, 1
    %p217 = por %p215, %p216
    %p219 = scmp.ne.s32.totalorder %s204, %s218
    %p220 = scmp.eq.s32.totalorder %s26, 0
    %p221 = por %p219, %p220
    %s223 = sadd.s32 %s222, 1
    %p226 = scmp.eq.s32.totalorder %s20, 1
    %p227 = scmp.ne.s32.totalorder %s222, %s224
    %p228 = scmp.eq.s32.totalorder %s20, 0
    %p229 = por %p227, %p228
    %p230 = scmp.ne.s32.totalorder %s222, %s224
    %p231 = scmp.eq.s32.totalorder %s25, 1
    %p232 = por %p230, %p231
    %p233 = scmp.ne.s32.totalorder %s224, %s225
    %p234 = scmp.eq.s32.totalorder %s25, 0
    %p235 = por %p233, %p234
    %p236 = scmp.ne.s32.totalorder %s224, %s225
    %p237 = scmp.eq.s32.totalorder %s26, 1
    %p238 = por %p236, %p237
    %p240 = scmp.ne.s32.totalorder %s225, %s239
    %p241 = scmp.eq.s32.totalorder %s26, 0
    %p242 = por %p240, %p241
    %s244 = sadd.s32 %s243, 1
    %p247 = scmp.eq.s32.totalorder %s20, 1
    %p248 = scmp.ne.s32.totalorder %s243, %s245
    %p249 = scmp.eq.s32.totalorder %s20, 0
    %p250 = por %p248, %p249
    %p251 = scmp.ne.s32.totalorder %s243, %s245
    %p252 = scmp.eq.s32.totalorder %s25, 1
    %p253 = por %p251, %p252
    %p254 = scmp.ne.s32.totalorder %s245, %s246
    %p255 = scmp.eq.s32.totalorder %s25, 0
    %p256 = por %p254, %p255
    %p257 = scmp.ne.s32.totalorder %s245, %s246
    %p258 = scmp.eq.s32.totalorder %s26, 1
    %p259 = por %p257, %p258
    %p261 = scmp.ne.s32.totalorder %s246, %s260
    %p262 = scmp.eq.s32.totalorder %s26, 0
    %p263 = por %p261, %p262
    %s265 = sadd.s32 %s264, 1
    %p268 = scmp.eq.s32.totalorder %s20, 1
    %p269 = scmp.ne.s32.totalorder %s264, %s266
    %p270 = scmp.eq.s32.totalorder %s20, 0
    %p271 = por %p269, %p270
    %p272 = scmp.ne.s32.totalorder %s264, %s266
    %p273 = scmp.eq.s32.totalorder %s25, 1
    %p274 = por %p272, %p273
    %p275 = scmp.ne.s32.totalorder %s266, %s267
    %p276 = scmp.eq.s32.totalorder %s25, 0
    %p277 = por %p275, %p276
    %p278 = scmp.ne.s32.totalorder %s266, %s267
    %p279 = scmp.eq.s32.totalorder %s26, 1
    %p280 = por %p278, %p279
    %p282 = scmp.ne.s32.totalorder %s267, %s281
    %p283 = scmp.eq.s32.totalorder %s26, 0
    %p284 = por %p282, %p283
    %s286 = sadd.s32 %s285, 1
    %p289 = scmp.eq.s32.totalorder %s20, 1
    %p290 = scmp.ne.s32.totalorder %s285, %s287
    %p291 = scmp.eq.s32.totalorder %s20, 0
    %p292 = por %p290, %p291
    %p293 = scmp.ne.s32.totalorder %s285, %s287
    %p294 = scmp.eq.s32.totalorder %s25, 1
    %p295 = por %p293, %p294
    %p296 = scmp.ne.s32.totalorder %s287, %s288
    %p297 = scmp.eq.s32.totalorder %s25, 0
    %p298 = por %p296, %p297
    %p299 = scmp.ne.s32.totalorder %s287, %s288
    %p300 = scmp.eq.s32.totalorder %s26, 1
    %p301 = por %p299, %p300
    %p303 = scmp.ne.s32.totalorder %s288, %s302
    %p304 = scmp.eq.s32.totalorder %s26, 0
    %p305 = por %p303, %p304
    %s307 = sadd.s32 %s306, 1
    %p310 = scmp.eq.s32.totalorder %s20, 1
    %p311 = scmp.ne.s32.totalorder %s306, %s308
    %p312 = scmp.eq.s32.totalorder %s20, 0
    %p313 = por %p311, %p312
    %p314 = scmp.ne.s32.totalorder %s306, %s308
    %p315 = scmp.eq.s32.totalorder %s25, 1
    %p316 = por %p314, %p315
    %p317 = scmp.ne.s32.totalorder %s308, %s309
    %p318 = scmp.eq.s32.totalorder %s25, 0
    %p319 = por %p317, %p318
    %p320 = scmp.ne.s32.totalorder %s308, %s309
    %p321 = scmp.eq.s32.totalorder %s26, 1
    %p322 = por %p320, %p321
    %p324 = scmp.ne.s32.totalorder %s309, %s323
    %p325 = scmp.eq.s32.totalorder %s26, 0
    %p326 = por %p324, %p325
    %s327 = ssub.s32 %s20, %s27
    %p328 = scmp.eq.s32.totalorder %s327, 0
    %s330 = sadd.s32 %s329, 1
    %s331 = scalar_select %p328, %s329, %s330
    %p334 = pneg %p328
    %p335 = scmp.eq.s32.totalorder %s20, 1
    %p336 = por %p334, %p335
    %p337 = scmp.ne.s32.totalorder %s329, %s332
    %p338 = scmp.eq.s32.totalorder %s20, 0
    %p339 = por %p337, %p338
    %p340 = scmp.ne.s32.totalorder %s329, %s332
    %p341 = scmp.eq.s32.totalorder %s25, 1
    %p342 = por %p340, %p341
    %p343 = scmp.ne.s32.totalorder %s332, %s333
    %p344 = scmp.eq.s32.totalorder %s25, 0
    %p345 = por %p343, %p344
    %p346 = scmp.ne.s32.totalorder %s332, %s333
    %p347 = scmp.eq.s32.totalorder %s26, 1
    %p348 = por %p346, %p347
    %p350 = scmp.ne.s32.totalorder %s333, %s349
    %p351 = scmp.eq.s32.totalorder %s26, 0
    %p352 = por %p350, %p351
    %p353 = scmp.le.s32.totalorder 1, %s20
    %p354 = scmp.lt.s32.totalorder %s20, 3
    %p355 = pnand %p353, %p354
    %p356 = pneg %p355
    // Predicated region
    $region9: #{tpu_custom_call.1} parent=5 // pred_check
      _
    $region10: #{tpu_custom_call.1} parent=5 // pred_check_branch
      %358 = sbr.rel (%p355) target = $region12
    $region11: #{tpu_custom_call.1} parent=5 // pred_region
      %s359 = ssub.s32 %s20, 1
      // Predicated region
      $region13: #{tpu_custom_call.1} parent=11 // pred_check
        %p360 = pneg %p67
      $region14: #{tpu_custom_call.1} parent=11 // pred_check_branch
        %362 = sbr.rel (%p360) target = $region16
      $region15: #{tpu_custom_call.1} parent=11 // pred_region
        _
      $region16: #{tpu_custom_call.1} parent=11 // pred_fallthru
        _
      // Predicated region
      $region17: #{tpu_custom_call.1} parent=11 // pred_check
        %p363 = pneg %p88
      $region18: #{tpu_custom_call.1} parent=11 // pred_check_branch
        %365 = sbr.rel (%p363) target = $region20
      $region19: #{tpu_custom_call.1} parent=11 // pred_region
        _
      $region20: #{tpu_custom_call.1} parent=11 // pred_fallthru
        _
      // Predicated region
      $region21: #{tpu_custom_call.1} parent=11 // pred_check
        %p366 = pneg %p109
      $region22: #{tpu_custom_call.1} parent=11 // pred_check_branch
        %368 = sbr.rel (%p366) target = $region24
      $region23: #{tpu_custom_call.1} parent=11 // pred_region
        _
      $region24: #{tpu_custom_call.1} parent=11 // pred_fallthru
        _
      // Predicated region
      $region25: #{tpu_custom_call.1} parent=11 // pred_check
        %p369 = pneg %p130
      $region26: #{tpu_custom_call.1} parent=11 // pred_check_branch
        %371 = sbr.rel (%p369) target = $region28
      $region27: #{tpu_custom_call.1} parent=11 // pred_region
        _
      $region28: #{tpu_custom_call.1} parent=11 // pred_fallthru
        _
      // Predicated region
      $region29: #{tpu_custom_call.1} parent=11 // pred_check
        %p372 = pneg %p151
      $region30: #{tpu_custom_call.1} parent=11 // pred_check_branch
        %374 = sbr.rel (%p372) target = $region32
      $region31: #{tpu_custom_call.1} parent=11 // pred_region
        _
      $region32: #{tpu_custom_call.1} parent=11 // pred_fallthru
        _
      // Predicated region
      $region33: #{tpu_custom_call.1} parent=11 // pred_check
        %p375 = pneg %p172
      $region34: #{tpu_custom_call.1} parent=11 // pred_check_branch
        %377 = sbr.rel (%p375) target = $region36
      $region35: #{tpu_custom_call.1} parent=11 // pred_region
        _
      $region36: #{tpu_custom_call.1} parent=11 // pred_fallthru
        _
      // Predicated region
      $region37: #{tpu_custom_call.1} parent=11 // pred_check
        %p378 = pneg %p193
      $region38: #{tpu_custom_call.1} parent=11 // pred_check_branch
        %380 = sbr.rel (%p378) target = $region40
      $region39: #{tpu_custom_call.1} parent=11 // pred_region
        _
      $region40: #{tpu_custom_call.1} parent=11 // pred_fallthru
        _
      // Predicated region
      $region41: #{tpu_custom_call.1} parent=11 // pred_check
        %p381 = pneg %p214
      $region42: #{tpu_custom_call.1} parent=11 // pred_check_branch
        %383 = sbr.rel (%p381) target = $region44
      $region43: #{tpu_custom_call.1} parent=11 // pred_region
        _
      $region44: #{tpu_custom_call.1} parent=11 // pred_fallthru
        _
      // Predicated region
      $region45: #{tpu_custom_call.1} parent=11 // pred_check
        %p384 = pneg %p235
      $region46: #{tpu_custom_call.1} parent=11 // pred_check_branch
        %386 = sbr.rel (%p384) target = $region48
      $region47: #{tpu_custom_call.1} parent=11 // pred_region
        _
      $region48: #{tpu_custom_call.1} parent=11 // pred_fallthru
        _
      // Predicated region
      $region49: #{tpu_custom_call.1} parent=11 // pred_check
        %p387 = pneg %p256
      $region50: #{tpu_custom_call.1} parent=11 // pred_check_branch
        %389 = sbr.rel (%p387) target = $region52
      $region51: #{tpu_custom_call.1} parent=11 // pred_region
        _
      $region52: #{tpu_custom_call.1} parent=11 // pred_fallthru
        _
      // Predicated region
      $region53: #{tpu_custom_call.1} parent=11 // pred_check
        %p390 = pneg %p277
      $region54: #{tpu_custom_call.1} parent=11 // pred_check_branch
        %392 = sbr.rel (%p390) target = $region56
      $region55: #{tpu_custom_call.1} parent=11 // pred_region
        _
      $region56: #{tpu_custom_call.1} parent=11 // pred_fallthru
        _
      // Predicated region
      $region57: #{tpu_custom_call.1} parent=11 // pred_check
        %p393 = pneg %p298
      $region58: #{tpu_custom_call.1} parent=11 // pred_check_branch
        %395 = sbr.rel (%p393) target = $region60
      $region59: #{tpu_custom_call.1} parent=11 // pred_region
        _
      $region60: #{tpu_custom_call.1} parent=11 // pred_fallthru
        _
      // Predicated region
      $region61: #{tpu_custom_call.1} parent=11 // pred_check
        %p396 = pneg %p319
      $region62: #{tpu_custom_call.1} parent=11 // pred_check_branch
        %398 = sbr.rel (%p396) target = $region64
      $region63: #{tpu_custom_call.1} parent=11 // pred_region
        _
      $region64: #{tpu_custom_call.1} parent=11 // pred_fallthru
        _
    $region12: #{tpu_custom_call.1} parent=5 // pred_fallthru
      _
    %p399 = scmp.lt.s32.totalorder %s20, 2
    // Predicated region
    $region65: #{tpu_custom_call.1} parent=5 // pred_check
      %p400 = pneg %p399
    $region66: #{tpu_custom_call.1} parent=5 // pred_check_branch
      %402 = sbr.rel (%p400) target = $region68
    $region67: #{tpu_custom_call.1} parent=5 // pred_region
      // Predicated region
      $region69: #{tpu_custom_call.1} parent=67 // pred_check
        %p403 = pneg %p40
      $region70: #{tpu_custom_call.1} parent=67 // pred_check_branch
        %405 = sbr.rel (%p403) target = $region72
      $region71: #{tpu_custom_call.1} parent=67 // pred_region
        %s406 = smul.u32 16, %s20
        %p407 = scmp.lt.s32.totalorder %s406, 31
        %s408 = scalar_select %p407, %s406, 31
        %s409 = smul.addr %s408, 8
        %s410 = scalar_lea.vmem %s0, %s409
        %s411 = smul.u32 16, %s20
      $region72: #{tpu_custom_call.1} parent=67 // pred_fallthru
        _
    $region68: #{tpu_custom_call.1} parent=5 // pred_fallthru
      _
    %p412 = scmp.le.s32.totalorder 1, %s20
    %p413 = scmp.lt.s32.totalorder %s20, 3
    %p414 = pnand %p412, %p413
    %p415 = pneg %p414
    // Predicated region
    $region73: #{tpu_custom_call.1} parent=5 // pred_check
      _
    $region74: #{tpu_custom_call.1} parent=5 // pred_check_branch
      %417 = sbr.rel (%p414) target = $region76
    $region75: #{tpu_custom_call.1} parent=5 // pred_region
      %s418 = ssub.s32 %s20, 1
      %s419 = smul.u32 16, %s25
      %p420 = scmp.lt.s32.totalorder %s419, 31
      %s421 = scalar_select %p420, %s419, 31
      %s422 = smul.addr %s421, 8
      %s423 = scalar_lea.vmem %s0, %s422
      %p424 = pneg %p46
      %p425 = pneg %p43
      %p426 = pneg %p67
      %p427 = pneg %p64
      %p428 = pneg %p88
      %p429 = pneg %p85
      %p430 = pneg %p109
      %p431 = pneg %p106
      %p432 = pneg %p130
      %p433 = pneg %p127
      %p434 = pneg %p151
      %p435 = pneg %p148
      %p436 = pneg %p172
      %p437 = pneg %p169
      %p438 = pneg %p193
      %p439 = pneg %p190
      %p440 = pneg %p214
      %p441 = pneg %p211
      %p442 = pneg %p235
      %p443 = pneg %p232
      %p444 = pneg %p256
      %p445 = pneg %p253
      %p446 = pneg %p277
      %p447 = pneg %p274
      %p448 = pneg %p298
      %p449 = pneg %p295
      %p450 = pneg %p319
      %p451 = pneg %p316
      %p452 = pneg %p345
      %p453 = pneg %p342
      %s454 = smul.u32 16, %s25
      %p455 = scmp.lt.s32.totalorder %s454, 31
      %s456 = scalar_select %p455, %s454, 31
      %s457 = smul.addr %s456, 8
      %s458 = scalar_lea.vmem %s14, %s457
      %s459 = smul.u32 16, %s25
      %p460 = scmp.lt.s32.totalorder %s459, 31
      %s461 = scalar_select %p460, %s459, 31
      %s462 = smul.addr %s461, 8
      %s463 = scalar_lea.vmem %s0, %s462
      %s464 = smul.u32 16, %s25
      %s465 = smul.u32 16, %s25
      %p466 = scmp.lt.s32.totalorder %s465, 31
      %s467 = scalar_select %p466, %s465, 31
      %s468 = smul.addr %s467, 8
      %s469 = scalar_lea.vmem %s14, %s468
      %s470 = smul.u32 16, %s25
      %v471 = vld [vmem:[%s463] sm:$0xff]
      %v472 = vld [vmem:[%s463 + $0x8] sm:$0xff]
      %v473 = vld [vmem:[%s463 + $0x10] sm:$0xff]
      %v474 = vld [vmem:[%s463 + $0x18] sm:$0xff]
      %v475 = vld [vmem:[%s463 + $0x20] sm:$0xff]
      %v476 = vld [vmem:[%s463 + $0x28] sm:$0xff]
      %v477 = vld [vmem:[%s463 + $0x30] sm:$0xff]
      %v478 = vld [vmem:[%s463 + $0x38] sm:$0xff]
      %v479 = vld [vmem:[%s463 + $0x40] sm:$0xff]
      %v480 = vld [vmem:[%s463 + $0x48] sm:$0xff]
      %v481 = vld [vmem:[%s463 + $0x50] sm:$0xff]
      %v482 = vld [vmem:[%s463 + $0x58] sm:$0xff]
      %v483 = vld [vmem:[%s463 + $0x60] sm:$0xff]
      %v484 = vld [vmem:[%s463 + $0x68] sm:$0xff]
      %v485 = vld [vmem:[%s463 + $0x70] sm:$0xff]
      %v486 = vld [vmem:[%s463 + $0x78] sm:$0xff]
      %v487 = vld [vmem:[%s1] sm:$0xff]
      %v488 = vld [vmem:[%s1 + $0x8] sm:$0xff]
      %v489 = vld [vmem:[%s2] sm:$0x1]
      %v491 = vlaneseq
      %v492 = vshrl.u32 %v491, 7
      %v493 = vsub.s32 0, %v492
      %v494 = vrot.slane %v489, %v493
      %vm496 = vcmask 130048
      %v498 = vsel %vm496, %v471, 0
      %v501 = vsel %vm496, %v472, 0
      %v504 = vsel %vm496, %v473, 0
      %v507 = vsel %vm496, %v474, 0
      %v510 = vsel %vm496, %v475, 0
      %v513 = vsel %vm496, %v476, 0
      %v516 = vsel %vm496, %v477, 0
      %v519 = vsel %vm496, %v478, 0
      %v522 = vsel %vm496, %v479, 0
      %v525 = vsel %vm496, %v480, 0
      %v528 = vsel %vm496, %v481, 0
      %v531 = vsel %vm496, %v482, 0
      %v534 = vsel %vm496, %v483, 0
      %v537 = vsel %vm496, %v484, 0
      %v540 = vsel %vm496, %v485, 0
      %v543 = vsel %vm496, %v486, 0
      %545 = vmatprep.subr.mxu0 0.0
      %546 = vmatpush1.msra.mxu0 %v487
      %547 = vmatprep.subr.mxu0 0.0
      %548 = vmatpush1.msra.mxu0 %v488
      %549 = vmatprep.subr.mxu0 0.0
      %550 = vmatpush1.msra.mxu0 0.0
      %551 = vmatprep.subr.mxu0 0.0
      %552 = vmatpush1.msra.mxu0 0.0
      %553 = vmatprep.subr.mxu0 0.0
      %554 = vmatpush1.msra.mxu0 0.0
      %555 = vmatprep.subr.mxu0 0.0
      %556 = vmatpush1.msra.mxu0 0.0
      %557 = vmatprep.subr.mxu0 0.0
      %558 = vmatpush1.msra.mxu0 0.0
      %559 = vmatprep.subr.mxu0 0.0
      %560 = vmatpush1.msra.mxu0 0.0
      %561 = vmatprep.subr.mxu0 0.0
      %562 = vmatpush1.msra.mxu0 0.0
      %563 = vmatprep.subr.mxu0 0.0
      %564 = vmatpush1.msra.mxu0 0.0
      %565 = vmatprep.subr.mxu0 0.0
      %566 = vmatpush1.msra.mxu0 0.0
      %567 = vmatprep.subr.mxu0 0.0
      %568 = vmatpush1.msra.mxu0 0.0
      %569 = vmatprep.subr.mxu0 0.0
      %570 = vmatpush1.msra.mxu0 0.0
      %571 = vmatprep.subr.mxu0 0.0
      %572 = vmatpush1.msra.mxu0 0.0
      %573 = vmatprep.subr.mxu0 0.0
      %574 = vmatpush1.msra.mxu0 0.0
      %575 = vmatprep.subr.mxu0 0.0
      %576 = vmatpush1.msra.mxu0 0.0
      %577 = vmatprep.subr.mxu0 0.0
      %578 = vmatpush1.msra.mxu0 0.0
      %579 = vmatprep.subr.mxu0 0.0
      %580 = vmatpush1.msra.mxu0 0.0
      %581 = vmatprep.subr.mxu0 0.0
      %582 = vmatpush1.msra.mxu0 0.0
      %583 = vmatprep.subr.mxu0 0.0
      %584 = vmatpush1.msra.mxu0 0.0
      %585 = vmatprep.subr.mxu0 0.0
      %586 = vmatpush1.msra.mxu0 0.0
      %587 = vmatprep.subr.mxu0 0.0
      %588 = vmatpush1.msra.mxu0 0.0
      %589 = vmatprep.subr.mxu0 0.0
      %590 = vmatpush1.msra.mxu0 0.0
      %591 = vmatprep.subr.mxu0 0.0
      %592 = vmatpush1.msra.mxu0 0.0
      %593 = vmatprep.subr.mxu0 0.0
      %594 = vmatpush1.msra.mxu0 0.0
      %595 = vmatprep.subr.mxu0 0.0
      %596 = vmatpush1.msra.mxu0 0.0
      %597 = vmatprep.subr.mxu0 0.0
      %598 = vmatpush1.msra.mxu0 0.0
      %599 = vmatprep.subr.mxu0 0.0
      %600 = vmatpush1.msra.mxu0 0.0
      %601 = vmatprep.subr.mxu0 0.0
      %602 = vmatpush1.msra.mxu0 0.0
      %603 = vmatprep.subr.mxu0 0.0
      %604 = vmatpush1.msra.mxu0 0.0
      %605 = vmatprep.subr.mxu0 0.0
      %606 = vmatpush1.msra.mxu0 0.0
      %607 = vmatprep.subr.mxu0 0.0
      %608 = vmatpush1.msra.mxu0 0.0
      %609 = vmatprep.mubr.f32.mxu0 0.0
      %610 = vmatmul.mubr.f32.gmra.mrb[0].mxu0 %v498
      %v611 = vpop.f32.mrb[0].mxu0
      %v612 = vadd.f32 %v494, %v611
      %v613 = vpop.f32.mrb[0].mxu0
      %614 = vmatprep.mubr.f32.mxu0 0.0
      %615 = vmatmul.mubr.f32.gmra.mrb[0].mxu0 %v501
      %v616 = vpop.f32.mrb[0].mxu0
      %v617 = vadd.f32 %v494, %v616
      %v618 = vpop.f32.mrb[0].mxu0
      %619 = vmatprep.mubr.f32.mxu0 0.0
      %620 = vmatmul.mubr.f32.gmra.mrb[0].mxu0 %v504
      %v621 = vpop.f32.mrb[0].mxu0
      %v622 = vadd.f32 %v494, %v621
      %v623 = vpop.f32.mrb[0].mxu0
      %624 = vmatprep.mubr.f32.mxu0 0.0
      %625 = vmatmul.mubr.f32.gmra.mrb[0].mxu0 %v507
      %v626 = vpop.f32.mrb[0].mxu0
      %v627 = vadd.f32 %v494, %v626
      %v628 = vpop.f32.mrb[0].mxu0
      %629 = vmatprep.mubr.f32.mxu0 0.0
      %630 = vmatmul.mubr.f32.gmra.mrb[0].mxu0 %v510
      %v631 = vpop.f32.mrb[0].mxu0
      %v632 = vadd.f32 %v494, %v631
      %v633 = vpop.f32.mrb[0].mxu0
      %634 = vmatprep.mubr.f32.mxu0 0.0
      %635 = vmatmul.mubr.f32.gmra.mrb[0].mxu0 %v513
      %v636 = vpop.f32.mrb[0].mxu0
      %v637 = vadd.f32 %v494, %v636
      %v638 = vpop.f32.mrb[0].mxu0
      %639 = vmatprep.mubr.f32.mxu0 0.0
      %640 = vmatmul.mubr.f32.gmra.mrb[0].mxu0 %v516
      %v641 = vpop.f32.mrb[0].mxu0
      %v642 = vadd.f32 %v494, %v641
      %v643 = vpop.f32.mrb[0].mxu0
      %644 = vmatprep.mubr.f32.mxu0 0.0
      %645 = vmatmul.mubr.f32.gmra.mrb[0].mxu0 %v519
      %v646 = vpop.f32.mrb[0].mxu0
      %v647 = vadd.f32 %v494, %v646
      %v648 = vpop.f32.mrb[0].mxu0
      %649 = vmatprep.mubr.f32.mxu0 0.0
      %650 = vmatmul.mubr.f32.gmra.mrb[0].mxu0 %v522
      %v651 = vpop.f32.mrb[0].mxu0
      %v652 = vadd.f32 %v494, %v651
      %v653 = vpop.f32.mrb[0].mxu0
      %654 = vmatprep.mubr.f32.mxu0 0.0
      %655 = vmatmul.mubr.f32.gmra.mrb[0].mxu0 %v525
      %v656 = vpop.f32.mrb[0].mxu0
      %v657 = vadd.f32 %v494, %v656
      %v658 = vpop.f32.mrb[0].mxu0
      %659 = vmatprep.mubr.f32.mxu0 0.0
      %660 = vmatmul.mubr.f32.gmra.mrb[0].mxu0 %v528
      %v661 = vpop.f32.mrb[0].mxu0
      %v662 = vadd.f32 %v494, %v661
      %v663 = vpop.f32.mrb[0].mxu0
      %664 = vmatprep.mubr.f32.mxu0 0.0
      %665 = vmatmul.mubr.f32.gmra.mrb[0].mxu0 %v531
      %v666 = vpop.f32.mrb[0].mxu0
      %v667 = vadd.f32 %v494, %v666
      %v668 = vpop.f32.mrb[0].mxu0
      %669 = vmatprep.mubr.f32.mxu0 0.0
      %670 = vmatmul.mubr.f32.gmra.mrb[0].mxu0 %v534
      %v671 = vpop.f32.mrb[0].mxu0
      %v672 = vadd.f32 %v494, %v671
      %v673 = vpop.f32.mrb[0].mxu0
      %674 = vmatprep.mubr.f32.mxu0 0.0
      %675 = vmatmul.mubr.f32.gmra.mrb[0].mxu0 %v537
      %v676 = vpop.f32.mrb[0].mxu0
      %v677 = vadd.f32 %v494, %v676
      %v678 = vpop.f32.mrb[0].mxu0
      %679 = vmatprep.mubr.f32.mxu0 0.0
      %680 = vmatmul.mubr.f32.gmra.mrb[0].mxu0 %v540
      %v681 = vpop.f32.mrb[0].mxu0
      %v682 = vadd.f32 %v494, %v681
      %v683 = vpop.f32.mrb[0].mxu0
      %684 = vmatprep.mubr.f32.mxu0 0.0
      %685 = vmatmul.mubr.f32.gmra.mrb[0].mxu0 %v543
      %v686 = vpop.f32.mrb[0].mxu0
      %v687 = vadd.f32 %v494, %v686
      %v688 = vpop.f32.mrb[0].mxu0
      %689 = vdwg.mxu0
      %v690 = vld [vmem:[%s3] sm:$0x1]
      %v691 = vld [vmem:[%s4] sm:$0x1]
      %vm692 = vcmask 261120
      %v693 = vsel %vm692, %v612, 0.0
      %694 = vadd.xlane.f32.xlu0 %v693
      %v695 = vpop.xlane.xlu0 %694
      %v696 = vsel %vm692, %v617, 0.0
      %697 = vadd.xlane.f32.xlu0 %v696
      %v698 = vpop.xlane.xlu0 %697
      %v699 = vsel %vm692, %v622, 0.0
      %700 = vadd.xlane.f32.xlu0 %v699
      %v701 = vpop.xlane.xlu0 %700
      %v702 = vsel %vm692, %v627, 0.0
      %703 = vadd.xlane.f32.xlu0 %v702
      %v704 = vpop.xlane.xlu0 %703
      %v705 = vsel %vm692, %v632, 0.0
      %706 = vadd.xlane.f32.xlu0 %v705
      %v707 = vpop.xlane.xlu0 %706
      %v708 = vsel %vm692, %v637, 0.0
      %709 = vadd.xlane.f32.xlu0 %v708
      %v710 = vpop.xlane.xlu0 %709
      %v711 = vsel %vm692, %v642, 0.0
      %712 = vadd.xlane.f32.xlu0 %v711
      %v713 = vpop.xlane.xlu0 %712
      %v714 = vsel %vm692, %v647, 0.0
      %715 = vadd.xlane.f32.xlu0 %v714
      %v716 = vpop.xlane.xlu0 %715
      %v717 = vsel %vm692, %v652, 0.0
      %718 = vadd.xlane.f32.xlu0 %v717
      %v719 = vpop.xlane.xlu0 %718
      %v720 = vsel %vm692, %v657, 0.0
      %721 = vadd.xlane.f32.xlu0 %v720
      %v722 = vpop.xlane.xlu0 %721
      %v723 = vsel %vm692, %v662, 0.0
      %724 = vadd.xlane.f32.xlu0 %v723
      %v725 = vpop.xlane.xlu0 %724
      %v726 = vsel %vm692, %v667, 0.0
      %727 = vadd.xlane.f32.xlu0 %v726
      %v728 = vpop.xlane.xlu0 %727
      %v729 = vsel %vm692, %v672, 0.0
      %730 = vadd.xlane.f32.xlu0 %v729
      %v731 = vpop.xlane.xlu0 %730
      %v732 = vsel %vm692, %v677, 0.0
      %733 = vadd.xlane.f32.xlu0 %v732
      %v734 = vpop.xlane.xlu0 %733
      %v735 = vsel %vm692, %v682, 0.0
      %736 = vadd.xlane.f32.xlu0 %v735
      %v737 = vpop.xlane.xlu0 %736
      %v738 = vsel %vm692, %v687, 0.0
      %739 = vadd.xlane.f32.xlu0 %v738
      %v740 = vpop.xlane.xlu0 %739
      %v741 = vrcp.pop 32.0
      %v742 = vmul.f32 %v695, %v741
      %v743 = vmul.f32 %v698, %v741
      %v744 = vmul.f32 %v701, %v741
      %v745 = vmul.f32 %v704, %v741
      %v746 = vmul.f32 %v707, %v741
      %v747 = vmul.f32 %v710, %v741
      %v748 = vmul.f32 %v713, %v741
      %v749 = vmul.f32 %v716, %v741
      %v750 = vmul.f32 %v719, %v741
      %v751 = vmul.f32 %v722, %v741
      %v752 = vmul.f32 %v725, %v741
      %v753 = vmul.f32 %v728, %v741
      %v754 = vmul.f32 %v731, %v741
      %v755 = vmul.f32 %v734, %v741
      %v756 = vmul.f32 %v737, %v741
      %v757 = vmul.f32 %v740, %v741
      %v758 = vsub.f32 %v612, %v742
      %v759 = vsub.f32 %v617, %v743
      %v760 = vsub.f32 %v622, %v744
      %v761 = vsub.f32 %v627, %v745
      %v762 = vsub.f32 %v632, %v746
      %v763 = vsub.f32 %v637, %v747
      %v764 = vsub.f32 %v642, %v748
      %v765 = vsub.f32 %v647, %v749
      %v766 = vsub.f32 %v652, %v750
      %v767 = vsub.f32 %v657, %v751
      %v768 = vsub.f32 %v662, %v752
      %v769 = vsub.f32 %v667, %v753
      %v770 = vsub.f32 %v672, %v754
      %v771 = vsub.f32 %v677, %v755
      %v772 = vsub.f32 %v682, %v756
      %v773 = vsub.f32 %v687, %v757
      %v774 = vmul.f32 %v758, %v758
      %v775 = vmul.f32 %v759, %v759
      %v776 = vmul.f32 %v760, %v760
      %v777 = vmul.f32 %v761, %v761
      %v778 = vmul.f32 %v762, %v762
      %v779 = vmul.f32 %v763, %v763
      %v780 = vmul.f32 %v764, %v764
      %v781 = vmul.f32 %v765, %v765
      %v782 = vmul.f32 %v766, %v766
      %v783 = vmul.f32 %v767, %v767
      %v784 = vmul.f32 %v768, %v768
      %v785 = vmul.f32 %v769, %v769
      %v786 = vmul.f32 %v770, %v770
      %v787 = vmul.f32 %v771, %v771
      %v788 = vmul.f32 %v772, %v772
      %v789 = vmul.f32 %v773, %v773
      %v790 = vsel %vm692, %v774, 0.0
      %791 = vadd.xlane.f32.xlu0 %v790
      %v792 = vpop.xlane.xlu0 %791
      %v793 = vsel %vm692, %v775, 0.0
      %794 = vadd.xlane.f32.xlu0 %v793
      %v795 = vpop.xlane.xlu0 %794
      %v796 = vsel %vm692, %v776, 0.0
      %797 = vadd.xlane.f32.xlu0 %v796
      %v798 = vpop.xlane.xlu0 %797
      %v799 = vsel %vm692, %v777, 0.0
      %800 = vadd.xlane.f32.xlu0 %v799
      %v801 = vpop.xlane.xlu0 %800
      %v802 = vsel %vm692, %v778, 0.0
      %803 = vadd.xlane.f32.xlu0 %v802
      %v804 = vpop.xlane.xlu0 %803
      %v805 = vsel %vm692, %v779, 0.0
      %806 = vadd.xlane.f32.xlu0 %v805
      %v807 = vpop.xlane.xlu0 %806
      %v808 = vsel %vm692, %v780, 0.0
      %809 = vadd.xlane.f32.xlu0 %v808
      %v810 = vpop.xlane.xlu0 %809
      %v811 = vsel %vm692, %v781, 0.0
      %812 = vadd.xlane.f32.xlu0 %v811
      %v813 = vpop.xlane.xlu0 %812
      %v814 = vsel %vm692, %v782, 0.0
      %815 = vadd.xlane.f32.xlu0 %v814
      %v816 = vpop.xlane.xlu0 %815
      %v817 = vsel %vm692, %v783, 0.0
      %818 = vadd.xlane.f32.xlu0 %v817
      %v819 = vpop.xlane.xlu0 %818
      %v820 = vsel %vm692, %v784, 0.0
      %821 = vadd.xlane.f32.xlu0 %v820
      %v822 = vpop.xlane.xlu0 %821
      %v823 = vsel %vm692, %v785, 0.0
      %824 = vadd.xlane.f32.xlu0 %v823
      %v825 = vpop.xlane.xlu0 %824
      %v826 = vsel %vm692, %v786, 0.0
      %827 = vadd.xlane.f32.xlu0 %v826
      %v828 = vpop.xlane.xlu0 %827
      %v829 = vsel %vm692, %v787, 0.0
      %830 = vadd.xlane.f32.xlu0 %v829
      %v831 = vpop.xlane.xlu0 %830
      %v832 = vsel %vm692, %v788, 0.0
      %833 = vadd.xlane.f32.xlu0 %v832
      %v834 = vpop.xlane.xlu0 %833
      %v835 = vsel %vm692, %v789, 0.0
      %836 = vadd.xlane.f32.xlu0 %v835
      %v837 = vpop.xlane.xlu0 %836
      %v838 = vmul.f32 %v792, %v741
      %v839 = vmul.f32 %v795, %v741
      %v840 = vmul.f32 %v798, %v741
      %v841 = vmul.f32 %v801, %v741
      %v842 = vmul.f32 %v804, %v741
      %v843 = vmul.f32 %v807, %v741
      %v844 = vmul.f32 %v810, %v741
      %v845 = vmul.f32 %v813, %v741
      %v846 = vmul.f32 %v816, %v741
      %v847 = vmul.f32 %v819, %v741
      %v848 = vmul.f32 %v822, %v741
      %v849 = vmul.f32 %v825, %v741
      %v850 = vmul.f32 %v828, %v741
      %v851 = vmul.f32 %v831, %v741
      %v852 = vmul.f32 %v834, %v741
      %v853 = vmul.f32 %v837, %v741
      %v854 = vadd.f32 %v838, 1e-05
      %v855 = vadd.f32 %v839, 1e-05
      %v856 = vadd.f32 %v840, 1e-05
      %v857 = vadd.f32 %v841, 1e-05
      %v858 = vadd.f32 %v842, 1e-05
      %v859 = vadd.f32 %v843, 1e-05
      %v860 = vadd.f32 %v844, 1e-05
      %v861 = vadd.f32 %v845, 1e-05
      %v862 = vadd.f32 %v846, 1e-05
      %v863 = vadd.f32 %v847, 1e-05
      %v864 = vadd.f32 %v848, 1e-05
      %v865 = vadd.f32 %v849, 1e-05
      %v866 = vadd.f32 %v850, 1e-05
      %v867 = vadd.f32 %v851, 1e-05
      %v868 = vadd.f32 %v852, 1e-05
      %v869 = vadd.f32 %v853, 1e-05
      %v870 = vrsqrt.pop %v854
      %v871 = vrsqrt.pop %v855
      %v872 = vrsqrt.pop %v856
      %v873 = vrsqrt.pop %v857
      %v874 = vrsqrt.pop %v858
      %v875 = vrsqrt.pop %v859
      %v876 = vrsqrt.pop %v860
      %v877 = vrsqrt.pop %v861
      %v878 = vrsqrt.pop %v862
      %v879 = vrsqrt.pop %v863
      %v880 = vrsqrt.pop %v864
      %v881 = vrsqrt.pop %v865
      %v882 = vrsqrt.pop %v866
      %v883 = vrsqrt.pop %v867
      %v884 = vrsqrt.pop %v868
      %v885 = vrsqrt.pop %v869
      %v886 = vmul.f32 %v758, %v870
      %v887 = vmul.f32 %v759, %v871
      %v888 = vmul.f32 %v760, %v872
      %v889 = vmul.f32 %v761, %v873
      %v890 = vmul.f32 %v762, %v874
      %v891 = vmul.f32 %v763, %v875
      %v892 = vmul.f32 %v764, %v876
      %v893 = vmul.f32 %v765, %v877
      %v894 = vmul.f32 %v766, %v878
      %v895 = vmul.f32 %v767, %v879
      %v896 = vmul.f32 %v768, %v880
      %v897 = vmul.f32 %v769, %v881
      %v898 = vmul.f32 %v770, %v882
      %v899 = vmul.f32 %v771, %v883
      %v900 = vmul.f32 %v772, %v884
      %v901 = vmul.f32 %v773, %v885
      %v903 = vlaneseq
      %v904 = vshrl.u32 %v903, 7
      %v905 = vsub.s32 0, %v904
      %v906 = vrot.slane %v690, %v905
      %v908 = vmul.f32 %v886, %v906
      %v909 = vmul.f32 %v887, %v906
      %v910 = vmul.f32 %v888, %v906
      %v911 = vmul.f32 %v889, %v906
      %v912 = vmul.f32 %v890, %v906
      %v913 = vmul.f32 %v891, %v906
      %v914 = vmul.f32 %v892, %v906
      %v915 = vmul.f32 %v893, %v906
      %v916 = vmul.f32 %v894, %v906
      %v917 = vmul.f32 %v895, %v906
      %v918 = vmul.f32 %v896, %v906
      %v919 = vmul.f32 %v897, %v906
      %v920 = vmul.f32 %v898, %v906
      %v921 = vmul.f32 %v899, %v906
      %v922 = vmul.f32 %v900, %v906
      %v923 = vmul.f32 %v901, %v906
      %v925 = vlaneseq
      %v926 = vshrl.u32 %v925, 7
      %v927 = vsub.s32 0, %v926
      %v928 = vrot.slane %v691, %v927
      %v930 = vadd.f32 %v908, %v928
      %v931 = vadd.f32 %v909, %v928
      %v932 = vadd.f32 %v910, %v928
      %v933 = vadd.f32 %v911, %v928
      %v934 = vadd.f32 %v912, %v928
      %v935 = vadd.f32 %v913, %v928
      %v936 = vadd.f32 %v914, %v928
      %v937 = vadd.f32 %v915, %v928
      %v938 = vadd.f32 %v916, %v928
      %v939 = vadd.f32 %v917, %v928
      %v940 = vadd.f32 %v918, %v928
      %v941 = vadd.f32 %v919, %v928
      %v942 = vadd.f32 %v920, %v928
      %v943 = vadd.f32 %v921, %v928
      %v944 = vadd.f32 %v922, %v928
      %v945 = vadd.f32 %v923, %v928
      %v946 = vld [vmem:[%s5] sm:$0xff]
      %v947 = vadd.f32 %v930, %v946
      %v948 = vadd.f32 %v931, %v946
      %v949 = vadd.f32 %v932, %v946
      %v950 = vadd.f32 %v933, %v946
      %v951 = vadd.f32 %v934, %v946
      %v952 = vadd.f32 %v935, %v946
      %v953 = vadd.f32 %v936, %v946
      %v954 = vadd.f32 %v937, %v946
      %v955 = vadd.f32 %v938, %v946
      %v956 = vadd.f32 %v939, %v946
      %v957 = vadd.f32 %v940, %v946
      %v958 = vadd.f32 %v941, %v946
      %v959 = vadd.f32 %v942, %v946
      %v960 = vadd.f32 %v943, %v946
      %v961 = vadd.f32 %v944, %v946
      %v962 = vadd.f32 %v945, %v946
      %v963 = vld [vmem:[%s6] sm:$0xff]
      %v964 = vld [vmem:[%s6 + $0x8] sm:$0xff]
      %v965 = vld [vmem:[%s6 + $0x10] sm:$0xff]
      %v966 = vld [vmem:[%s6 + $0x18] sm:$0xff]
      %v967 = vld [vmem:[%s6 + $0x20] sm:$0xff]
      %v968 = vld [vmem:[%s6 + $0x28] sm:$0xff]
      %v969 = vld [vmem:[%s6 + $0x30] sm:$0xff]
      %v970 = vld [vmem:[%s6 + $0x38] sm:$0xff]
      %v971 = vld [vmem:[%s7] sm:$0x3]
      %v973 = vlaneseq
      %v974 = vshrl.u32 %v973, 7
      %v975 = vsub.s32 0, %v974
      %v976 = vrot.slane %v971, %v975
      %v977 = vlaneseq
      %v978 = vshrl.u32 %v977, 7
      %v979 = vsub.s32 1, %v978
      %v980 = vrot.slane %v971, %v979
      %v984 = vsel %vm692, %v947, 0
      %v987 = vsel %vm692, %v948, 0
      %v990 = vsel %vm692, %v949, 0
      %v993 = vsel %vm692, %v950, 0
      %v996 = vsel %vm692, %v951, 0
      %v999 = vsel %vm692, %v952, 0
      %v1002 = vsel %vm692, %v953, 0
      %v1005 = vsel %vm692, %v954, 0
      %v1008 = vsel %vm692, %v955, 0
      %v1011 = vsel %vm692, %v956, 0
      %v1014 = vsel %vm692, %v957, 0
      %v1017 = vsel %vm692, %v958, 0
      %v1020 = vsel %vm692, %v959, 0
      %v1023 = vsel %vm692, %v960, 0
      %v1026 = vsel %vm692, %v961, 0
      %v1029 = vsel %vm692, %v962, 0
      %1031 = vmatprep.subr.mxu0 %v964
      %1032 = vmatpush1.msra.mxu0 %v963
      %1033 = vmatprep.subr.mxu0 %v966
      %1034 = vmatpush1.msra.mxu0 %v965
      %1035 = vmatprep.subr.mxu0 %v968
      %1036 = vmatpush1.msra.mxu0 %v967
      %1037 = vmatprep.subr.mxu0 %v970
      %1038 = vmatpush1.msra.mxu0 %v969
      %1039 = vmatprep.subr.mxu0 0.0
      %1040 = vmatpush1.msra.mxu0 0.0
      %1041 = vmatprep.subr.mxu0 0.0
      %1042 = vmatpush1.msra.mxu0 0.0
      %1043 = vmatprep.subr.mxu0 0.0
      %1044 = vmatpush1.msra.mxu0 0.0
      %1045 = vmatprep.subr.mxu0 0.0
      %1046 = vmatpush1.msra.mxu0 0.0
      %1047 = vmatprep.subr.mxu0 0.0
      %1048 = vmatpush1.msra.mxu0 0.0
      %1049 = vmatprep.subr.mxu0 0.0
      %1050 = vmatpush1.msra.mxu0 0.0
      %1051 = vmatprep.subr.mxu0 0.0
      %1052 = vmatpush1.msra.mxu0 0.0
      %1053 = vmatprep.subr.mxu0 0.0
      %1054 = vmatpush1.msra.mxu0 0.0
      %1055 = vmatprep.subr.mxu0 0.0
      %1056 = vmatpush1.msra.mxu0 0.0
      %1057 = vmatprep.subr.mxu0 0.0
      %1058 = vmatpush1.msra.mxu0 0.0
      %1059 = vmatprep.subr.mxu0 0.0
      %1060 = vmatpush1.msra.mxu0 0.0
      %1061 = vmatprep.subr.mxu0 0.0
      %1062 = vmatpush1.msra.mxu0 0.0
      %1063 = vmatprep.subr.mxu0 0.0
      %1064 = vmatpush1.msra.mxu0 0.0
      %1065 = vmatprep.subr.mxu0 0.0
      %1066 = vmatpush1.msra.mxu0 0.0
      %1067 = vmatprep.subr.mxu0 0.0
      %1068 = vmatpush1.msra.mxu0 0.0
      %1069 = vmatprep.subr.mxu0 0.0
      %1070 = vmatpush1.msra.mxu0 0.0
      %1071 = vmatprep.subr.mxu0 0.0
      %1072 = vmatpush1.msra.mxu0 0.0
      %1073 = vmatprep.subr.mxu0 0.0
      %1074 = vmatpush1.msra.mxu0 0.0
      %1075 = vmatprep.subr.mxu0 0.0
      %1076 = vmatpush1.msra.mxu0 0.0
      %1077 = vmatprep.subr.mxu0 0.0
      %1078 = vmatpush1.msra.mxu0 0.0
      %1079 = vmatprep.subr.mxu0 0.0
      %1080 = vmatpush1.msra.mxu0 0.0
      %1081 = vmatprep.subr.mxu0 0.0
      %1082 = vmatpush1.msra.mxu0 0.0
      %1083 = vmatprep.subr.mxu0 0.0
      %1084 = vmatpush1.msra.mxu0 0.0
      %1085 = vmatprep.subr.mxu0 0.0
      %1086 = vmatpush1.msra.mxu0 0.0
      %1087 = vmatprep.subr.mxu0 0.0
      %1088 = vmatpush1.msra.mxu0 0.0
      %1089 = vmatprep.subr.mxu0 0.0
      %1090 = vmatpush1.msra.mxu0 0.0
      %1091 = vmatprep.subr.mxu0 0.0
      %1092 = vmatpush1.msra.mxu0 0.0
      %1093 = vmatprep.subr.mxu0 0.0
      %1094 = vmatpush1.msra.mxu0 0.0
      %1095 = vmatprep.mubr.f32.mxu0 0.0
      %1096 = vmatmul.mubr.f32.gmra.mrb[0].mxu0 %v984
      %v1097 = vpop.f32.mrb[0].mxu0
      %v1098 = vadd.f32 %v976, %v1097
      %v1099 = vpop.f32.mrb[0].mxu0
      %v1100 = vadd.f32 %v980, %v1099
      %1101 = vmatprep.mubr.f32.mxu0 0.0
      %1102 = vmatmul.mubr.f32.gmra.mrb[0].mxu0 %v987
      %v1103 = vpop.f32.mrb[0].mxu0
      %v1104 = vadd.f32 %v976, %v1103
      %v1105 = vpop.f32.mrb[0].mxu0
      %v1106 = vadd.f32 %v980, %v1105
      %1107 = vmatprep.mubr.f32.mxu0 0.0
      %1108 = vmatmul.mubr.f32.gmra.mrb[0].mxu0 %v990
      %v1109 = vpop.f32.mrb[0].mxu0
      %v1110 = vadd.f32 %v976, %v1109
      %v1111 = vpop.f32.mrb[0].mxu0
      %v1112 = vadd.f32 %v980, %v1111
      %1113 = vmatprep.mubr.f32.mxu0 0.0
      %1114 = vmatmul.mubr.f32.gmra.mrb[0].mxu0 %v993
      %v1115 = vpop.f32.mrb[0].mxu0
      %v1116 = vadd.f32 %v976, %v1115
      %v1117 = vpop.f32.mrb[0].mxu0
      %v1118 = vadd.f32 %v980, %v1117
      %1119 = vmatprep.mubr.f32.mxu0 0.0
      %1120 = vmatmul.mubr.f32.gmra.mrb[0].mxu0 %v996
      %v1121 = vpop.f32.mrb[0].mxu0
      %v1122 = vadd.f32 %v976, %v1121
      %v1123 = vpop.f32.mrb[0].mxu0
      %v1124 = vadd.f32 %v980, %v1123
      %1125 = vmatprep.mubr.f32.mxu0 0.0
      %1126 = vmatmul.mubr.f32.gmra.mrb[0].mxu0 %v999
      %v1127 = vpop.f32.mrb[0].mxu0
      %v1128 = vadd.f32 %v976, %v1127
      %v1129 = vpop.f32.mrb[0].mxu0
      %v1130 = vadd.f32 %v980, %v1129
      %1131 = vmatprep.mubr.f32.mxu0 0.0
      %1132 = vmatmul.mubr.f32.gmra.mrb[0].mxu0 %v1002
      %v1133 = vpop.f32.mrb[0].mxu0
      %v1134 = vadd.f32 %v976, %v1133
      %v1135 = vpop.f32.mrb[0].mxu0
      %v1136 = vadd.f32 %v980, %v1135
      %1137 = vmatprep.mubr.f32.mxu0 0.0
      %1138 = vmatmul.mubr.f32.gmra.mrb[0].mxu0 %v1005
      %v1139 = vpop.f32.mrb[0].mxu0
      %v1140 = vadd.f32 %v976, %v1139
      %v1141 = vpop.f32.mrb[0].mxu0
      %v1142 = vadd.f32 %v980, %v1141
      %1143 = vmatprep.mubr.f32.mxu0 0.0
      %1144 = vmatmul.mubr.f32.gmra.mrb[0].mxu0 %v1008
      %v1145 = vpop.f32.mrb[0].mxu0
      %v1146 = vadd.f32 %v976, %v1145
      %v1147 = vpop.f32.mrb[0].mxu0
      %v1148 = vadd.f32 %v980, %v1147
      %1149 = vmatprep.mubr.f32.mxu0 0.0
      %1150 = vmatmul.mubr.f32.gmra.mrb[0].mxu0 %v1011
      %v1151 = vpop.f32.mrb[0].mxu0
      %v1152 = vadd.f32 %v976, %v1151
      %v1153 = vpop.f32.mrb[0].mxu0
      %v1154 = vadd.f32 %v980, %v1153
      %1155 = vmatprep.mubr.f32.mxu0 0.0
      %1156 = vmatmul.mubr.f32.gmra.mrb[0].mxu0 %v1014
      %v1157 = vpop.f32.mrb[0].mxu0
      %v1158 = vadd.f32 %v976, %v1157
      %v1159 = vpop.f32.mrb[0].mxu0
      %v1160 = vadd.f32 %v980, %v1159
      %1161 = vmatprep.mubr.f32.mxu0 0.0
      %1162 = vmatmul.mubr.f32.gmra.mrb[0].mxu0 %v1017
      %v1163 = vpop.f32.mrb[0].mxu0
      %v1164 = vadd.f32 %v976, %v1163
      %v1165 = vpop.f32.mrb[0].mxu0
      %v1166 = vadd.f32 %v980, %v1165
      %1167 = vmatprep.mubr.f32.mxu0 0.0
      %1168 = vmatmul.mubr.f32.gmra.mrb[0].mxu0 %v1020
      %v1169 = vpop.f32.mrb[0].mxu0
      %v1170 = vadd.f32 %v976, %v1169
      %v1171 = vpop.f32.mrb[0].mxu0
      %v1172 = vadd.f32 %v980, %v1171
      %1173 = vmatprep.mubr.f32.mxu0 0.0
      %1174 = vmatmul.mubr.f32.gmra.mrb[0].mxu0 %v1023
      %v1175 = vpop.f32.mrb[0].mxu0
      %v1176 = vadd.f32 %v976, %v1175
      %v1177 = vpop.f32.mrb[0].mxu0
      %v1178 = vadd.f32 %v980, %v1177
      %1179 = vmatprep.mubr.f32.mxu0 0.0
      %1180 = vmatmul.mubr.f32.gmra.mrb[0].mxu0 %v1026
      %v1181 = vpop.f32.mrb[0].mxu0
      %v1182 = vadd.f32 %v976, %v1181
      %v1183 = vpop.f32.mrb[0].mxu0
      %v1184 = vadd.f32 %v980, %v1183
      %1185 = vmatprep.mubr.f32.mxu0 0.0
      %1186 = vmatmul.mubr.f32.gmra.mrb[0].mxu0 %v1029
      %v1187 = vpop.f32.mrb[0].mxu0
      %v1188 = vadd.f32 %v976, %v1187
      %v1189 = vpop.f32.mrb[0].mxu0
      %v1190 = vadd.f32 %v980, %v1189
      %1191 = vdwg.mxu0
      %v1192 = vmul.f32 %v1098, %v1098
      %v1193 = vmul.f32 %v1104, %v1104
      %v1194 = vmul.f32 %v1110, %v1110
      %v1195 = vmul.f32 %v1116, %v1116
      %v1196 = vmul.f32 %v1122, %v1122
      %v1197 = vmul.f32 %v1128, %v1128
      %v1198 = vmul.f32 %v1134, %v1134
      %v1199 = vmul.f32 %v1140, %v1140
      %v1200 = vmul.f32 %v1146, %v1146
      %v1201 = vmul.f32 %v1152, %v1152
      %v1202 = vmul.f32 %v1158, %v1158
      %v1203 = vmul.f32 %v1164, %v1164
      %v1204 = vmul.f32 %v1170, %v1170
      %v1205 = vmul.f32 %v1176, %v1176
      %v1206 = vmul.f32 %v1182, %v1182
      %v1207 = vmul.f32 %v1188, %v1188
      %vm1208 = vcmask 523264
      %v1209 = vsel %vm1208, %v1192, 0.0
      %1210 = vadd.xlane.f32.xlu0 %v1209
      %v1211 = vpop.xlane.xlu0 %1210
      %v1212 = vsel %vm1208, %v1193, 0.0
      %1213 = vadd.xlane.f32.xlu0 %v1212
      %v1214 = vpop.xlane.xlu0 %1213
      %v1215 = vsel %vm1208, %v1194, 0.0
      %1216 = vadd.xlane.f32.xlu0 %v1215
      %v1217 = vpop.xlane.xlu0 %1216
      %v1218 = vsel %vm1208, %v1195, 0.0
      %1219 = vadd.xlane.f32.xlu0 %v1218
      %v1220 = vpop.xlane.xlu0 %1219
      %v1221 = vsel %vm1208, %v1196, 0.0
      %1222 = vadd.xlane.f32.xlu0 %v1221
      %v1223 = vpop.xlane.xlu0 %1222
      %v1224 = vsel %vm1208, %v1197, 0.0
      %1225 = vadd.xlane.f32.xlu0 %v1224
      %v1226 = vpop.xlane.xlu0 %1225
      %v1227 = vsel %vm1208, %v1198, 0.0
      %1228 = vadd.xlane.f32.xlu0 %v1227
      %v1229 = vpop.xlane.xlu0 %1228
      %v1230 = vsel %vm1208, %v1199, 0.0
      %1231 = vadd.xlane.f32.xlu0 %v1230
      %v1232 = vpop.xlane.xlu0 %1231
      %v1233 = vsel %vm1208, %v1200, 0.0
      %1234 = vadd.xlane.f32.xlu0 %v1233
      %v1235 = vpop.xlane.xlu0 %1234
      %v1236 = vsel %vm1208, %v1201, 0.0
      %1237 = vadd.xlane.f32.xlu0 %v1236
      %v1238 = vpop.xlane.xlu0 %1237
      %v1239 = vsel %vm1208, %v1202, 0.0
      %1240 = vadd.xlane.f32.xlu0 %v1239
      %v1241 = vpop.xlane.xlu0 %1240
      %v1242 = vsel %vm1208, %v1203, 0.0
      %1243 = vadd.xlane.f32.xlu0 %v1242
      %v1244 = vpop.xlane.xlu0 %1243
      %v1245 = vsel %vm1208, %v1204, 0.0
      %1246 = vadd.xlane.f32.xlu0 %v1245
      %v1247 = vpop.xlane.xlu0 %1246
      %v1248 = vsel %vm1208, %v1205, 0.0
      %1249 = vadd.xlane.f32.xlu0 %v1248
      %v1250 = vpop.xlane.xlu0 %1249
      %v1251 = vsel %vm1208, %v1206, 0.0
      %1252 = vadd.xlane.f32.xlu0 %v1251
      %v1253 = vpop.xlane.xlu0 %1252
      %v1254 = vsel %vm1208, %v1207, 0.0
      %1255 = vadd.xlane.f32.xlu0 %v1254
      %v1256 = vpop.xlane.xlu0 %1255
      %v1257 = vmax.f32 %v1211, 1e-24
      %v1258 = vmax.f32 %v1214, 1e-24
      %v1259 = vmax.f32 %v1217, 1e-24
      %v1260 = vmax.f32 %v1220, 1e-24
      %v1261 = vmax.f32 %v1223, 1e-24
      %v1262 = vmax.f32 %v1226, 1e-24
      %v1263 = vmax.f32 %v1229, 1e-24
      %v1264 = vmax.f32 %v1232, 1e-24
      %v1265 = vmax.f32 %v1235, 1e-24
      %v1266 = vmax.f32 %v1238, 1e-24
      %v1267 = vmax.f32 %v1241, 1e-24
      %v1268 = vmax.f32 %v1244, 1e-24
      %v1269 = vmax.f32 %v1247, 1e-24
      %v1270 = vmax.f32 %v1250, 1e-24
      %v1271 = vmax.f32 %v1253, 1e-24
      %v1272 = vmax.f32 %v1256, 1e-24
      %v1273 = vrsqrt.pop %v1257
      %v1274 = vrsqrt.pop %v1258
      %v1275 = vrsqrt.pop %v1259
      %v1276 = vrsqrt.pop %v1260
      %v1277 = vrsqrt.pop %v1261
      %v1278 = vrsqrt.pop %v1262
      %v1279 = vrsqrt.pop %v1263
      %v1280 = vrsqrt.pop %v1264
      %v1281 = vrsqrt.pop %v1265
      %v1282 = vrsqrt.pop %v1266
      %v1283 = vrsqrt.pop %v1267
      %v1284 = vrsqrt.pop %v1268
      %v1285 = vrsqrt.pop %v1269
      %v1286 = vrsqrt.pop %v1270
      %v1287 = vrsqrt.pop %v1271
      %v1288 = vrsqrt.pop %v1272
      %v1289 = vmul.f32 %v1098, %v1273
      %v1290 = vmul.f32 %v1104, %v1274
      %v1291 = vmul.f32 %v1110, %v1275
      %v1292 = vmul.f32 %v1116, %v1276
      %v1293 = vmul.f32 %v1122, %v1277
      %v1294 = vmul.f32 %v1128, %v1278
      %v1295 = vmul.f32 %v1134, %v1279
      %v1296 = vmul.f32 %v1140, %v1280
      %v1297 = vmul.f32 %v1146, %v1281
      %v1298 = vmul.f32 %v1152, %v1282
      %v1299 = vmul.f32 %v1158, %v1283
      %v1300 = vmul.f32 %v1164, %v1284
      %v1301 = vmul.f32 %v1170, %v1285
      %v1302 = vmul.f32 %v1176, %v1286
      %v1303 = vmul.f32 %v1182, %v1287
      %v1304 = vmul.f32 %v1188, %v1288
      %1321 = vrot.lane.b32.xlu0 %v1192, 64
      %v1322 = vpop.permute.xlu0 %1321
      %1323 = vrot.lane.b32.xlu0 %v1193, 64
      %v1324 = vpop.permute.xlu0 %1323
      %1325 = vrot.lane.b32.xlu0 %v1194, 64
      %v1326 = vpop.permute.xlu0 %1325
      %1327 = vrot.lane.b32.xlu0 %v1195, 64
      %v1328 = vpop.permute.xlu0 %1327
      %1329 = vrot.lane.b32.xlu0 %v1196, 64
      %v1330 = vpop.permute.xlu0 %1329
      %1331 = vrot.lane.b32.xlu0 %v1197, 64
      %v1332 = vpop.permute.xlu0 %1331
      %1333 = vrot.lane.b32.xlu0 %v1198, 64
      %v1334 = vpop.permute.xlu0 %1333
      %1335 = vrot.lane.b32.xlu0 %v1199, 64
      %v1336 = vpop.permute.xlu0 %1335
      %1337 = vrot.lane.b32.xlu0 %v1200, 64
      %v1338 = vpop.permute.xlu0 %1337
      %1339 = vrot.lane.b32.xlu0 %v1201, 64
      %v1340 = vpop.permute.xlu0 %1339
      %1341 = vrot.lane.b32.xlu0 %v1202, 64
      %v1342 = vpop.permute.xlu0 %1341
      %1343 = vrot.lane.b32.xlu0 %v1203, 64
      %v1344 = vpop.permute.xlu0 %1343
      %1345 = vrot.lane.b32.xlu0 %v1204, 64
      %v1346 = vpop.permute.xlu0 %1345
      %1347 = vrot.lane.b32.xlu0 %v1205, 64
      %v1348 = vpop.permute.xlu0 %1347
      %1349 = vrot.lane.b32.xlu0 %v1206, 64
      %v1350 = vpop.permute.xlu0 %1349
      %1351 = vrot.lane.b32.xlu0 %v1207, 64
      %v1352 = vpop.permute.xlu0 %1351
      %v1369 = vsel %vm1208, %v1322, 0.0
      %1370 = vadd.xlane.f32.xlu0 %v1369
      %v1371 = vpop.xlane.xlu0 %1370
      %v1372 = vsel %vm1208, %v1324, 0.0
      %1373 = vadd.xlane.f32.xlu0 %v1372
      %v1374 = vpop.xlane.xlu0 %1373
      %v1375 = vsel %vm1208, %v1326, 0.0
      %1376 = vadd.xlane.f32.xlu0 %v1375
      %v1377 = vpop.xlane.xlu0 %1376
      %v1378 = vsel %vm1208, %v1328, 0.0
      %1379 = vadd.xlane.f32.xlu0 %v1378
      %v1380 = vpop.xlane.xlu0 %1379
      %v1381 = vsel %vm1208, %v1330, 0.0
      %1382 = vadd.xlane.f32.xlu0 %v1381
      %v1383 = vpop.xlane.xlu0 %1382
      %v1384 = vsel %vm1208, %v1332, 0.0
      %1385 = vadd.xlane.f32.xlu0 %v1384
      %v1386 = vpop.xlane.xlu0 %1385
      %v1387 = vsel %vm1208, %v1334, 0.0
      %1388 = vadd.xlane.f32.xlu0 %v1387
      %v1389 = vpop.xlane.xlu0 %1388
      %v1390 = vsel %vm1208, %v1336, 0.0
      %1391 = vadd.xlane.f32.xlu0 %v1390
      %v1392 = vpop.xlane.xlu0 %1391
      %v1393 = vsel %vm1208, %v1338, 0.0
      %1394 = vadd.xlane.f32.xlu0 %v1393
      %v1395 = vpop.xlane.xlu0 %1394
      %v1396 = vsel %vm1208, %v1340, 0.0
      %1397 = vadd.xlane.f32.xlu0 %v1396
      %v1398 = vpop.xlane.xlu0 %1397
      %v1399 = vsel %vm1208, %v1342, 0.0
      %1400 = vadd.xlane.f32.xlu0 %v1399
      %v1401 = vpop.xlane.xlu0 %1400
      %v1402 = vsel %vm1208, %v1344, 0.0
      %1403 = vadd.xlane.f32.xlu0 %v1402
      %v1404 = vpop.xlane.xlu0 %1403
      %v1405 = vsel %vm1208, %v1346, 0.0
      %1406 = vadd.xlane.f32.xlu0 %v1405
      %v1407 = vpop.xlane.xlu0 %1406
      %v1408 = vsel %vm1208, %v1348, 0.0
      %1409 = vadd.xlane.f32.xlu0 %v1408
      %v1410 = vpop.xlane.xlu0 %1409
      %v1411 = vsel %vm1208, %v1350, 0.0
      %1412 = vadd.xlane.f32.xlu0 %v1411
      %v1413 = vpop.xlane.xlu0 %1412
      %v1414 = vsel %vm1208, %v1352, 0.0
      %1415 = vadd.xlane.f32.xlu0 %v1414
      %v1416 = vpop.xlane.xlu0 %1415
      %v1417 = vmax.f32 %v1371, 1e-24
      %v1418 = vmax.f32 %v1374, 1e-24
      %v1419 = vmax.f32 %v1377, 1e-24
      %v1420 = vmax.f32 %v1380, 1e-24
      %v1421 = vmax.f32 %v1383, 1e-24
      %v1422 = vmax.f32 %v1386, 1e-24
      %v1423 = vmax.f32 %v1389, 1e-24
      %v1424 = vmax.f32 %v1392, 1e-24
      %v1425 = vmax.f32 %v1395, 1e-24
      %v1426 = vmax.f32 %v1398, 1e-24
      %v1427 = vmax.f32 %v1401, 1e-24
      %v1428 = vmax.f32 %v1404, 1e-24
      %v1429 = vmax.f32 %v1407, 1e-24
      %v1430 = vmax.f32 %v1410, 1e-24
      %v1431 = vmax.f32 %v1413, 1e-24
      %v1432 = vmax.f32 %v1416, 1e-24
      %v1433 = vrsqrt.pop %v1417
      %v1434 = vrsqrt.pop %v1418
      %v1435 = vrsqrt.pop %v1419
      %v1436 = vrsqrt.pop %v1420
      %v1437 = vrsqrt.pop %v1421
      %v1438 = vrsqrt.pop %v1422
      %v1439 = vrsqrt.pop %v1423
      %v1440 = vrsqrt.pop %v1424
      %v1441 = vrsqrt.pop %v1425
      %v1442 = vrsqrt.pop %v1426
      %v1443 = vrsqrt.pop %v1427
      %v1444 = vrsqrt.pop %v1428
      %v1445 = vrsqrt.pop %v1429
      %v1446 = vrsqrt.pop %v1430
      %v1447 = vrsqrt.pop %v1431
      %v1448 = vrsqrt.pop %v1432
      %v1449 = vmul.f32 %v1098, %v1433
      %v1450 = vmul.f32 %v1104, %v1434
      %v1451 = vmul.f32 %v1110, %v1435
      %v1452 = vmul.f32 %v1116, %v1436
      %v1453 = vmul.f32 %v1122, %v1437
      %v1454 = vmul.f32 %v1128, %v1438
      %v1455 = vmul.f32 %v1134, %v1439
      %v1456 = vmul.f32 %v1140, %v1440
      %v1457 = vmul.f32 %v1146, %v1441
      %v1458 = vmul.f32 %v1152, %v1442
      %v1459 = vmul.f32 %v1158, %v1443
      %v1460 = vmul.f32 %v1164, %v1444
      %v1461 = vmul.f32 %v1170, %v1445
      %v1462 = vmul.f32 %v1176, %v1446
      %v1463 = vmul.f32 %v1182, %v1447
      %v1464 = vmul.f32 %v1188, %v1448
      %v1465 = vmul.f32 %v1100, %v1100
      %v1466 = vmul.f32 %v1106, %v1106
      %v1467 = vmul.f32 %v1112, %v1112
      %v1468 = vmul.f32 %v1118, %v1118
      %v1469 = vmul.f32 %v1124, %v1124
      %v1470 = vmul.f32 %v1130, %v1130
      %v1471 = vmul.f32 %v1136, %v1136
      %v1472 = vmul.f32 %v1142, %v1142
      %v1473 = vmul.f32 %v1148, %v1148
      %v1474 = vmul.f32 %v1154, %v1154
      %v1475 = vmul.f32 %v1160, %v1160
      %v1476 = vmul.f32 %v1166, %v1166
      %v1477 = vmul.f32 %v1172, %v1172
      %v1478 = vmul.f32 %v1178, %v1178
      %v1479 = vmul.f32 %v1184, %v1184
      %v1480 = vmul.f32 %v1190, %v1190
      %v1481 = vsel %vm1208, %v1465, 0.0
      %1482 = vadd.xlane.f32.xlu0 %v1481
      %v1483 = vpop.xlane.xlu0 %1482
      %v1484 = vsel %vm1208, %v1466, 0.0
      %1485 = vadd.xlane.f32.xlu0 %v1484
      %v1486 = vpop.xlane.xlu0 %1485
      %v1487 = vsel %vm1208, %v1467, 0.0
      %1488 = vadd.xlane.f32.xlu0 %v1487
      %v1489 = vpop.xlane.xlu0 %1488
      %v1490 = vsel %vm1208, %v1468, 0.0
      %1491 = vadd.xlane.f32.xlu0 %v1490
      %v1492 = vpop.xlane.xlu0 %1491
      %v1493 = vsel %vm1208, %v1469, 0.0
      %1494 = vadd.xlane.f32.xlu0 %v1493
      %v1495 = vpop.xlane.xlu0 %1494
      %v1496 = vsel %vm1208, %v1470, 0.0
      %1497 = vadd.xlane.f32.xlu0 %v1496
      %v1498 = vpop.xlane.xlu0 %1497
      %v1499 = vsel %vm1208, %v1471, 0.0
      %1500 = vadd.xlane.f32.xlu0 %v1499
      %v1501 = vpop.xlane.xlu0 %1500
      %v1502 = vsel %vm1208, %v1472, 0.0
      %1503 = vadd.xlane.f32.xlu0 %v1502
      %v1504 = vpop.xlane.xlu0 %1503
      %v1505 = vsel %vm1208, %v1473, 0.0
      %1506 = vadd.xlane.f32.xlu0 %v1505
      %v1507 = vpop.xlane.xlu0 %1506
      %v1508 = vsel %vm1208, %v1474, 0.0
      %1509 = vadd.xlane.f32.xlu0 %v1508
      %v1510 = vpop.xlane.xlu0 %1509
      %v1511 = vsel %vm1208, %v1475, 0.0
      %1512 = vadd.xlane.f32.xlu0 %v1511
      %v1513 = vpop.xlane.xlu0 %1512
      %v1514 = vsel %vm1208, %v1476, 0.0
      %1515 = vadd.xlane.f32.xlu0 %v1514
      %v1516 = vpop.xlane.xlu0 %1515
      %v1517 = vsel %vm1208, %v1477, 0.0
      %1518 = vadd.xlane.f32.xlu0 %v1517
      %v1519 = vpop.xlane.xlu0 %1518
      %v1520 = vsel %vm1208, %v1478, 0.0
      %1521 = vadd.xlane.f32.xlu0 %v1520
      %v1522 = vpop.xlane.xlu0 %1521
      %v1523 = vsel %vm1208, %v1479, 0.0
      %1524 = vadd.xlane.f32.xlu0 %v1523
      %v1525 = vpop.xlane.xlu0 %1524
      %v1526 = vsel %vm1208, %v1480, 0.0
      %1527 = vadd.xlane.f32.xlu0 %v1526
      %v1528 = vpop.xlane.xlu0 %1527
      %v1529 = vmax.f32 %v1483, 1e-24
      %v1530 = vmax.f32 %v1486, 1e-24
      %v1531 = vmax.f32 %v1489, 1e-24
      %v1532 = vmax.f32 %v1492, 1e-24
      %v1533 = vmax.f32 %v1495, 1e-24
      %v1534 = vmax.f32 %v1498, 1e-24
      %v1535 = vmax.f32 %v1501, 1e-24
      %v1536 = vmax.f32 %v1504, 1e-24
      %v1537 = vmax.f32 %v1507, 1e-24
      %v1538 = vmax.f32 %v1510, 1e-24
      %v1539 = vmax.f32 %v1513, 1e-24
      %v1540 = vmax.f32 %v1516, 1e-24
      %v1541 = vmax.f32 %v1519, 1e-24
      %v1542 = vmax.f32 %v1522, 1e-24
      %v1543 = vmax.f32 %v1525, 1e-24
      %v1544 = vmax.f32 %v1528, 1e-24
      %v1545 = vrsqrt.pop %v1529
      %v1546 = vrsqrt.pop %v1530
      %v1547 = vrsqrt.pop %v1531
      %v1548 = vrsqrt.pop %v1532
      %v1549 = vrsqrt.pop %v1533
      %v1550 = vrsqrt.pop %v1534
      %v1551 = vrsqrt.pop %v1535
      %v1552 = vrsqrt.pop %v1536
      %v1553 = vrsqrt.pop %v1537
      %v1554 = vrsqrt.pop %v1538
      %v1555 = vrsqrt.pop %v1539
      %v1556 = vrsqrt.pop %v1540
      %v1557 = vrsqrt.pop %v1541
      %v1558 = vrsqrt.pop %v1542
      %v1559 = vrsqrt.pop %v1543
      %v1560 = vrsqrt.pop %v1544
      %v1561 = vmul.f32 %v1100, %v1545
      %v1562 = vmul.f32 %v1106, %v1546
      %v1563 = vmul.f32 %v1112, %v1547
      %v1564 = vmul.f32 %v1118, %v1548
      %v1565 = vmul.f32 %v1124, %v1549
      %v1566 = vmul.f32 %v1130, %v1550
      %v1567 = vmul.f32 %v1136, %v1551
      %v1568 = vmul.f32 %v1142, %v1552
      %v1569 = vmul.f32 %v1148, %v1553
      %v1570 = vmul.f32 %v1154, %v1554
      %v1571 = vmul.f32 %v1160, %v1555
      %v1572 = vmul.f32 %v1166, %v1556
      %v1573 = vmul.f32 %v1172, %v1557
      %v1574 = vmul.f32 %v1178, %v1558
      %v1575 = vmul.f32 %v1184, %v1559
      %v1576 = vmul.f32 %v1190, %v1560
      %1578 = vrot.lane.b32.xlu0 %v1449, 64
      %v1579 = vpop.permute.xlu0 %1578
      %v1581 = vsel %vm1208, %v1289, 0
      %v1583 = vsel %vm1208, %v1579, 0
      %1585 = vmatprep.subr.mxu0 0.0
      %1586 = vmatpush1.xpose.msra.mxu0 %v1583
      %1587 = vmatprep.subr.mxu0 0.0
      %1588 = vmatpush1.xpose.msra.mxu0 0.0
      %1589 = vmatprep.subr.mxu0 0.0
      %1590 = vmatpush1.xpose.msra.mxu0 0.0
      %1591 = vmatprep.subr.mxu0 0.0
      %1592 = vmatpush1.xpose.msra.mxu0 0.0
      %1593 = vmatprep.subr.mxu0 0.0
      %1594 = vmatpush1.xpose.msra.mxu0 0.0
      %1595 = vmatprep.subr.mxu0 0.0
      %1596 = vmatpush1.xpose.msra.mxu0 0.0
      %1597 = vmatprep.subr.mxu0 0.0
      %1598 = vmatpush1.xpose.msra.mxu0 0.0
      %1599 = vmatprep.subr.mxu0 0.0
      %1600 = vmatpush1.xpose.msra.mxu0 0.0
      %1601 = vmatprep.subr.mxu0 0.0
      %1602 = vmatpush1.xpose.msra.mxu0 0.0
      %1603 = vmatprep.subr.mxu0 0.0
      %1604 = vmatpush1.xpose.msra.mxu0 0.0
      %1605 = vmatprep.subr.mxu0 0.0
      %1606 = vmatpush1.xpose.msra.mxu0 0.0
      %1607 = vmatprep.subr.mxu0 0.0
      %1608 = vmatpush1.xpose.msra.mxu0 0.0
      %1609 = vmatprep.subr.mxu0 0.0
      %1610 = vmatpush1.xpose.msra.mxu0 0.0
      %1611 = vmatprep.subr.mxu0 0.0
      %1612 = vmatpush1.xpose.msra.mxu0 0.0
      %1613 = vmatprep.subr.mxu0 0.0
      %1614 = vmatpush1.xpose.msra.mxu0 0.0
      %1615 = vmatprep.subr.mxu0 0.0
      %1616 = vmatpush1.xpose.msra.mxu0 0.0
      %1617 = vmatprep.subr.mxu0 0.0
      %1618 = vmatpush1.xpose.msra.mxu0 0.0
      %1619 = vmatprep.subr.mxu0 0.0
      %1620 = vmatpush1.xpose.msra.mxu0 0.0
      %1621 = vmatprep.subr.mxu0 0.0
      %1622 = vmatpush1.xpose.msra.mxu0 0.0
      %1623 = vmatprep.subr.mxu0 0.0
      %1624 = vmatpush1.xpose.msra.mxu0 0.0
      %1625 = vmatprep.subr.mxu0 0.0
      %1626 = vmatpush1.xpose.msra.mxu0 0.0
      %1627 = vmatprep.subr.mxu0 0.0
      %1628 = vmatpush1.xpose.msra.mxu0 0.0
      %1629 = vmatprep.subr.mxu0 0.0
      %1630 = vmatpush1.xpose.msra.mxu0 0.0
      %1631 = vmatprep.subr.mxu0 0.0
      %1632 = vmatpush1.xpose.msra.mxu0 0.0
      %1633 = vmatprep.subr.mxu0 0.0
      %1634 = vmatpush1.xpose.msra.mxu0 0.0
      %1635 = vmatprep.subr.mxu0 0.0
      %1636 = vmatpush1.xpose.msra.mxu0 0.0
      %1637 = vmatprep.subr.mxu0 0.0
      %1638 = vmatpush1.xpose.msra.mxu0 0.0
      %1639 = vmatprep.subr.mxu0 0.0
      %1640 = vmatpush1.xpose.msra.mxu0 0.0
      %1641 = vmatprep.subr.mxu0 0.0
      %1642 = vmatpush1.xpose.msra.mxu0 0.0
      %1643 = vmatprep.subr.mxu0 0.0
      %1644 = vmatpush1.xpose.msra.mxu0 0.0
      %1645 = vmatprep.subr.mxu0 0.0
      %1646 = vmatpush1.xpose.msra.mxu0 0.0
      %1647 = vmatprep.subr.mxu0 0.0
      %1648 = vmatpush1.xpose.msra.mxu0 0.0
      %1649 = vmatprep.mubr.f32.mxu0 0.0
      %1650 = vmatmul.mubr.f32.gmra.mrb[0].mxu0 %v1581
      %v1651 = vpop.f32.mrb[0].mxu0
      %v1652 = vadd.f32 0.0, %v1651
      %v1653 = vpop.f32.mrb[0].mxu0
      %1654 = vdwg.mxu0
      %1656 = vrot.lane.b32.xlu0 %v1450, 64
      %v1657 = vpop.permute.xlu0 %1656
      %v1659 = vsel %vm1208, %v1290, 0
      %v1661 = vsel %vm1208, %v1657, 0
      %1663 = vmatprep.subr.mxu0 0.0
      %1664 = vmatpush1.xpose.msra.mxu0 %v1661
      %1665 = vmatprep.subr.mxu0 0.0
      %1666 = vmatpush1.xpose.msra.mxu0 0.0
      %1667 = vmatprep.subr.mxu0 0.0
      %1668 = vmatpush1.xpose.msra.mxu0 0.0
      %1669 = vmatprep.subr.mxu0 0.0
      %1670 = vmatpush1.xpose.msra.mxu0 0.0
      %1671 = vmatprep.subr.mxu0 0.0
      %1672 = vmatpush1.xpose.msra.mxu0 0.0
      %1673 = vmatprep.subr.mxu0 0.0
      %1674 = vmatpush1.xpose.msra.mxu0 0.0
      %1675 = vmatprep.subr.mxu0 0.0
      %1676 = vmatpush1.xpose.msra.mxu0 0.0
      %1677 = vmatprep.subr.mxu0 0.0
      %1678 = vmatpush1.xpose.msra.mxu0 0.0
      %1679 = vmatprep.subr.mxu0 0.0
      %1680 = vmatpush1.xpose.msra.mxu0 0.0
      %1681 = vmatprep.subr.mxu0 0.0
      %1682 = vmatpush1.xpose.msra.mxu0 0.0
      %1683 = vmatprep.subr.mxu0 0.0
      %1684 = vmatpush1.xpose.msra.mxu0 0.0
      %1685 = vmatprep.subr.mxu0 0.0
      %1686 = vmatpush1.xpose.msra.mxu0 0.0
      %1687 = vmatprep.subr.mxu0 0.0
      %1688 = vmatpush1.xpose.msra.mxu0 0.0
      %1689 = vmatprep.subr.mxu0 0.0
      %1690 = vmatpush1.xpose.msra.mxu0 0.0
      %1691 = vmatprep.subr.mxu0 0.0
      %1692 = vmatpush1.xpose.msra.mxu0 0.0
      %1693 = vmatprep.subr.mxu0 0.0
      %1694 = vmatpush1.xpose.msra.mxu0 0.0
      %1695 = vmatprep.subr.mxu0 0.0
      %1696 = vmatpush1.xpose.msra.mxu0 0.0
      %1697 = vmatprep.subr.mxu0 0.0
      %1698 = vmatpush1.xpose.msra.mxu0 0.0
      %1699 = vmatprep.subr.mxu0 0.0
      %1700 = vmatpush1.xpose.msra.mxu0 0.0
      %1701 = vmatprep.subr.mxu0 0.0
      %1702 = vmatpush1.xpose.msra.mxu0 0.0
      %1703 = vmatprep.subr.mxu0 0.0
      %1704 = vmatpush1.xpose.msra.mxu0 0.0
      %1705 = vmatprep.subr.mxu0 0.0
      %1706 = vmatpush1.xpose.msra.mxu0 0.0
      %1707 = vmatprep.subr.mxu0 0.0
      %1708 = vmatpush1.xpose.msra.mxu0 0.0
      %1709 = vmatprep.subr.mxu0 0.0
      %1710 = vmatpush1.xpose.msra.mxu0 0.0
      %1711 = vmatprep.subr.mxu0 0.0
      %1712 = vmatpush1.xpose.msra.mxu0 0.0
      %1713 = vmatprep.subr.mxu0 0.0
      %1714 = vmatpush1.xpose.msra.mxu0 0.0
      %1715 = vmatprep.subr.mxu0 0.0
      %1716 = vmatpush1.xpose.msra.mxu0 0.0
      %1717 = vmatprep.subr.mxu0 0.0
      %1718 = vmatpush1.xpose.msra.mxu0 0.0
      %1719 = vmatprep.subr.mxu0 0.0
      %1720 = vmatpush1.xpose.msra.mxu0 0.0
      %1721 = vmatprep.subr.mxu0 0.0
      %1722 = vmatpush1.xpose.msra.mxu0 0.0
      %1723 = vmatprep.subr.mxu0 0.0
      %1724 = vmatpush1.xpose.msra.mxu0 0.0
      %1725 = vmatprep.subr.mxu0 0.0
      %1726 = vmatpush1.xpose.msra.mxu0 0.0
      %1727 = vmatprep.mubr.f32.mxu0 0.0
      %1728 = vmatmul.mubr.f32.gmra.mrb[0].mxu0 %v1659
      %v1729 = vpop.f32.mrb[0].mxu0
      %v1730 = vadd.f32 0.0, %v1729
      %v1731 = vpop.f32.mrb[0].mxu0
      %1732 = vdwg.mxu0
      %1734 = vrot.lane.b32.xlu0 %v1451, 64
      %v1735 = vpop.permute.xlu0 %1734
      %v1737 = vsel %vm1208, %v1291, 0
      %v1739 = vsel %vm1208, %v1735, 0
      %1741 = vmatprep.subr.mxu0 0.0
      %1742 = vmatpush1.xpose.msra.mxu0 %v1739
      %1743 = vmatprep.subr.mxu0 0.0
      %1744 = vmatpush1.xpose.msra.mxu0 0.0
      %1745 = vmatprep.subr.mxu0 0.0
      %1746 = vmatpush1.xpose.msra.mxu0 0.0
      %1747 = vmatprep.subr.mxu0 0.0
      %1748 = vmatpush1.xpose.msra.mxu0 0.0
      %1749 = vmatprep.subr.mxu0 0.0
      %1750 = vmatpush1.xpose.msra.mxu0 0.0
      %1751 = vmatprep.subr.mxu0 0.0
      %1752 = vmatpush1.xpose.msra.mxu0 0.0
      %1753 = vmatprep.subr.mxu0 0.0
      %1754 = vmatpush1.xpose.msra.mxu0 0.0
      %1755 = vmatprep.subr.mxu0 0.0
      %1756 = vmatpush1.xpose.msra.mxu0 0.0
      %1757 = vmatprep.subr.mxu0 0.0
      %1758 = vmatpush1.xpose.msra.mxu0 0.0
      %1759 = vmatprep.subr.mxu0 0.0
      %1760 = vmatpush1.xpose.msra.mxu0 0.0
      %1761 = vmatprep.subr.mxu0 0.0
      %1762 = vmatpush1.xpose.msra.mxu0 0.0
      %1763 = vmatprep.subr.mxu0 0.0
      %1764 = vmatpush1.xpose.msra.mxu0 0.0
      %1765 = vmatprep.subr.mxu0 0.0
      %1766 = vmatpush1.xpose.msra.mxu0 0.0
      %1767 = vmatprep.subr.mxu0 0.0
      %1768 = vmatpush1.xpose.msra.mxu0 0.0
      %1769 = vmatprep.subr.mxu0 0.0
      %1770 = vmatpush1.xpose.msra.mxu0 0.0
      %1771 = vmatprep.subr.mxu0 0.0
      %1772 = vmatpush1.xpose.msra.mxu0 0.0
      %1773 = vmatprep.subr.mxu0 0.0
      %1774 = vmatpush1.xpose.msra.mxu0 0.0
      %1775 = vmatprep.subr.mxu0 0.0
      %1776 = vmatpush1.xpose.msra.mxu0 0.0
      %1777 = vmatprep.subr.mxu0 0.0
      %1778 = vmatpush1.xpose.msra.mxu0 0.0
      %1779 = vmatprep.subr.mxu0 0.0
      %1780 = vmatpush1.xpose.msra.mxu0 0.0
      %1781 = vmatprep.subr.mxu0 0.0
      %1782 = vmatpush1.xpose.msra.mxu0 0.0
      %1783 = vmatprep.subr.mxu0 0.0
      %1784 = vmatpush1.xpose.msra.mxu0 0.0
      %1785 = vmatprep.subr.mxu0 0.0
      %1786 = vmatpush1.xpose.msra.mxu0 0.0
      %1787 = vmatprep.subr.mxu0 0.0
      %1788 = vmatpush1.xpose.msra.mxu0 0.0
      %1789 = vmatprep.subr.mxu0 0.0
      %1790 = vmatpush1.xpose.msra.mxu0 0.0
      %1791 = vmatprep.subr.mxu0 0.0
      %1792 = vmatpush1.xpose.msra.mxu0 0.0
      %1793 = vmatprep.subr.mxu0 0.0
      %1794 = vmatpush1.xpose.msra.mxu0 0.0
      %1795 = vmatprep.subr.mxu0 0.0
      %1796 = vmatpush1.xpose.msra.mxu0 0.0
      %1797 = vmatprep.subr.mxu0 0.0
      %1798 = vmatpush1.xpose.msra.mxu0 0.0
      %1799 = vmatprep.subr.mxu0 0.0
      %1800 = vmatpush1.xpose.msra.mxu0 0.0
      %1801 = vmatprep.subr.mxu0 0.0
      %1802 = vmatpush1.xpose.msra.mxu0 0.0
      %1803 = vmatprep.subr.mxu0 0.0
      %1804 = vmatpush1.xpose.msra.mxu0 0.0
      %1805 = vmatprep.mubr.f32.mxu0 0.0
      %1806 = vmatmul.mubr.f32.gmra.mrb[0].mxu0 %v1737
      %v1807 = vpop.f32.mrb[0].mxu0
      %v1808 = vadd.f32 0.0, %v1807
      %v1809 = vpop.f32.mrb[0].mxu0
      %1810 = vdwg.mxu0
      %1812 = vrot.lane.b32.xlu0 %v1452, 64
      %v1813 = vpop.permute.xlu0 %1812
      %v1815 = vsel %vm1208, %v1292, 0
      %v1817 = vsel %vm1208, %v1813, 0
      %1819 = vmatprep.subr.mxu0 0.0
      %1820 = vmatpush1.xpose.msra.mxu0 %v1817
      %1821 = vmatprep.subr.mxu0 0.0
      %1822 = vmatpush1.xpose.msra.mxu0 0.0
      %1823 = vmatprep.subr.mxu0 0.0
      %1824 = vmatpush1.xpose.msra.mxu0 0.0
      %1825 = vmatprep.subr.mxu0 0.0
      %1826 = vmatpush1.xpose.msra.mxu0 0.0
      %1827 = vmatprep.subr.mxu0 0.0
      %1828 = vmatpush1.xpose.msra.mxu0 0.0
      %1829 = vmatprep.subr.mxu0 0.0
      %1830 = vmatpush1.xpose.msra.mxu0 0.0
      %1831 = vmatprep.subr.mxu0 0.0
      %1832 = vmatpush1.xpose.msra.mxu0 0.0
      %1833 = vmatprep.subr.mxu0 0.0
      %1834 = vmatpush1.xpose.msra.mxu0 0.0
      %1835 = vmatprep.subr.mxu0 0.0
      %1836 = vmatpush1.xpose.msra.mxu0 0.0
      %1837 = vmatprep.subr.mxu0 0.0
      %1838 = vmatpush1.xpose.msra.mxu0 0.0
      %1839 = vmatprep.subr.mxu0 0.0
      %1840 = vmatpush1.xpose.msra.mxu0 0.0
      %1841 = vmatprep.subr.mxu0 0.0
      %1842 = vmatpush1.xpose.msra.mxu0 0.0
      %1843 = vmatprep.subr.mxu0 0.0
      %1844 = vmatpush1.xpose.msra.mxu0 0.0
      %1845 = vmatprep.subr.mxu0 0.0
      %1846 = vmatpush1.xpose.msra.mxu0 0.0
      %1847 = vmatprep.subr.mxu0 0.0
      %1848 = vmatpush1.xpose.msra.mxu0 0.0
      %1849 = vmatprep.subr.mxu0 0.0
      %1850 = vmatpush1.xpose.msra.mxu0 0.0
      %1851 = vmatprep.subr.mxu0 0.0
      %1852 = vmatpush1.xpose.msra.mxu0 0.0
      %1853 = vmatprep.subr.mxu0 0.0
      %1854 = vmatpush1.xpose.msra.mxu0 0.0
      %1855 = vmatprep.subr.mxu0 0.0
      %1856 = vmatpush1.xpose.msra.mxu0 0.0
      %1857 = vmatprep.subr.mxu0 0.0
      %1858 = vmatpush1.xpose.msra.mxu0 0.0
      %1859 = vmatprep.subr.mxu0 0.0
      %1860 = vmatpush1.xpose.msra.mxu0 0.0
      %1861 = vmatprep.subr.mxu0 0.0
      %1862 = vmatpush1.xpose.msra.mxu0 0.0
      %1863 = vmatprep.subr.mxu0 0.0
      %1864 = vmatpush1.xpose.msra.mxu0 0.0
      %1865 = vmatprep.subr.mxu0 0.0
      %1866 = vmatpush1.xpose.msra.mxu0 0.0
      %1867 = vmatprep.subr.mxu0 0.0
      %1868 = vmatpush1.xpose.msra.mxu0 0.0
      %1869 = vmatprep.subr.mxu0 0.0
      %1870 = vmatpush1.xpose.msra.mxu0 0.0
      %1871 = vmatprep.subr.mxu0 0.0
      %1872 = vmatpush1.xpose.msra.mxu0 0.0
      %1873 = vmatprep.subr.mxu0 0.0
      %1874 = vmatpush1.xpose.msra.mxu0 0.0
      %1875 = vmatprep.subr.mxu0 0.0
      %1876 = vmatpush1.xpose.msra.mxu0 0.0
      %1877 = vmatprep.subr.mxu0 0.0
      %1878 = vmatpush1.xpose.msra.mxu0 0.0
      %1879 = vmatprep.subr.mxu0 0.0
      %1880 = vmatpush1.xpose.msra.mxu0 0.0
      %1881 = vmatprep.subr.mxu0 0.0
      %1882 = vmatpush1.xpose.msra.mxu0 0.0
      %1883 = vmatprep.mubr.f32.mxu0 0.0
      %1884 = vmatmul.mubr.f32.gmra.mrb[0].mxu0 %v1815
      %v1885 = vpop.f32.mrb[0].mxu0
      %v1886 = vadd.f32 0.0, %v1885
      %v1887 = vpop.f32.mrb[0].mxu0
      %1888 = vdwg.mxu0
      %1890 = vrot.lane.b32.xlu0 %v1453, 64
      %v1891 = vpop.permute.xlu0 %1890
      %v1893 = vsel %vm1208, %v1293, 0
      %v1895 = vsel %vm1208, %v1891, 0
      %1897 = vmatprep.subr.mxu0 0.0
      %1898 = vmatpush1.xpose.msra.mxu0 %v1895
      %1899 = vmatprep.subr.mxu0 0.0
      %1900 = vmatpush1.xpose.msra.mxu0 0.0
      %1901 = vmatprep.subr.mxu0 0.0
      %1902 = vmatpush1.xpose.msra.mxu0 0.0
      %1903 = vmatprep.subr.mxu0 0.0
      %1904 = vmatpush1.xpose.msra.mxu0 0.0
      %1905 = vmatprep.subr.mxu0 0.0
      %1906 = vmatpush1.xpose.msra.mxu0 0.0
      %1907 = vmatprep.subr.mxu0 0.0
      %1908 = vmatpush1.xpose.msra.mxu0 0.0
      %1909 = vmatprep.subr.mxu0 0.0
      %1910 = vmatpush1.xpose.msra.mxu0 0.0
      %1911 = vmatprep.subr.mxu0 0.0
      %1912 = vmatpush1.xpose.msra.mxu0 0.0
      %1913 = vmatprep.subr.mxu0 0.0
      %1914 = vmatpush1.xpose.msra.mxu0 0.0
      %1915 = vmatprep.subr.mxu0 0.0
      %1916 = vmatpush1.xpose.msra.mxu0 0.0
      %1917 = vmatprep.subr.mxu0 0.0
      %1918 = vmatpush1.xpose.msra.mxu0 0.0
      %1919 = vmatprep.subr.mxu0 0.0
      %1920 = vmatpush1.xpose.msra.mxu0 0.0
      %1921 = vmatprep.subr.mxu0 0.0
      %1922 = vmatpush1.xpose.msra.mxu0 0.0
      %1923 = vmatprep.subr.mxu0 0.0
      %1924 = vmatpush1.xpose.msra.mxu0 0.0
      %1925 = vmatprep.subr.mxu0 0.0
      %1926 = vmatpush1.xpose.msra.mxu0 0.0
      %1927 = vmatprep.subr.mxu0 0.0
      %1928 = vmatpush1.xpose.msra.mxu0 0.0
      %1929 = vmatprep.subr.mxu0 0.0
      %1930 = vmatpush1.xpose.msra.mxu0 0.0
      %1931 = vmatprep.subr.mxu0 0.0
      %1932 = vmatpush1.xpose.msra.mxu0 0.0
      %1933 = vmatprep.subr.mxu0 0.0
      %1934 = vmatpush1.xpose.msra.mxu0 0.0
      %1935 = vmatprep.subr.mxu0 0.0
      %1936 = vmatpush1.xpose.msra.mxu0 0.0
      %1937 = vmatprep.subr.mxu0 0.0
      %1938 = vmatpush1.xpose.msra.mxu0 0.0
      %1939 = vmatprep.subr.mxu0 0.0
      %1940 = vmatpush1.xpose.msra.mxu0 0.0
      %1941 = vmatprep.subr.mxu0 0.0
      %1942 = vmatpush1.xpose.msra.mxu0 0.0
      %1943 = vmatprep.subr.mxu0 0.0
      %1944 = vmatpush1.xpose.msra.mxu0 0.0
      %1945 = vmatprep.subr.mxu0 0.0
      %1946 = vmatpush1.xpose.msra.mxu0 0.0
      %1947 = vmatprep.subr.mxu0 0.0
      %1948 = vmatpush1.xpose.msra.mxu0 0.0
      %1949 = vmatprep.subr.mxu0 0.0
      %1950 = vmatpush1.xpose.msra.mxu0 0.0
      %1951 = vmatprep.subr.mxu0 0.0
      %1952 = vmatpush1.xpose.msra.mxu0 0.0
      %1953 = vmatprep.subr.mxu0 0.0
      %1954 = vmatpush1.xpose.msra.mxu0 0.0
      %1955 = vmatprep.subr.mxu0 0.0
      %1956 = vmatpush1.xpose.msra.mxu0 0.0
      %1957 = vmatprep.subr.mxu0 0.0
      %1958 = vmatpush1.xpose.msra.mxu0 0.0
      %1959 = vmatprep.subr.mxu0 0.0
      %1960 = vmatpush1.xpose.msra.mxu0 0.0
      %1961 = vmatprep.mubr.f32.mxu0 0.0
      %1962 = vmatmul.mubr.f32.gmra.mrb[0].mxu0 %v1893
      %v1963 = vpop.f32.mrb[0].mxu0
      %v1964 = vadd.f32 0.0, %v1963
      %v1965 = vpop.f32.mrb[0].mxu0
      %1966 = vdwg.mxu0
      %1968 = vrot.lane.b32.xlu0 %v1454, 64
      %v1969 = vpop.permute.xlu0 %1968
      %v1971 = vsel %vm1208, %v1294, 0
      %v1973 = vsel %vm1208, %v1969, 0
      %1975 = vmatprep.subr.mxu0 0.0
      %1976 = vmatpush1.xpose.msra.mxu0 %v1973
      %1977 = vmatprep.subr.mxu0 0.0
      %1978 = vmatpush1.xpose.msra.mxu0 0.0
      %1979 = vmatprep.subr.mxu0 0.0
      %1980 = vmatpush1.xpose.msra.mxu0 0.0
      %1981 = vmatprep.subr.mxu0 0.0
      %1982 = vmatpush1.xpose.msra.mxu0 0.0
      %1983 = vmatprep.subr.mxu0 0.0
      %1984 = vmatpush1.xpose.msra.mxu0 0.0
      %1985 = vmatprep.subr.mxu0 0.0
      %1986 = vmatpush1.xpose.msra.mxu0 0.0
      %1987 = vmatprep.subr.mxu0 0.0
      %1988 = vmatpush1.xpose.msra.mxu0 0.0
      %1989 = vmatprep.subr.mxu0 0.0
      %1990 = vmatpush1.xpose.msra.mxu0 0.0
      %1991 = vmatprep.subr.mxu0 0.0
      %1992 = vmatpush1.xpose.msra.mxu0 0.0
      %1993 = vmatprep.subr.mxu0 0.0
      %1994 = vmatpush1.xpose.msra.mxu0 0.0
      %1995 = vmatprep.subr.mxu0 0.0
      %1996 = vmatpush1.xpose.msra.mxu0 0.0
      %1997 = vmatprep.subr.mxu0 0.0
      %1998 = vmatpush1.xpose.msra.mxu0 0.0
      %1999 = vmatprep.subr.mxu0 0.0
      %2000 = vmatpush1.xpose.msra.mxu0 0.0
      %2001 = vmatprep.subr.mxu0 0.0
      %2002 = vmatpush1.xpose.msra.mxu0 0.0
      %2003 = vmatprep.subr.mxu0 0.0
      %2004 = vmatpush1.xpose.msra.mxu0 0.0
      %2005 = vmatprep.subr.mxu0 0.0
      %2006 = vmatpush1.xpose.msra.mxu0 0.0
      %2007 = vmatprep.subr.mxu0 0.0
      %2008 = vmatpush1.xpose.msra.mxu0 0.0
      %2009 = vmatprep.subr.mxu0 0.0
      %2010 = vmatpush1.xpose.msra.mxu0 0.0
      %2011 = vmatprep.subr.mxu0 0.0
      %2012 = vmatpush1.xpose.msra.mxu0 0.0
      %2013 = vmatprep.subr.mxu0 0.0
      %2014 = vmatpush1.xpose.msra.mxu0 0.0
      %2015 = vmatprep.subr.mxu0 0.0
      %2016 = vmatpush1.xpose.msra.mxu0 0.0
      %2017 = vmatprep.subr.mxu0 0.0
      %2018 = vmatpush1.xpose.msra.mxu0 0.0
      %2019 = vmatprep.subr.mxu0 0.0
      %2020 = vmatpush1.xpose.msra.mxu0 0.0
      %2021 = vmatprep.subr.mxu0 0.0
      %2022 = vmatpush1.xpose.msra.mxu0 0.0
      %2023 = vmatprep.subr.mxu0 0.0
      %2024 = vmatpush1.xpose.msra.mxu0 0.0
      %2025 = vmatprep.subr.mxu0 0.0
      %2026 = vmatpush1.xpose.msra.mxu0 0.0
      %2027 = vmatprep.subr.mxu0 0.0
      %2028 = vmatpush1.xpose.msra.mxu0 0.0
      %2029 = vmatprep.subr.mxu0 0.0
      %2030 = vmatpush1.xpose.msra.mxu0 0.0
      %2031 = vmatprep.subr.mxu0 0.0
      %2032 = vmatpush1.xpose.msra.mxu0 0.0
      %2033 = vmatprep.subr.mxu0 0.0
      %2034 = vmatpush1.xpose.msra.mxu0 0.0
      %2035 = vmatprep.subr.mxu0 0.0
      %2036 = vmatpush1.xpose.msra.mxu0 0.0
      %2037 = vmatprep.subr.mxu0 0.0
      %2038 = vmatpush1.xpose.msra.mxu0 0.0
      %2039 = vmatprep.mubr.f32.mxu0 0.0
      %2040 = vmatmul.mubr.f32.gmra.mrb[0].mxu0 %v1971
      %v2041 = vpop.f32.mrb[0].mxu0
      %v2042 = vadd.f32 0.0, %v2041
      %v2043 = vpop.f32.mrb[0].mxu0
      %2044 = vdwg.mxu0
      %2046 = vrot.lane.b32.xlu0 %v1455, 64
      %v2047 = vpop.permute.xlu0 %2046
      %v2049 = vsel %vm1208, %v1295, 0
      %v2051 = vsel %vm1208, %v2047, 0
      %2053 = vmatprep.subr.mxu0 0.0
      %2054 = vmatpush1.xpose.msra.mxu0 %v2051
      %2055 = vmatprep.subr.mxu0 0.0
      %2056 = vmatpush1.xpose.msra.mxu0 0.0
      %2057 = vmatprep.subr.mxu0 0.0
      %2058 = vmatpush1.xpose.msra.mxu0 0.0
      %2059 = vmatprep.subr.mxu0 0.0
      %2060 = vmatpush1.xpose.msra.mxu0 0.0
      %2061 = vmatprep.subr.mxu0 0.0
      %2062 = vmatpush1.xpose.msra.mxu0 0.0
      %2063 = vmatprep.subr.mxu0 0.0
      %2064 = vmatpush1.xpose.msra.mxu0 0.0
      %2065 = vmatprep.subr.mxu0 0.0
      %2066 = vmatpush1.xpose.msra.mxu0 0.0
      %2067 = vmatprep.subr.mxu0 0.0
      %2068 = vmatpush1.xpose.msra.mxu0 0.0
      %2069 = vmatprep.subr.mxu0 0.0
      %2070 = vmatpush1.xpose.msra.mxu0 0.0
      %2071 = vmatprep.subr.mxu0 0.0
      %2072 = vmatpush1.xpose.msra.mxu0 0.0
      %2073 = vmatprep.subr.mxu0 0.0
      %2074 = vmatpush1.xpose.msra.mxu0 0.0
      %2075 = vmatprep.subr.mxu0 0.0
      %2076 = vmatpush1.xpose.msra.mxu0 0.0
      %2077 = vmatprep.subr.mxu0 0.0
      %2078 = vmatpush1.xpose.msra.mxu0 0.0
      %2079 = vmatprep.subr.mxu0 0.0
      %2080 = vmatpush1.xpose.msra.mxu0 0.0
      %2081 = vmatprep.subr.mxu0 0.0
      %2082 = vmatpush1.xpose.msra.mxu0 0.0
      %2083 = vmatprep.subr.mxu0 0.0
      %2084 = vmatpush1.xpose.msra.mxu0 0.0
      %2085 = vmatprep.subr.mxu0 0.0
      %2086 = vmatpush1.xpose.msra.mxu0 0.0
      %2087 = vmatprep.subr.mxu0 0.0
      %2088 = vmatpush1.xpose.msra.mxu0 0.0
      %2089 = vmatprep.subr.mxu0 0.0
      %2090 = vmatpush1.xpose.msra.mxu0 0.0
      %2091 = vmatprep.subr.mxu0 0.0
      %2092 = vmatpush1.xpose.msra.mxu0 0.0
      %2093 = vmatprep.subr.mxu0 0.0
      %2094 = vmatpush1.xpose.msra.mxu0 0.0
      %2095 = vmatprep.subr.mxu0 0.0
      %2096 = vmatpush1.xpose.msra.mxu0 0.0
      %2097 = vmatprep.subr.mxu0 0.0
      %2098 = vmatpush1.xpose.msra.mxu0 0.0
      %2099 = vmatprep.subr.mxu0 0.0
      %2100 = vmatpush1.xpose.msra.mxu0 0.0
      %2101 = vmatprep.subr.mxu0 0.0
      %2102 = vmatpush1.xpose.msra.mxu0 0.0
      %2103 = vmatprep.subr.mxu0 0.0
      %2104 = vmatpush1.xpose.msra.mxu0 0.0
      %2105 = vmatprep.subr.mxu0 0.0
      %2106 = vmatpush1.xpose.msra.mxu0 0.0
      %2107 = vmatprep.subr.mxu0 0.0
      %2108 = vmatpush1.xpose.msra.mxu0 0.0
      %2109 = vmatprep.subr.mxu0 0.0
      %2110 = vmatpush1.xpose.msra.mxu0 0.0
      %2111 = vmatprep.subr.mxu0 0.0
      %2112 = vmatpush1.xpose.msra.mxu0 0.0
      %2113 = vmatprep.subr.mxu0 0.0
      %2114 = vmatpush1.xpose.msra.mxu0 0.0
      %2115 = vmatprep.subr.mxu0 0.0
      %2116 = vmatpush1.xpose.msra.mxu0 0.0
      %2117 = vmatprep.mubr.f32.mxu0 0.0
      %2118 = vmatmul.mubr.f32.gmra.mrb[0].mxu0 %v2049
      %v2119 = vpop.f32.mrb[0].mxu0
      %v2120 = vadd.f32 0.0, %v2119
      %v2121 = vpop.f32.mrb[0].mxu0
      %2122 = vdwg.mxu0
      %2124 = vrot.lane.b32.xlu0 %v1456, 64
      %v2125 = vpop.permute.xlu0 %2124
      %v2127 = vsel %vm1208, %v1296, 0
      %v2129 = vsel %vm1208, %v2125, 0
      %2131 = vmatprep.subr.mxu0 0.0
      %2132 = vmatpush1.xpose.msra.mxu0 %v2129
      %2133 = vmatprep.subr.mxu0 0.0
      %2134 = vmatpush1.xpose.msra.mxu0 0.0
      %2135 = vmatprep.subr.mxu0 0.0
      %2136 = vmatpush1.xpose.msra.mxu0 0.0
      %2137 = vmatprep.subr.mxu0 0.0
      %2138 = vmatpush1.xpose.msra.mxu0 0.0
      %2139 = vmatprep.subr.mxu0 0.0
      %2140 = vmatpush1.xpose.msra.mxu0 0.0
      %2141 = vmatprep.subr.mxu0 0.0
      %2142 = vmatpush1.xpose.msra.mxu0 0.0
      %2143 = vmatprep.subr.mxu0 0.0
      %2144 = vmatpush1.xpose.msra.mxu0 0.0
      %2145 = vmatprep.subr.mxu0 0.0
      %2146 = vmatpush1.xpose.msra.mxu0 0.0
      %2147 = vmatprep.subr.mxu0 0.0
      %2148 = vmatpush1.xpose.msra.mxu0 0.0
      %2149 = vmatprep.subr.mxu0 0.0
      %2150 = vmatpush1.xpose.msra.mxu0 0.0
      %2151 = vmatprep.subr.mxu0 0.0
      %2152 = vmatpush1.xpose.msra.mxu0 0.0
      %2153 = vmatprep.subr.mxu0 0.0
      %2154 = vmatpush1.xpose.msra.mxu0 0.0
      %2155 = vmatprep.subr.mxu0 0.0
      %2156 = vmatpush1.xpose.msra.mxu0 0.0
      %2157 = vmatprep.subr.mxu0 0.0
      %2158 = vmatpush1.xpose.msra.mxu0 0.0
      %2159 = vmatprep.subr.mxu0 0.0
      %2160 = vmatpush1.xpose.msra.mxu0 0.0
      %2161 = vmatprep.subr.mxu0 0.0
      %2162 = vmatpush1.xpose.msra.mxu0 0.0
      %2163 = vmatprep.subr.mxu0 0.0
      %2164 = vmatpush1.xpose.msra.mxu0 0.0
      %2165 = vmatprep.subr.mxu0 0.0
      %2166 = vmatpush1.xpose.msra.mxu0 0.0
      %2167 = vmatprep.subr.mxu0 0.0
      %2168 = vmatpush1.xpose.msra.mxu0 0.0
      %2169 = vmatprep.subr.mxu0 0.0
      %2170 = vmatpush1.xpose.msra.mxu0 0.0
      %2171 = vmatprep.subr.mxu0 0.0
      %2172 = vmatpush1.xpose.msra.mxu0 0.0
      %2173 = vmatprep.subr.mxu0 0.0
      %2174 = vmatpush1.xpose.msra.mxu0 0.0
      %2175 = vmatprep.subr.mxu0 0.0
      %2176 = vmatpush1.xpose.msra.mxu0 0.0
      %2177 = vmatprep.subr.mxu0 0.0
      %2178 = vmatpush1.xpose.msra.mxu0 0.0
      %2179 = vmatprep.subr.mxu0 0.0
      %2180 = vmatpush1.xpose.msra.mxu0 0.0
      %2181 = vmatprep.subr.mxu0 0.0
      %2182 = vmatpush1.xpose.msra.mxu0 0.0
      %2183 = vmatprep.subr.mxu0 0.0
      %2184 = vmatpush1.xpose.msra.mxu0 0.0
      %2185 = vmatprep.subr.mxu0 0.0
      %2186 = vmatpush1.xpose.msra.mxu0 0.0
      %2187 = vmatprep.subr.mxu0 0.0
      %2188 = vmatpush1.xpose.msra.mxu0 0.0
      %2189 = vmatprep.subr.mxu0 0.0
      %2190 = vmatpush1.xpose.msra.mxu0 0.0
      %2191 = vmatprep.subr.mxu0 0.0
      %2192 = vmatpush1.xpose.msra.mxu0 0.0
      %2193 = vmatprep.subr.mxu0 0.0
      %2194 = vmatpush1.xpose.msra.mxu0 0.0
      %2195 = vmatprep.mubr.f32.mxu0 0.0
      %2196 = vmatmul.mubr.f32.gmra.mrb[0].mxu0 %v2127
      %v2197 = vpop.f32.mrb[0].mxu0
      %v2198 = vadd.f32 0.0, %v2197
      %v2199 = vpop.f32.mrb[0].mxu0
      %2200 = vdwg.mxu0
      %2202 = vrot.lane.b32.xlu0 %v1457, 64
      %v2203 = vpop.permute.xlu0 %2202
      %v2205 = vsel %vm1208, %v1297, 0
      %v2207 = vsel %vm1208, %v2203, 0
      %2209 = vmatprep.subr.mxu0 0.0
      %2210 = vmatpush1.xpose.msra.mxu0 %v2207
      %2211 = vmatprep.subr.mxu0 0.0
      %2212 = vmatpush1.xpose.msra.mxu0 0.0
      %2213 = vmatprep.subr.mxu0 0.0
      %2214 = vmatpush1.xpose.msra.mxu0 0.0
      %2215 = vmatprep.subr.mxu0 0.0
      %2216 = vmatpush1.xpose.msra.mxu0 0.0
      %2217 = vmatprep.subr.mxu0 0.0
      %2218 = vmatpush1.xpose.msra.mxu0 0.0
      %2219 = vmatprep.subr.mxu0 0.0
      %2220 = vmatpush1.xpose.msra.mxu0 0.0
      %2221 = vmatprep.subr.mxu0 0.0
      %2222 = vmatpush1.xpose.msra.mxu0 0.0
      %2223 = vmatprep.subr.mxu0 0.0
      %2224 = vmatpush1.xpose.msra.mxu0 0.0
      %2225 = vmatprep.subr.mxu0 0.0
      %2226 = vmatpush1.xpose.msra.mxu0 0.0
      %2227 = vmatprep.subr.mxu0 0.0
      %2228 = vmatpush1.xpose.msra.mxu0 0.0
      %2229 = vmatprep.subr.mxu0 0.0
      %2230 = vmatpush1.xpose.msra.mxu0 0.0
      %2231 = vmatprep.subr.mxu0 0.0
      %2232 = vmatpush1.xpose.msra.mxu0 0.0
      %2233 = vmatprep.subr.mxu0 0.0
      %2234 = vmatpush1.xpose.msra.mxu0 0.0
      %2235 = vmatprep.subr.mxu0 0.0
      %2236 = vmatpush1.xpose.msra.mxu0 0.0
      %2237 = vmatprep.subr.mxu0 0.0
      %2238 = vmatpush1.xpose.msra.mxu0 0.0
      %2239 = vmatprep.subr.mxu0 0.0
      %2240 = vmatpush1.xpose.msra.mxu0 0.0
      %2241 = vmatprep.subr.mxu0 0.0
      %2242 = vmatpush1.xpose.msra.mxu0 0.0
      %2243 = vmatprep.subr.mxu0 0.0
      %2244 = vmatpush1.xpose.msra.mxu0 0.0
      %2245 = vmatprep.subr.mxu0 0.0
      %2246 = vmatpush1.xpose.msra.mxu0 0.0
      %2247 = vmatprep.subr.mxu0 0.0
      %2248 = vmatpush1.xpose.msra.mxu0 0.0
      %2249 = vmatprep.subr.mxu0 0.0
      %2250 = vmatpush1.xpose.msra.mxu0 0.0
      %2251 = vmatprep.subr.mxu0 0.0
      %2252 = vmatpush1.xpose.msra.mxu0 0.0
      %2253 = vmatprep.subr.mxu0 0.0
      %2254 = vmatpush1.xpose.msra.mxu0 0.0
      %2255 = vmatprep.subr.mxu0 0.0
      %2256 = vmatpush1.xpose.msra.mxu0 0.0
      %2257 = vmatprep.subr.mxu0 0.0
      %2258 = vmatpush1.xpose.msra.mxu0 0.0
      %2259 = vmatprep.subr.mxu0 0.0
      %2260 = vmatpush1.xpose.msra.mxu0 0.0
      %2261 = vmatprep.subr.mxu0 0.0
      %2262 = vmatpush1.xpose.msra.mxu0 0.0
      %2263 = vmatprep.subr.mxu0 0.0
      %2264 = vmatpush1.xpose.msra.mxu0 0.0
      %2265 = vmatprep.subr.mxu0 0.0
      %2266 = vmatpush1.xpose.msra.mxu0 0.0
      %2267 = vmatprep.subr.mxu0 0.0
      %2268 = vmatpush1.xpose.msra.mxu0 0.0
      %2269 = vmatprep.subr.mxu0 0.0
      %2270 = vmatpush1.xpose.msra.mxu0 0.0
      %2271 = vmatprep.subr.mxu0 0.0
      %2272 = vmatpush1.xpose.msra.mxu0 0.0
      %2273 = vmatprep.mubr.f32.mxu0 0.0
      %2274 = vmatmul.mubr.f32.gmra.mrb[0].mxu0 %v2205
      %v2275 = vpop.f32.mrb[0].mxu0
      %v2276 = vadd.f32 0.0, %v2275
      %v2277 = vpop.f32.mrb[0].mxu0
      %2278 = vdwg.mxu0
      %2280 = vrot.lane.b32.xlu0 %v1458, 64
      %v2281 = vpop.permute.xlu0 %2280
      %v2283 = vsel %vm1208, %v1298, 0
      %v2285 = vsel %vm1208, %v2281, 0
      %2287 = vmatprep.subr.mxu0 0.0
      %2288 = vmatpush1.xpose.msra.mxu0 %v2285
      %2289 = vmatprep.subr.mxu0 0.0
      %2290 = vmatpush1.xpose.msra.mxu0 0.0
      %2291 = vmatprep.subr.mxu0 0.0
      %2292 = vmatpush1.xpose.msra.mxu0 0.0
      %2293 = vmatprep.subr.mxu0 0.0
      %2294 = vmatpush1.xpose.msra.mxu0 0.0
      %2295 = vmatprep.subr.mxu0 0.0
      %2296 = vmatpush1.xpose.msra.mxu0 0.0
      %2297 = vmatprep.subr.mxu0 0.0
      %2298 = vmatpush1.xpose.msra.mxu0 0.0
      %2299 = vmatprep.subr.mxu0 0.0
      %2300 = vmatpush1.xpose.msra.mxu0 0.0
      %2301 = vmatprep.subr.mxu0 0.0
      %2302 = vmatpush1.xpose.msra.mxu0 0.0
      %2303 = vmatprep.subr.mxu0 0.0
      %2304 = vmatpush1.xpose.msra.mxu0 0.0
      %2305 = vmatprep.subr.mxu0 0.0
      %2306 = vmatpush1.xpose.msra.mxu0 0.0
      %2307 = vmatprep.subr.mxu0 0.0
      %2308 = vmatpush1.xpose.msra.mxu0 0.0
      %2309 = vmatprep.subr.mxu0 0.0
      %2310 = vmatpush1.xpose.msra.mxu0 0.0
      %2311 = vmatprep.subr.mxu0 0.0
      %2312 = vmatpush1.xpose.msra.mxu0 0.0
      %2313 = vmatprep.subr.mxu0 0.0
      %2314 = vmatpush1.xpose.msra.mxu0 0.0
      %2315 = vmatprep.subr.mxu0 0.0
      %2316 = vmatpush1.xpose.msra.mxu0 0.0
      %2317 = vmatprep.subr.mxu0 0.0
      %2318 = vmatpush1.xpose.msra.mxu0 0.0
      %2319 = vmatprep.subr.mxu0 0.0
      %2320 = vmatpush1.xpose.msra.mxu0 0.0
      %2321 = vmatprep.subr.mxu0 0.0
      %2322 = vmatpush1.xpose.msra.mxu0 0.0
      %2323 = vmatprep.subr.mxu0 0.0
      %2324 = vmatpush1.xpose.msra.mxu0 0.0
      %2325 = vmatprep.subr.mxu0 0.0
      %2326 = vmatpush1.xpose.msra.mxu0 0.0
      %2327 = vmatprep.subr.mxu0 0.0
      %2328 = vmatpush1.xpose.msra.mxu0 0.0
      %2329 = vmatprep.subr.mxu0 0.0
      %2330 = vmatpush1.xpose.msra.mxu0 0.0
      %2331 = vmatprep.subr.mxu0 0.0
      %2332 = vmatpush1.xpose.msra.mxu0 0.0
      %2333 = vmatprep.subr.mxu0 0.0
      %2334 = vmatpush1.xpose.msra.mxu0 0.0
      %2335 = vmatprep.subr.mxu0 0.0
      %2336 = vmatpush1.xpose.msra.mxu0 0.0
      %2337 = vmatprep.subr.mxu0 0.0
      %2338 = vmatpush1.xpose.msra.mxu0 0.0
      %2339 = vmatprep.subr.mxu0 0.0
      %2340 = vmatpush1.xpose.msra.mxu0 0.0
      %2341 = vmatprep.subr.mxu0 0.0
      %2342 = vmatpush1.xpose.msra.mxu0 0.0
      %2343 = vmatprep.subr.mxu0 0.0
      %2344 = vmatpush1.xpose.msra.mxu0 0.0
      %2345 = vmatprep.subr.mxu0 0.0
      %2346 = vmatpush1.xpose.msra.mxu0 0.0
      %2347 = vmatprep.subr.mxu0 0.0
      %2348 = vmatpush1.xpose.msra.mxu0 0.0
      %2349 = vmatprep.subr.mxu0 0.0
      %2350 = vmatpush1.xpose.msra.mxu0 0.0
      %2351 = vmatprep.mubr.f32.mxu0 0.0
      %2352 = vmatmul.mubr.f32.gmra.mrb[0].mxu0 %v2283
      %v2353 = vpop.f32.mrb[0].mxu0
      %v2354 = vadd.f32 0.0, %v2353
      %v2355 = vpop.f32.mrb[0].mxu0
      %2356 = vdwg.mxu0
      %2358 = vrot.lane.b32.xlu0 %v1459, 64
      %v2359 = vpop.permute.xlu0 %2358
      %v2361 = vsel %vm1208, %v1299, 0
      %v2363 = vsel %vm1208, %v2359, 0
      %2365 = vmatprep.subr.mxu0 0.0
      %2366 = vmatpush1.xpose.msra.mxu0 %v2363
      %2367 = vmatprep.subr.mxu0 0.0
      %2368 = vmatpush1.xpose.msra.mxu0 0.0
      %2369 = vmatprep.subr.mxu0 0.0
      %2370 = vmatpush1.xpose.msra.mxu0 0.0
      %2371 = vmatprep.subr.mxu0 0.0
      %2372 = vmatpush1.xpose.msra.mxu0 0.0
      %2373 = vmatprep.subr.mxu0 0.0
      %2374 = vmatpush1.xpose.msra.mxu0 0.0
      %2375 = vmatprep.subr.mxu0 0.0
      %2376 = vmatpush1.xpose.msra.mxu0 0.0
      %2377 = vmatprep.subr.mxu0 0.0
      %2378 = vmatpush1.xpose.msra.mxu0 0.0
      %2379 = vmatprep.subr.mxu0 0.0
      %2380 = vmatpush1.xpose.msra.mxu0 0.0
      %2381 = vmatprep.subr.mxu0 0.0
      %2382 = vmatpush1.xpose.msra.mxu0 0.0
      %2383 = vmatprep.subr.mxu0 0.0
      %2384 = vmatpush1.xpose.msra.mxu0 0.0
      %2385 = vmatprep.subr.mxu0 0.0
      %2386 = vmatpush1.xpose.msra.mxu0 0.0
      %2387 = vmatprep.subr.mxu0 0.0
      %2388 = vmatpush1.xpose.msra.mxu0 0.0
      %2389 = vmatprep.subr.mxu0 0.0
      %2390 = vmatpush1.xpose.msra.mxu0 0.0
      %2391 = vmatprep.subr.mxu0 0.0
      %2392 = vmatpush1.xpose.msra.mxu0 0.0
      %2393 = vmatprep.subr.mxu0 0.0
      %2394 = vmatpush1.xpose.msra.mxu0 0.0
      %2395 = vmatprep.subr.mxu0 0.0
      %2396 = vmatpush1.xpose.msra.mxu0 0.0
      %2397 = vmatprep.subr.mxu0 0.0
      %2398 = vmatpush1.xpose.msra.mxu0 0.0
      %2399 = vmatprep.subr.mxu0 0.0
      %2400 = vmatpush1.xpose.msra.mxu0 0.0
      %2401 = vmatprep.subr.mxu0 0.0
      %2402 = vmatpush1.xpose.msra.mxu0 0.0
      %2403 = vmatprep.subr.mxu0 0.0
      %2404 = vmatpush1.xpose.msra.mxu0 0.0
      %2405 = vmatprep.subr.mxu0 0.0
      %2406 = vmatpush1.xpose.msra.mxu0 0.0
      %2407 = vmatprep.subr.mxu0 0.0
      %2408 = vmatpush1.xpose.msra.mxu0 0.0
      %2409 = vmatprep.subr.mxu0 0.0
      %2410 = vmatpush1.xpose.msra.mxu0 0.0
      %2411 = vmatprep.subr.mxu0 0.0
      %2412 = vmatpush1.xpose.msra.mxu0 0.0
      %2413 = vmatprep.subr.mxu0 0.0
      %2414 = vmatpush1.xpose.msra.mxu0 0.0
      %2415 = vmatprep.subr.mxu0 0.0
      %2416 = vmatpush1.xpose.msra.mxu0 0.0
      %2417 = vmatprep.subr.mxu0 0.0
      %2418 = vmatpush1.xpose.msra.mxu0 0.0
      %2419 = vmatprep.subr.mxu0 0.0
      %2420 = vmatpush1.xpose.msra.mxu0 0.0
      %2421 = vmatprep.subr.mxu0 0.0
      %2422 = vmatpush1.xpose.msra.mxu0 0.0
      %2423 = vmatprep.subr.mxu0 0.0
      %2424 = vmatpush1.xpose.msra.mxu0 0.0
      %2425 = vmatprep.subr.mxu0 0.0
      %2426 = vmatpush1.xpose.msra.mxu0 0.0
      %2427 = vmatprep.subr.mxu0 0.0
      %2428 = vmatpush1.xpose.msra.mxu0 0.0
      %2429 = vmatprep.mubr.f32.mxu0 0.0
      %2430 = vmatmul.mubr.f32.gmra.mrb[0].mxu0 %v2361
      %v2431 = vpop.f32.mrb[0].mxu0
      %v2432 = vadd.f32 0.0, %v2431
      %v2433 = vpop.f32.mrb[0].mxu0
      %2434 = vdwg.mxu0
      %2436 = vrot.lane.b32.xlu0 %v1460, 64
      %v2437 = vpop.permute.xlu0 %2436
      %v2439 = vsel %vm1208, %v1300, 0
      %v2441 = vsel %vm1208, %v2437, 0
      %2443 = vmatprep.subr.mxu0 0.0
      %2444 = vmatpush1.xpose.msra.mxu0 %v2441
      %2445 = vmatprep.subr.mxu0 0.0
      %2446 = vmatpush1.xpose.msra.mxu0 0.0
      %2447 = vmatprep.subr.mxu0 0.0
      %2448 = vmatpush1.xpose.msra.mxu0 0.0
      %2449 = vmatprep.subr.mxu0 0.0
      %2450 = vmatpush1.xpose.msra.mxu0 0.0
      %2451 = vmatprep.subr.mxu0 0.0
      %2452 = vmatpush1.xpose.msra.mxu0 0.0
      %2453 = vmatprep.subr.mxu0 0.0
      %2454 = vmatpush1.xpose.msra.mxu0 0.0
      %2455 = vmatprep.subr.mxu0 0.0
      %2456 = vmatpush1.xpose.msra.mxu0 0.0
      %2457 = vmatprep.subr.mxu0 0.0
      %2458 = vmatpush1.xpose.msra.mxu0 0.0
      %2459 = vmatprep.subr.mxu0 0.0
      %2460 = vmatpush1.xpose.msra.mxu0 0.0
      %2461 = vmatprep.subr.mxu0 0.0
      %2462 = vmatpush1.xpose.msra.mxu0 0.0
      %2463 = vmatprep.subr.mxu0 0.0
      %2464 = vmatpush1.xpose.msra.mxu0 0.0
      %2465 = vmatprep.subr.mxu0 0.0
      %2466 = vmatpush1.xpose.msra.mxu0 0.0
      %2467 = vmatprep.subr.mxu0 0.0
      %2468 = vmatpush1.xpose.msra.mxu0 0.0
      %2469 = vmatprep.subr.mxu0 0.0
      %2470 = vmatpush1.xpose.msra.mxu0 0.0
      %2471 = vmatprep.subr.mxu0 0.0
      %2472 = vmatpush1.xpose.msra.mxu0 0.0
      %2473 = vmatprep.subr.mxu0 0.0
      %2474 = vmatpush1.xpose.msra.mxu0 0.0
      %2475 = vmatprep.subr.mxu0 0.0
      %2476 = vmatpush1.xpose.msra.mxu0 0.0
      %2477 = vmatprep.subr.mxu0 0.0
      %2478 = vmatpush1.xpose.msra.mxu0 0.0
      %2479 = vmatprep.subr.mxu0 0.0
      %2480 = vmatpush1.xpose.msra.mxu0 0.0
      %2481 = vmatprep.subr.mxu0 0.0
      %2482 = vmatpush1.xpose.msra.mxu0 0.0
      %2483 = vmatprep.subr.mxu0 0.0
      %2484 = vmatpush1.xpose.msra.mxu0 0.0
      %2485 = vmatprep.subr.mxu0 0.0
      %2486 = vmatpush1.xpose.msra.mxu0 0.0
      %2487 = vmatprep.subr.mxu0 0.0
      %2488 = vmatpush1.xpose.msra.mxu0 0.0
      %2489 = vmatprep.subr.mxu0 0.0
      %2490 = vmatpush1.xpose.msra.mxu0 0.0
      %2491 = vmatprep.subr.mxu0 0.0
      %2492 = vmatpush1.xpose.msra.mxu0 0.0
      %2493 = vmatprep.subr.mxu0 0.0
      %2494 = vmatpush1.xpose.msra.mxu0 0.0
      %2495 = vmatprep.subr.mxu0 0.0
      %2496 = vmatpush1.xpose.msra.mxu0 0.0
      %2497 = vmatprep.subr.mxu0 0.0
      %2498 = vmatpush1.xpose.msra.mxu0 0.0
      %2499 = vmatprep.subr.mxu0 0.0
      %2500 = vmatpush1.xpose.msra.mxu0 0.0
      %2501 = vmatprep.subr.mxu0 0.0
      %2502 = vmatpush1.xpose.msra.mxu0 0.0
      %2503 = vmatprep.subr.mxu0 0.0
      %2504 = vmatpush1.xpose.msra.mxu0 0.0
      %2505 = vmatprep.subr.mxu0 0.0
      %2506 = vmatpush1.xpose.msra.mxu0 0.0
      %2507 = vmatprep.mubr.f32.mxu0 0.0
      %2508 = vmatmul.mubr.f32.gmra.mrb[0].mxu0 %v2439
      %v2509 = vpop.f32.mrb[0].mxu0
      %v2510 = vadd.f32 0.0, %v2509
      %v2511 = vpop.f32.mrb[0].mxu0
      %2512 = vdwg.mxu0
      %2514 = vrot.lane.b32.xlu0 %v1461, 64
      %v2515 = vpop.permute.xlu0 %2514
      %v2517 = vsel %vm1208, %v1301, 0
      %v2519 = vsel %vm1208, %v2515, 0
      %2521 = vmatprep.subr.mxu0 0.0
      %2522 = vmatpush1.xpose.msra.mxu0 %v2519
      %2523 = vmatprep.subr.mxu0 0.0
      %2524 = vmatpush1.xpose.msra.mxu0 0.0
      %2525 = vmatprep.subr.mxu0 0.0
      %2526 = vmatpush1.xpose.msra.mxu0 0.0
      %2527 = vmatprep.subr.mxu0 0.0
      %2528 = vmatpush1.xpose.msra.mxu0 0.0
      %2529 = vmatprep.subr.mxu0 0.0
      %2530 = vmatpush1.xpose.msra.mxu0 0.0
      %2531 = vmatprep.subr.mxu0 0.0
      %2532 = vmatpush1.xpose.msra.mxu0 0.0
      %2533 = vmatprep.subr.mxu0 0.0
      %2534 = vmatpush1.xpose.msra.mxu0 0.0
      %2535 = vmatprep.subr.mxu0 0.0
      %2536 = vmatpush1.xpose.msra.mxu0 0.0
      %2537 = vmatprep.subr.mxu0 0.0
      %2538 = vmatpush1.xpose.msra.mxu0 0.0
      %2539 = vmatprep.subr.mxu0 0.0
      %2540 = vmatpush1.xpose.msra.mxu0 0.0
      %2541 = vmatprep.subr.mxu0 0.0
      %2542 = vmatpush1.xpose.msra.mxu0 0.0
      %2543 = vmatprep.subr.mxu0 0.0
      %2544 = vmatpush1.xpose.msra.mxu0 0.0
      %2545 = vmatprep.subr.mxu0 0.0
      %2546 = vmatpush1.xpose.msra.mxu0 0.0
      %2547 = vmatprep.subr.mxu0 0.0
      %2548 = vmatpush1.xpose.msra.mxu0 0.0
      %2549 = vmatprep.subr.mxu0 0.0
      %2550 = vmatpush1.xpose.msra.mxu0 0.0
      %2551 = vmatprep.subr.mxu0 0.0
      %2552 = vmatpush1.xpose.msra.mxu0 0.0
      %2553 = vmatprep.subr.mxu0 0.0
      %2554 = vmatpush1.xpose.msra.mxu0 0.0
      %2555 = vmatprep.subr.mxu0 0.0
      %2556 = vmatpush1.xpose.msra.mxu0 0.0
      %2557 = vmatprep.subr.mxu0 0.0
      %2558 = vmatpush1.xpose.msra.mxu0 0.0
      %2559 = vmatprep.subr.mxu0 0.0
      %2560 = vmatpush1.xpose.msra.mxu0 0.0
      %2561 = vmatprep.subr.mxu0 0.0
      %2562 = vmatpush1.xpose.msra.mxu0 0.0
      %2563 = vmatprep.subr.mxu0 0.0
      %2564 = vmatpush1.xpose.msra.mxu0 0.0
      %2565 = vmatprep.subr.mxu0 0.0
      %2566 = vmatpush1.xpose.msra.mxu0 0.0
      %2567 = vmatprep.subr.mxu0 0.0
      %2568 = vmatpush1.xpose.msra.mxu0 0.0
      %2569 = vmatprep.subr.mxu0 0.0
      %2570 = vmatpush1.xpose.msra.mxu0 0.0
      %2571 = vmatprep.subr.mxu0 0.0
      %2572 = vmatpush1.xpose.msra.mxu0 0.0
      %2573 = vmatprep.subr.mxu0 0.0
      %2574 = vmatpush1.xpose.msra.mxu0 0.0
      %2575 = vmatprep.subr.mxu0 0.0
      %2576 = vmatpush1.xpose.msra.mxu0 0.0
      %2577 = vmatprep.subr.mxu0 0.0
      %2578 = vmatpush1.xpose.msra.mxu0 0.0
      %2579 = vmatprep.subr.mxu0 0.0
      %2580 = vmatpush1.xpose.msra.mxu0 0.0
      %2581 = vmatprep.subr.mxu0 0.0
      %2582 = vmatpush1.xpose.msra.mxu0 0.0
      %2583 = vmatprep.subr.mxu0 0.0
      %2584 = vmatpush1.xpose.msra.mxu0 0.0
      %2585 = vmatprep.mubr.f32.mxu0 0.0
      %2586 = vmatmul.mubr.f32.gmra.mrb[0].mxu0 %v2517
      %v2587 = vpop.f32.mrb[0].mxu0
      %v2588 = vadd.f32 0.0, %v2587
      %v2589 = vpop.f32.mrb[0].mxu0
      %2590 = vdwg.mxu0
      %2592 = vrot.lane.b32.xlu0 %v1462, 64
      %v2593 = vpop.permute.xlu0 %2592
      %v2595 = vsel %vm1208, %v1302, 0
      %v2597 = vsel %vm1208, %v2593, 0
      %2599 = vmatprep.subr.mxu0 0.0
      %2600 = vmatpush1.xpose.msra.mxu0 %v2597
      %2601 = vmatprep.subr.mxu0 0.0
      %2602 = vmatpush1.xpose.msra.mxu0 0.0
      %2603 = vmatprep.subr.mxu0 0.0
      %2604 = vmatpush1.xpose.msra.mxu0 0.0
      %2605 = vmatprep.subr.mxu0 0.0
      %2606 = vmatpush1.xpose.msra.mxu0 0.0
      %2607 = vmatprep.subr.mxu0 0.0
      %2608 = vmatpush1.xpose.msra.mxu0 0.0
      %2609 = vmatprep.subr.mxu0 0.0
      %2610 = vmatpush1.xpose.msra.mxu0 0.0
      %2611 = vmatprep.subr.mxu0 0.0
      %2612 = vmatpush1.xpose.msra.mxu0 0.0
      %2613 = vmatprep.subr.mxu0 0.0
      %2614 = vmatpush1.xpose.msra.mxu0 0.0
      %2615 = vmatprep.subr.mxu0 0.0
      %2616 = vmatpush1.xpose.msra.mxu0 0.0
      %2617 = vmatprep.subr.mxu0 0.0
      %2618 = vmatpush1.xpose.msra.mxu0 0.0
      %2619 = vmatprep.subr.mxu0 0.0
      %2620 = vmatpush1.xpose.msra.mxu0 0.0
      %2621 = vmatprep.subr.mxu0 0.0
      %2622 = vmatpush1.xpose.msra.mxu0 0.0
      %2623 = vmatprep.subr.mxu0 0.0
      %2624 = vmatpush1.xpose.msra.mxu0 0.0
      %2625 = vmatprep.subr.mxu0 0.0
      %2626 = vmatpush1.xpose.msra.mxu0 0.0
      %2627 = vmatprep.subr.mxu0 0.0
      %2628 = vmatpush1.xpose.msra.mxu0 0.0
      %2629 = vmatprep.subr.mxu0 0.0
      %2630 = vmatpush1.xpose.msra.mxu0 0.0
      %2631 = vmatprep.subr.mxu0 0.0
      %2632 = vmatpush1.xpose.msra.mxu0 0.0
      %2633 = vmatprep.subr.mxu0 0.0
      %2634 = vmatpush1.xpose.msra.mxu0 0.0
      %2635 = vmatprep.subr.mxu0 0.0
      %2636 = vmatpush1.xpose.msra.mxu0 0.0
      %2637 = vmatprep.subr.mxu0 0.0
      %2638 = vmatpush1.xpose.msra.mxu0 0.0
      %2639 = vmatprep.subr.mxu0 0.0
      %2640 = vmatpush1.xpose.msra.mxu0 0.0
      %2641 = vmatprep.subr.mxu0 0.0
      %2642 = vmatpush1.xpose.msra.mxu0 0.0
      %2643 = vmatprep.subr.mxu0 0.0
      %2644 = vmatpush1.xpose.msra.mxu0 0.0
      %2645 = vmatprep.subr.mxu0 0.0
      %2646 = vmatpush1.xpose.msra.mxu0 0.0
      %2647 = vmatprep.subr.mxu0 0.0
      %2648 = vmatpush1.xpose.msra.mxu0 0.0
      %2649 = vmatprep.subr.mxu0 0.0
      %2650 = vmatpush1.xpose.msra.mxu0 0.0
      %2651 = vmatprep.subr.mxu0 0.0
      %2652 = vmatpush1.xpose.msra.mxu0 0.0
      %2653 = vmatprep.subr.mxu0 0.0
      %2654 = vmatpush1.xpose.msra.mxu0 0.0
      %2655 = vmatprep.subr.mxu0 0.0
      %2656 = vmatpush1.xpose.msra.mxu0 0.0
      %2657 = vmatprep.subr.mxu0 0.0
      %2658 = vmatpush1.xpose.msra.mxu0 0.0
      %2659 = vmatprep.subr.mxu0 0.0
      %2660 = vmatpush1.xpose.msra.mxu0 0.0
      %2661 = vmatprep.subr.mxu0 0.0
      %2662 = vmatpush1.xpose.msra.mxu0 0.0
      %2663 = vmatprep.mubr.f32.mxu0 0.0
      %2664 = vmatmul.mubr.f32.gmra.mrb[0].mxu0 %v2595
      %v2665 = vpop.f32.mrb[0].mxu0
      %v2666 = vadd.f32 0.0, %v2665
      %v2667 = vpop.f32.mrb[0].mxu0
      %2668 = vdwg.mxu0
      %2670 = vrot.lane.b32.xlu0 %v1463, 64
      %v2671 = vpop.permute.xlu0 %2670
      %v2673 = vsel %vm1208, %v1303, 0
      %v2675 = vsel %vm1208, %v2671, 0
      %2677 = vmatprep.subr.mxu0 0.0
      %2678 = vmatpush1.xpose.msra.mxu0 %v2675
      %2679 = vmatprep.subr.mxu0 0.0
      %2680 = vmatpush1.xpose.msra.mxu0 0.0
      %2681 = vmatprep.subr.mxu0 0.0
      %2682 = vmatpush1.xpose.msra.mxu0 0.0
      %2683 = vmatprep.subr.mxu0 0.0
      %2684 = vmatpush1.xpose.msra.mxu0 0.0
      %2685 = vmatprep.subr.mxu0 0.0
      %2686 = vmatpush1.xpose.msra.mxu0 0.0
      %2687 = vmatprep.subr.mxu0 0.0
      %2688 = vmatpush1.xpose.msra.mxu0 0.0
      %2689 = vmatprep.subr.mxu0 0.0
      %2690 = vmatpush1.xpose.msra.mxu0 0.0
      %2691 = vmatprep.subr.mxu0 0.0
      %2692 = vmatpush1.xpose.msra.mxu0 0.0
      %2693 = vmatprep.subr.mxu0 0.0
      %2694 = vmatpush1.xpose.msra.mxu0 0.0
      %2695 = vmatprep.subr.mxu0 0.0
      %2696 = vmatpush1.xpose.msra.mxu0 0.0
      %2697 = vmatprep.subr.mxu0 0.0
      %2698 = vmatpush1.xpose.msra.mxu0 0.0
      %2699 = vmatprep.subr.mxu0 0.0
      %2700 = vmatpush1.xpose.msra.mxu0 0.0
      %2701 = vmatprep.subr.mxu0 0.0
      %2702 = vmatpush1.xpose.msra.mxu0 0.0
      %2703 = vmatprep.subr.mxu0 0.0
      %2704 = vmatpush1.xpose.msra.mxu0 0.0
      %2705 = vmatprep.subr.mxu0 0.0
      %2706 = vmatpush1.xpose.msra.mxu0 0.0
      %2707 = vmatprep.subr.mxu0 0.0
      %2708 = vmatpush1.xpose.msra.mxu0 0.0
      %2709 = vmatprep.subr.mxu0 0.0
      %2710 = vmatpush1.xpose.msra.mxu0 0.0
      %2711 = vmatprep.subr.mxu0 0.0
      %2712 = vmatpush1.xpose.msra.mxu0 0.0
      %2713 = vmatprep.subr.mxu0 0.0
      %2714 = vmatpush1.xpose.msra.mxu0 0.0
      %2715 = vmatprep.subr.mxu0 0.0
      %2716 = vmatpush1.xpose.msra.mxu0 0.0
      %2717 = vmatprep.subr.mxu0 0.0
      %2718 = vmatpush1.xpose.msra.mxu0 0.0
      %2719 = vmatprep.subr.mxu0 0.0
      %2720 = vmatpush1.xpose.msra.mxu0 0.0
      %2721 = vmatprep.subr.mxu0 0.0
      %2722 = vmatpush1.xpose.msra.mxu0 0.0
      %2723 = vmatprep.subr.mxu0 0.0
      %2724 = vmatpush1.xpose.msra.mxu0 0.0
      %2725 = vmatprep.subr.mxu0 0.0
      %2726 = vmatpush1.xpose.msra.mxu0 0.0
      %2727 = vmatprep.subr.mxu0 0.0
      %2728 = vmatpush1.xpose.msra.mxu0 0.0
      %2729 = vmatprep.subr.mxu0 0.0
      %2730 = vmatpush1.xpose.msra.mxu0 0.0
      %2731 = vmatprep.subr.mxu0 0.0
      %2732 = vmatpush1.xpose.msra.mxu0 0.0
      %2733 = vmatprep.subr.mxu0 0.0
      %2734 = vmatpush1.xpose.msra.mxu0 0.0
      %2735 = vmatprep.subr.mxu0 0.0
      %2736 = vmatpush1.xpose.msra.mxu0 0.0
      %2737 = vmatprep.subr.mxu0 0.0
      %2738 = vmatpush1.xpose.msra.mxu0 0.0
      %2739 = vmatprep.subr.mxu0 0.0
      %2740 = vmatpush1.xpose.msra.mxu0 0.0
      %2741 = vmatprep.mubr.f32.mxu0 0.0
      %2742 = vmatmul.mubr.f32.gmra.mrb[0].mxu0 %v2673
      %v2743 = vpop.f32.mrb[0].mxu0
      %v2744 = vadd.f32 0.0, %v2743
      %v2745 = vpop.f32.mrb[0].mxu0
      %2746 = vdwg.mxu0
      %2748 = vrot.lane.b32.xlu0 %v1464, 64
      %v2749 = vpop.permute.xlu0 %2748
      %v2751 = vsel %vm1208, %v1304, 0
      %v2753 = vsel %vm1208, %v2749, 0
      %2755 = vmatprep.subr.mxu0 0.0
      %2756 = vmatpush1.xpose.msra.mxu0 %v2753
      %2757 = vmatprep.subr.mxu0 0.0
      %2758 = vmatpush1.xpose.msra.mxu0 0.0
      %2759 = vmatprep.subr.mxu0 0.0
      %2760 = vmatpush1.xpose.msra.mxu0 0.0
      %2761 = vmatprep.subr.mxu0 0.0
      %2762 = vmatpush1.xpose.msra.mxu0 0.0
      %2763 = vmatprep.subr.mxu0 0.0
      %2764 = vmatpush1.xpose.msra.mxu0 0.0
      %2765 = vmatprep.subr.mxu0 0.0
      %2766 = vmatpush1.xpose.msra.mxu0 0.0
      %2767 = vmatprep.subr.mxu0 0.0
      %2768 = vmatpush1.xpose.msra.mxu0 0.0
      %2769 = vmatprep.subr.mxu0 0.0
      %2770 = vmatpush1.xpose.msra.mxu0 0.0
      %2771 = vmatprep.subr.mxu0 0.0
      %2772 = vmatpush1.xpose.msra.mxu0 0.0
      %2773 = vmatprep.subr.mxu0 0.0
      %2774 = vmatpush1.xpose.msra.mxu0 0.0
      %2775 = vmatprep.subr.mxu0 0.0
      %2776 = vmatpush1.xpose.msra.mxu0 0.0
      %2777 = vmatprep.subr.mxu0 0.0
      %2778 = vmatpush1.xpose.msra.mxu0 0.0
      %2779 = vmatprep.subr.mxu0 0.0
      %2780 = vmatpush1.xpose.msra.mxu0 0.0
      %2781 = vmatprep.subr.mxu0 0.0
      %2782 = vmatpush1.xpose.msra.mxu0 0.0
      %2783 = vmatprep.subr.mxu0 0.0
      %2784 = vmatpush1.xpose.msra.mxu0 0.0
      %2785 = vmatprep.subr.mxu0 0.0
      %2786 = vmatpush1.xpose.msra.mxu0 0.0
      %2787 = vmatprep.subr.mxu0 0.0
      %2788 = vmatpush1.xpose.msra.mxu0 0.0
      %2789 = vmatprep.subr.mxu0 0.0
      %2790 = vmatpush1.xpose.msra.mxu0 0.0
      %2791 = vmatprep.subr.mxu0 0.0
      %2792 = vmatpush1.xpose.msra.mxu0 0.0
      %2793 = vmatprep.subr.mxu0 0.0
      %2794 = vmatpush1.xpose.msra.mxu0 0.0
      %2795 = vmatprep.subr.mxu0 0.0
      %2796 = vmatpush1.xpose.msra.mxu0 0.0
      %2797 = vmatprep.subr.mxu0 0.0
      %2798 = vmatpush1.xpose.msra.mxu0 0.0
      %2799 = vmatprep.subr.mxu0 0.0
      %2800 = vmatpush1.xpose.msra.mxu0 0.0
      %2801 = vmatprep.subr.mxu0 0.0
      %2802 = vmatpush1.xpose.msra.mxu0 0.0
      %2803 = vmatprep.subr.mxu0 0.0
      %2804 = vmatpush1.xpose.msra.mxu0 0.0
      %2805 = vmatprep.subr.mxu0 0.0
      %2806 = vmatpush1.xpose.msra.mxu0 0.0
      %2807 = vmatprep.subr.mxu0 0.0
      %2808 = vmatpush1.xpose.msra.mxu0 0.0
      %2809 = vmatprep.subr.mxu0 0.0
      %2810 = vmatpush1.xpose.msra.mxu0 0.0
      %2811 = vmatprep.subr.mxu0 0.0
      %2812 = vmatpush1.xpose.msra.mxu0 0.0
      %2813 = vmatprep.subr.mxu0 0.0
      %2814 = vmatpush1.xpose.msra.mxu0 0.0
      %2815 = vmatprep.subr.mxu0 0.0
      %2816 = vmatpush1.xpose.msra.mxu0 0.0
      %2817 = vmatprep.subr.mxu0 0.0
      %2818 = vmatpush1.xpose.msra.mxu0 0.0
      %2819 = vmatprep.mubr.f32.mxu0 0.0
      %2820 = vmatmul.mubr.f32.gmra.mrb[0].mxu0 %v2751
      %v2821 = vpop.f32.mrb[0].mxu0
      %v2822 = vadd.f32 0.0, %v2821
      %v2823 = vpop.f32.mrb[0].mxu0
      %2824 = vdwg.mxu0
      %v2825 = vmul.f32 %v1652, 0.125
      %v2826 = vmul.f32 %v1730, 0.125
      %v2827 = vmul.f32 %v1808, 0.125
      %v2828 = vmul.f32 %v1886, 0.125
      %v2829 = vmul.f32 %v1964, 0.125
      %v2830 = vmul.f32 %v2042, 0.125
      %v2831 = vmul.f32 %v2120, 0.125
      %v2832 = vmul.f32 %v2198, 0.125
      %v2833 = vmul.f32 %v2276, 0.125
      %v2834 = vmul.f32 %v2354, 0.125
      %v2835 = vmul.f32 %v2432, 0.125
      %v2836 = vmul.f32 %v2510, 0.125
      %v2837 = vmul.f32 %v2588, 0.125
      %v2838 = vmul.f32 %v2666, 0.125
      %v2839 = vmul.f32 %v2744, 0.125
      %v2840 = vmul.f32 %v2822, 0.125
      %v2841 = vmul.f32 %v2825, 1.442695
      %v2842 = vpow.pop %v2841
      %v2843 = vmul.f32 %v2826, 1.442695
      %v2844 = vpow.pop %v2843
      %v2845 = vmul.f32 %v2827, 1.442695
      %v2846 = vpow.pop %v2845
      %v2847 = vmul.f32 %v2828, 1.442695
      %v2848 = vpow.pop %v2847
      %v2849 = vmul.f32 %v2829, 1.442695
      %v2850 = vpow.pop %v2849
      %v2851 = vmul.f32 %v2830, 1.442695
      %v2852 = vpow.pop %v2851
      %v2853 = vmul.f32 %v2831, 1.442695
      %v2854 = vpow.pop %v2853
      %v2855 = vmul.f32 %v2832, 1.442695
      %v2856 = vpow.pop %v2855
      %v2857 = vmul.f32 %v2833, 1.442695
      %v2858 = vpow.pop %v2857
      %v2859 = vmul.f32 %v2834, 1.442695
      %v2860 = vpow.pop %v2859
      %v2861 = vmul.f32 %v2835, 1.442695
      %v2862 = vpow.pop %v2861
      %v2863 = vmul.f32 %v2836, 1.442695
      %v2864 = vpow.pop %v2863
      %v2865 = vmul.f32 %v2837, 1.442695
      %v2866 = vpow.pop %v2865
      %v2867 = vmul.f32 %v2838, 1.442695
      %v2868 = vpow.pop %v2867
      %v2869 = vmul.f32 %v2839, 1.442695
      %v2870 = vpow.pop %v2869
      %v2871 = vmul.f32 %v2840, 1.442695
      %v2872 = vpow.pop %v2871
      %vm2873 = vcmask 64512
      %v2874 = vsel %vm2873, %v2842, 0.0
      %2875 = vadd.xlane.f32.xlu0 %v2874
      %v2876 = vpop.xlane.xlu0 %2875
      %v2877 = vsel %vm2873, %v2844, 0.0
      %2878 = vadd.xlane.f32.xlu0 %v2877
      %v2879 = vpop.xlane.xlu0 %2878
      %v2880 = vsel %vm2873, %v2846, 0.0
      %2881 = vadd.xlane.f32.xlu0 %v2880
      %v2882 = vpop.xlane.xlu0 %2881
      %v2883 = vsel %vm2873, %v2848, 0.0
      %2884 = vadd.xlane.f32.xlu0 %v2883
      %v2885 = vpop.xlane.xlu0 %2884
      %v2886 = vsel %vm2873, %v2850, 0.0
      %2887 = vadd.xlane.f32.xlu0 %v2886
      %v2888 = vpop.xlane.xlu0 %2887
      %v2889 = vsel %vm2873, %v2852, 0.0
      %2890 = vadd.xlane.f32.xlu0 %v2889
      %v2891 = vpop.xlane.xlu0 %2890
      %v2892 = vsel %vm2873, %v2854, 0.0
      %2893 = vadd.xlane.f32.xlu0 %v2892
      %v2894 = vpop.xlane.xlu0 %2893
      %v2895 = vsel %vm2873, %v2856, 0.0
      %2896 = vadd.xlane.f32.xlu0 %v2895
      %v2897 = vpop.xlane.xlu0 %2896
      %v2898 = vsel %vm2873, %v2858, 0.0
      %2899 = vadd.xlane.f32.xlu0 %v2898
      %v2900 = vpop.xlane.xlu0 %2899
      %v2901 = vsel %vm2873, %v2860, 0.0
      %2902 = vadd.xlane.f32.xlu0 %v2901
      %v2903 = vpop.xlane.xlu0 %2902
      %v2904 = vsel %vm2873, %v2862, 0.0
      %2905 = vadd.xlane.f32.xlu0 %v2904
      %v2906 = vpop.xlane.xlu0 %2905
      %v2907 = vsel %vm2873, %v2864, 0.0
      %2908 = vadd.xlane.f32.xlu0 %v2907
      %v2909 = vpop.xlane.xlu0 %2908
      %v2910 = vsel %vm2873, %v2866, 0.0
      %2911 = vadd.xlane.f32.xlu0 %v2910
      %v2912 = vpop.xlane.xlu0 %2911
      %v2913 = vsel %vm2873, %v2868, 0.0
      %2914 = vadd.xlane.f32.xlu0 %v2913
      %v2915 = vpop.xlane.xlu0 %2914
      %v2916 = vsel %vm2873, %v2870, 0.0
      %2917 = vadd.xlane.f32.xlu0 %v2916
      %v2918 = vpop.xlane.xlu0 %2917
      %v2919 = vsel %vm2873, %v2872, 0.0
      %2920 = vadd.xlane.f32.xlu0 %v2919
      %v2921 = vpop.xlane.xlu0 %2920
      %v2922 = vrcp.pop %v2876
      %v2923 = vrcp.pop %v2879
      %v2924 = vrcp.pop %v2882
      %v2925 = vrcp.pop %v2885
      %v2926 = vrcp.pop %v2888
      %v2927 = vrcp.pop %v2891
      %v2928 = vrcp.pop %v2894
      %v2929 = vrcp.pop %v2897
      %v2930 = vrcp.pop %v2900
      %v2931 = vrcp.pop %v2903
      %v2932 = vrcp.pop %v2906
      %v2933 = vrcp.pop %v2909
      %v2934 = vrcp.pop %v2912
      %v2935 = vrcp.pop %v2915
      %v2936 = vrcp.pop %v2918
      %v2937 = vrcp.pop %v2921
      %v2938 = vmul.f32 %v2842, %v2922
      %v2939 = vmul.f32 %v2844, %v2923
      %v2940 = vmul.f32 %v2846, %v2924
      %v2941 = vmul.f32 %v2848, %v2925
      %v2942 = vmul.f32 %v2850, %v2926
      %v2943 = vmul.f32 %v2852, %v2927
      %v2944 = vmul.f32 %v2854, %v2928
      %v2945 = vmul.f32 %v2856, %v2929
      %v2946 = vmul.f32 %v2858, %v2930
      %v2947 = vmul.f32 %v2860, %v2931
      %v2948 = vmul.f32 %v2862, %v2932
      %v2949 = vmul.f32 %v2864, %v2933
      %v2950 = vmul.f32 %v2866, %v2934
      %v2951 = vmul.f32 %v2868, %v2935
      %v2952 = vmul.f32 %v2870, %v2936
      %v2953 = vmul.f32 %v2872, %v2937
      %v2955 = vsel %vm2873, %v2938, 0
      %2957 = vmatprep.subr.mxu0 0.0
      %2958 = vmatpush1.msra.mxu0 %v1561
      %2959 = vmatprep.subr.mxu0 0.0
      %2960 = vmatpush1.msra.mxu0 0.0
      %2961 = vmatprep.subr.mxu0 0.0
      %2962 = vmatpush1.msra.mxu0 0.0
      %2963 = vmatprep.subr.mxu0 0.0
      %2964 = vmatpush1.msra.mxu0 0.0
      %2965 = vmatprep.subr.mxu0 0.0
      %2966 = vmatpush1.msra.mxu0 0.0
      %2967 = vmatprep.subr.mxu0 0.0
      %2968 = vmatpush1.msra.mxu0 0.0
      %2969 = vmatprep.subr.mxu0 0.0
      %2970 = vmatpush1.msra.mxu0 0.0
      %2971 = vmatprep.subr.mxu0 0.0
      %2972 = vmatpush1.msra.mxu0 0.0
      %2973 = vmatprep.subr.mxu0 0.0
      %2974 = vmatpush1.msra.mxu0 0.0
      %2975 = vmatprep.subr.mxu0 0.0
      %2976 = vmatpush1.msra.mxu0 0.0
      %2977 = vmatprep.subr.mxu0 0.0
      %2978 = vmatpush1.msra.mxu0 0.0
      %2979 = vmatprep.subr.mxu0 0.0
      %2980 = vmatpush1.msra.mxu0 0.0
      %2981 = vmatprep.subr.mxu0 0.0
      %2982 = vmatpush1.msra.mxu0 0.0
      %2983 = vmatprep.subr.mxu0 0.0
      %2984 = vmatpush1.msra.mxu0 0.0
      %2985 = vmatprep.subr.mxu0 0.0
      %2986 = vmatpush1.msra.mxu0 0.0
      %2987 = vmatprep.subr.mxu0 0.0
      %2988 = vmatpush1.msra.mxu0 0.0
      %2989 = vmatprep.subr.mxu0 0.0
      %2990 = vmatpush1.msra.mxu0 0.0
      %2991 = vmatprep.subr.mxu0 0.0
      %2992 = vmatpush1.msra.mxu0 0.0
      %2993 = vmatprep.subr.mxu0 0.0
      %2994 = vmatpush1.msra.mxu0 0.0
      %2995 = vmatprep.subr.mxu0 0.0
      %2996 = vmatpush1.msra.mxu0 0.0
      %2997 = vmatprep.subr.mxu0 0.0
      %2998 = vmatpush1.msra.mxu0 0.0
      %2999 = vmatprep.subr.mxu0 0.0
      %3000 = vmatpush1.msra.mxu0 0.0
      %3001 = vmatprep.subr.mxu0 0.0
      %3002 = vmatpush1.msra.mxu0 0.0
      %3003 = vmatprep.subr.mxu0 0.0
      %3004 = vmatpush1.msra.mxu0 0.0
      %3005 = vmatprep.subr.mxu0 0.0
      %3006 = vmatpush1.msra.mxu0 0.0
      %3007 = vmatprep.subr.mxu0 0.0
      %3008 = vmatpush1.msra.mxu0 0.0
      %3009 = vmatprep.subr.mxu0 0.0
      %3010 = vmatpush1.msra.mxu0 0.0
      %3011 = vmatprep.subr.mxu0 0.0
      %3012 = vmatpush1.msra.mxu0 0.0
      %3013 = vmatprep.subr.mxu0 0.0
      %3014 = vmatpush1.msra.mxu0 0.0
      %3015 = vmatprep.subr.mxu0 0.0
      %3016 = vmatpush1.msra.mxu0 0.0
      %3017 = vmatprep.subr.mxu0 0.0
      %3018 = vmatpush1.msra.mxu0 0.0
      %3019 = vmatprep.subr.mxu0 0.0
      %3020 = vmatpush1.msra.mxu0 0.0
      %3021 = vmatprep.mubr.f32.mxu0 0.0
      %3022 = vmatmul.mubr.f32.gmra.mrb[0].mxu0 %v2955
      %v3023 = vpop.f32.mrb[0].mxu0
      %v3024 = vadd.f32 0.0, %v3023
      %v3025 = vpop.f32.mrb[0].mxu0
      %3026 = vdwg.mxu0
      %v3028 = vsel %vm2873, %v2939, 0
      %3030 = vmatprep.subr.mxu0 0.0
      %3031 = vmatpush1.msra.mxu0 %v1562
      %3032 = vmatprep.subr.mxu0 0.0
      %3033 = vmatpush1.msra.mxu0 0.0
      %3034 = vmatprep.subr.mxu0 0.0
      %3035 = vmatpush1.msra.mxu0 0.0
      %3036 = vmatprep.subr.mxu0 0.0
      %3037 = vmatpush1.msra.mxu0 0.0
      %3038 = vmatprep.subr.mxu0 0.0
      %3039 = vmatpush1.msra.mxu0 0.0
      %3040 = vmatprep.subr.mxu0 0.0
      %3041 = vmatpush1.msra.mxu0 0.0
      %3042 = vmatprep.subr.mxu0 0.0
      %3043 = vmatpush1.msra.mxu0 0.0
      %3044 = vmatprep.subr.mxu0 0.0
      %3045 = vmatpush1.msra.mxu0 0.0
      %3046 = vmatprep.subr.mxu0 0.0
      %3047 = vmatpush1.msra.mxu0 0.0
      %3048 = vmatprep.subr.mxu0 0.0
      %3049 = vmatpush1.msra.mxu0 0.0
      %3050 = vmatprep.subr.mxu0 0.0
      %3051 = vmatpush1.msra.mxu0 0.0
      %3052 = vmatprep.subr.mxu0 0.0
      %3053 = vmatpush1.msra.mxu0 0.0
      %3054 = vmatprep.subr.mxu0 0.0
      %3055 = vmatpush1.msra.mxu0 0.0
      %3056 = vmatprep.subr.mxu0 0.0
      %3057 = vmatpush1.msra.mxu0 0.0
      %3058 = vmatprep.subr.mxu0 0.0
      %3059 = vmatpush1.msra.mxu0 0.0
      %3060 = vmatprep.subr.mxu0 0.0
      %3061 = vmatpush1.msra.mxu0 0.0
      %3062 = vmatprep.subr.mxu0 0.0
      %3063 = vmatpush1.msra.mxu0 0.0
      %3064 = vmatprep.subr.mxu0 0.0
      %3065 = vmatpush1.msra.mxu0 0.0
      %3066 = vmatprep.subr.mxu0 0.0
      %3067 = vmatpush1.msra.mxu0 0.0
      %3068 = vmatprep.subr.mxu0 0.0
      %3069 = vmatpush1.msra.mxu0 0.0
      %3070 = vmatprep.subr.mxu0 0.0
      %3071 = vmatpush1.msra.mxu0 0.0
      %3072 = vmatprep.subr.mxu0 0.0
      %3073 = vmatpush1.msra.mxu0 0.0
      %3074 = vmatprep.subr.mxu0 0.0
      %3075 = vmatpush1.msra.mxu0 0.0
      %3076 = vmatprep.subr.mxu0 0.0
      %3077 = vmatpush1.msra.mxu0 0.0
      %3078 = vmatprep.subr.mxu0 0.0
      %3079 = vmatpush1.msra.mxu0 0.0
      %3080 = vmatprep.subr.mxu0 0.0
      %3081 = vmatpush1.msra.mxu0 0.0
      %3082 = vmatprep.subr.mxu0 0.0
      %3083 = vmatpush1.msra.mxu0 0.0
      %3084 = vmatprep.subr.mxu0 0.0
      %3085 = vmatpush1.msra.mxu0 0.0
      %3086 = vmatprep.subr.mxu0 0.0
      %3087 = vmatpush1.msra.mxu0 0.0
      %3088 = vmatprep.subr.mxu0 0.0
      %3089 = vmatpush1.msra.mxu0 0.0
      %3090 = vmatprep.subr.mxu0 0.0
      %3091 = vmatpush1.msra.mxu0 0.0
      %3092 = vmatprep.subr.mxu0 0.0
      %3093 = vmatpush1.msra.mxu0 0.0
      %3094 = vmatprep.mubr.f32.mxu0 0.0
      %3095 = vmatmul.mubr.f32.gmra.mrb[0].mxu0 %v3028
      %v3096 = vpop.f32.mrb[0].mxu0
      %v3097 = vadd.f32 0.0, %v3096
      %v3098 = vpop.f32.mrb[0].mxu0
      %3099 = vdwg.mxu0
      %v3101 = vsel %vm2873, %v2940, 0
      %3103 = vmatprep.subr.mxu0 0.0
      %3104 = vmatpush1.msra.mxu0 %v1563
      %3105 = vmatprep.subr.mxu0 0.0
      %3106 = vmatpush1.msra.mxu0 0.0
      %3107 = vmatprep.subr.mxu0 0.0
      %3108 = vmatpush1.msra.mxu0 0.0
      %3109 = vmatprep.subr.mxu0 0.0
      %3110 = vmatpush1.msra.mxu0 0.0
      %3111 = vmatprep.subr.mxu0 0.0
      %3112 = vmatpush1.msra.mxu0 0.0
      %3113 = vmatprep.subr.mxu0 0.0
      %3114 = vmatpush1.msra.mxu0 0.0
      %3115 = vmatprep.subr.mxu0 0.0
      %3116 = vmatpush1.msra.mxu0 0.0
      %3117 = vmatprep.subr.mxu0 0.0
      %3118 = vmatpush1.msra.mxu0 0.0
      %3119 = vmatprep.subr.mxu0 0.0
      %3120 = vmatpush1.msra.mxu0 0.0
      %3121 = vmatprep.subr.mxu0 0.0
      %3122 = vmatpush1.msra.mxu0 0.0
      %3123 = vmatprep.subr.mxu0 0.0
      %3124 = vmatpush1.msra.mxu0 0.0
      %3125 = vmatprep.subr.mxu0 0.0
      %3126 = vmatpush1.msra.mxu0 0.0
      %3127 = vmatprep.subr.mxu0 0.0
      %3128 = vmatpush1.msra.mxu0 0.0
      %3129 = vmatprep.subr.mxu0 0.0
      %3130 = vmatpush1.msra.mxu0 0.0
      %3131 = vmatprep.subr.mxu0 0.0
      %3132 = vmatpush1.msra.mxu0 0.0
      %3133 = vmatprep.subr.mxu0 0.0
      %3134 = vmatpush1.msra.mxu0 0.0
      %3135 = vmatprep.subr.mxu0 0.0
      %3136 = vmatpush1.msra.mxu0 0.0
      %3137 = vmatprep.subr.mxu0 0.0
      %3138 = vmatpush1.msra.mxu0 0.0
      %3139 = vmatprep.subr.mxu0 0.0
      %3140 = vmatpush1.msra.mxu0 0.0
      %3141 = vmatprep.subr.mxu0 0.0
      %3142 = vmatpush1.msra.mxu0 0.0
      %3143 = vmatprep.subr.mxu0 0.0
      %3144 = vmatpush1.msra.mxu0 0.0
      %3145 = vmatprep.subr.mxu0 0.0
      %3146 = vmatpush1.msra.mxu0 0.0
      %3147 = vmatprep.subr.mxu0 0.0
      %3148 = vmatpush1.msra.mxu0 0.0
      %3149 = vmatprep.subr.mxu0 0.0
      %3150 = vmatpush1.msra.mxu0 0.0
      %3151 = vmatprep.subr.mxu0 0.0
      %3152 = vmatpush1.msra.mxu0 0.0
      %3153 = vmatprep.subr.mxu0 0.0
      %3154 = vmatpush1.msra.mxu0 0.0
      %3155 = vmatprep.subr.mxu0 0.0
      %3156 = vmatpush1.msra.mxu0 0.0
      %3157 = vmatprep.subr.mxu0 0.0
      %3158 = vmatpush1.msra.mxu0 0.0
      %3159 = vmatprep.subr.mxu0 0.0
      %3160 = vmatpush1.msra.mxu0 0.0
      %3161 = vmatprep.subr.mxu0 0.0
      %3162 = vmatpush1.msra.mxu0 0.0
      %3163 = vmatprep.subr.mxu0 0.0
      %3164 = vmatpush1.msra.mxu0 0.0
      %3165 = vmatprep.subr.mxu0 0.0
      %3166 = vmatpush1.msra.mxu0 0.0
      %3167 = vmatprep.mubr.f32.mxu0 0.0
      %3168 = vmatmul.mubr.f32.gmra.mrb[0].mxu0 %v3101
      %v3169 = vpop.f32.mrb[0].mxu0
      %v3170 = vadd.f32 0.0, %v3169
      %v3171 = vpop.f32.mrb[0].mxu0
      %3172 = vdwg.mxu0
      %v3174 = vsel %vm2873, %v2941, 0
      %3176 = vmatprep.subr.mxu0 0.0
      %3177 = vmatpush1.msra.mxu0 %v1564
      %3178 = vmatprep.subr.mxu0 0.0
      %3179 = vmatpush1.msra.mxu0 0.0
      %3180 = vmatprep.subr.mxu0 0.0
      %3181 = vmatpush1.msra.mxu0 0.0
      %3182 = vmatprep.subr.mxu0 0.0
      %3183 = vmatpush1.msra.mxu0 0.0
      %3184 = vmatprep.subr.mxu0 0.0
      %3185 = vmatpush1.msra.mxu0 0.0
      %3186 = vmatprep.subr.mxu0 0.0
      %3187 = vmatpush1.msra.mxu0 0.0
      %3188 = vmatprep.subr.mxu0 0.0
      %3189 = vmatpush1.msra.mxu0 0.0
      %3190 = vmatprep.subr.mxu0 0.0
      %3191 = vmatpush1.msra.mxu0 0.0
      %3192 = vmatprep.subr.mxu0 0.0
      %3193 = vmatpush1.msra.mxu0 0.0
      %3194 = vmatprep.subr.mxu0 0.0
      %3195 = vmatpush1.msra.mxu0 0.0
      %3196 = vmatprep.subr.mxu0 0.0
      %3197 = vmatpush1.msra.mxu0 0.0
      %3198 = vmatprep.subr.mxu0 0.0
      %3199 = vmatpush1.msra.mxu0 0.0
      %3200 = vmatprep.subr.mxu0 0.0
      %3201 = vmatpush1.msra.mxu0 0.0
      %3202 = vmatprep.subr.mxu0 0.0
      %3203 = vmatpush1.msra.mxu0 0.0
      %3204 = vmatprep.subr.mxu0 0.0
      %3205 = vmatpush1.msra.mxu0 0.0
      %3206 = vmatprep.subr.mxu0 0.0
      %3207 = vmatpush1.msra.mxu0 0.0
      %3208 = vmatprep.subr.mxu0 0.0
      %3209 = vmatpush1.msra.mxu0 0.0
      %3210 = vmatprep.subr.mxu0 0.0
      %3211 = vmatpush1.msra.mxu0 0.0
      %3212 = vmatprep.subr.mxu0 0.0
      %3213 = vmatpush1.msra.mxu0 0.0
      %3214 = vmatprep.subr.mxu0 0.0
      %3215 = vmatpush1.msra.mxu0 0.0
      %3216 = vmatprep.subr.mxu0 0.0
      %3217 = vmatpush1.msra.mxu0 0.0
      %3218 = vmatprep.subr.mxu0 0.0
      %3219 = vmatpush1.msra.mxu0 0.0
      %3220 = vmatprep.subr.mxu0 0.0
      %3221 = vmatpush1.msra.mxu0 0.0
      %3222 = vmatprep.subr.mxu0 0.0
      %3223 = vmatpush1.msra.mxu0 0.0
      %3224 = vmatprep.subr.mxu0 0.0
      %3225 = vmatpush1.msra.mxu0 0.0
      %3226 = vmatprep.subr.mxu0 0.0
      %3227 = vmatpush1.msra.mxu0 0.0
      %3228 = vmatprep.subr.mxu0 0.0
      %3229 = vmatpush1.msra.mxu0 0.0
      %3230 = vmatprep.subr.mxu0 0.0
      %3231 = vmatpush1.msra.mxu0 0.0
      %3232 = vmatprep.subr.mxu0 0.0
      %3233 = vmatpush1.msra.mxu0 0.0
      %3234 = vmatprep.subr.mxu0 0.0
      %3235 = vmatpush1.msra.mxu0 0.0
      %3236 = vmatprep.subr.mxu0 0.0
      %3237 = vmatpush1.msra.mxu0 0.0
      %3238 = vmatprep.subr.mxu0 0.0
      %3239 = vmatpush1.msra.mxu0 0.0
      %3240 = vmatprep.mubr.f32.mxu0 0.0
      %3241 = vmatmul.mubr.f32.gmra.mrb[0].mxu0 %v3174
      %v3242 = vpop.f32.mrb[0].mxu0
      %v3243 = vadd.f32 0.0, %v3242
      %v3244 = vpop.f32.mrb[0].mxu0
      %3245 = vdwg.mxu0
      %v3247 = vsel %vm2873, %v2942, 0
      %3249 = vmatprep.subr.mxu0 0.0
      %3250 = vmatpush1.msra.mxu0 %v1565
      %3251 = vmatprep.subr.mxu0 0.0
      %3252 = vmatpush1.msra.mxu0 0.0
      %3253 = vmatprep.subr.mxu0 0.0
      %3254 = vmatpush1.msra.mxu0 0.0
      %3255 = vmatprep.subr.mxu0 0.0
      %3256 = vmatpush1.msra.mxu0 0.0
      %3257 = vmatprep.subr.mxu0 0.0
      %3258 = vmatpush1.msra.mxu0 0.0
      %3259 = vmatprep.subr.mxu0 0.0
      %3260 = vmatpush1.msra.mxu0 0.0
      %3261 = vmatprep.subr.mxu0 0.0
      %3262 = vmatpush1.msra.mxu0 0.0
      %3263 = vmatprep.subr.mxu0 0.0
      %3264 = vmatpush1.msra.mxu0 0.0
      %3265 = vmatprep.subr.mxu0 0.0
      %3266 = vmatpush1.msra.mxu0 0.0
      %3267 = vmatprep.subr.mxu0 0.0
      %3268 = vmatpush1.msra.mxu0 0.0
      %3269 = vmatprep.subr.mxu0 0.0
      %3270 = vmatpush1.msra.mxu0 0.0
      %3271 = vmatprep.subr.mxu0 0.0
      %3272 = vmatpush1.msra.mxu0 0.0
      %3273 = vmatprep.subr.mxu0 0.0
      %3274 = vmatpush1.msra.mxu0 0.0
      %3275 = vmatprep.subr.mxu0 0.0
      %3276 = vmatpush1.msra.mxu0 0.0
      %3277 = vmatprep.subr.mxu0 0.0
      %3278 = vmatpush1.msra.mxu0 0.0
      %3279 = vmatprep.subr.mxu0 0.0
      %3280 = vmatpush1.msra.mxu0 0.0
      %3281 = vmatprep.subr.mxu0 0.0
      %3282 = vmatpush1.msra.mxu0 0.0
      %3283 = vmatprep.subr.mxu0 0.0
      %3284 = vmatpush1.msra.mxu0 0.0
      %3285 = vmatprep.subr.mxu0 0.0
      %3286 = vmatpush1.msra.mxu0 0.0
      %3287 = vmatprep.subr.mxu0 0.0
      %3288 = vmatpush1.msra.mxu0 0.0
      %3289 = vmatprep.subr.mxu0 0.0
      %3290 = vmatpush1.msra.mxu0 0.0
      %3291 = vmatprep.subr.mxu0 0.0
      %3292 = vmatpush1.msra.mxu0 0.0
      %3293 = vmatprep.subr.mxu0 0.0
      %3294 = vmatpush1.msra.mxu0 0.0
      %3295 = vmatprep.subr.mxu0 0.0
      %3296 = vmatpush1.msra.mxu0 0.0
      %3297 = vmatprep.subr.mxu0 0.0
      %3298 = vmatpush1.msra.mxu0 0.0
      %3299 = vmatprep.subr.mxu0 0.0
      %3300 = vmatpush1.msra.mxu0 0.0
      %3301 = vmatprep.subr.mxu0 0.0
      %3302 = vmatpush1.msra.mxu0 0.0
      %3303 = vmatprep.subr.mxu0 0.0
      %3304 = vmatpush1.msra.mxu0 0.0
      %3305 = vmatprep.subr.mxu0 0.0
      %3306 = vmatpush1.msra.mxu0 0.0
      %3307 = vmatprep.subr.mxu0 0.0
      %3308 = vmatpush1.msra.mxu0 0.0
      %3309 = vmatprep.subr.mxu0 0.0
      %3310 = vmatpush1.msra.mxu0 0.0
      %3311 = vmatprep.subr.mxu0 0.0
      %3312 = vmatpush1.msra.mxu0 0.0
      %3313 = vmatprep.mubr.f32.mxu0 0.0
      %3314 = vmatmul.mubr.f32.gmra.mrb[0].mxu0 %v3247
      %v3315 = vpop.f32.mrb[0].mxu0
      %v3316 = vadd.f32 0.0, %v3315
      %v3317 = vpop.f32.mrb[0].mxu0
      %3318 = vdwg.mxu0
      %v3320 = vsel %vm2873, %v2943, 0
      %3322 = vmatprep.subr.mxu0 0.0
      %3323 = vmatpush1.msra.mxu0 %v1566
      %3324 = vmatprep.subr.mxu0 0.0
      %3325 = vmatpush1.msra.mxu0 0.0
      %3326 = vmatprep.subr.mxu0 0.0
      %3327 = vmatpush1.msra.mxu0 0.0
      %3328 = vmatprep.subr.mxu0 0.0
      %3329 = vmatpush1.msra.mxu0 0.0
      %3330 = vmatprep.subr.mxu0 0.0
      %3331 = vmatpush1.msra.mxu0 0.0
      %3332 = vmatprep.subr.mxu0 0.0
      %3333 = vmatpush1.msra.mxu0 0.0
      %3334 = vmatprep.subr.mxu0 0.0
      %3335 = vmatpush1.msra.mxu0 0.0
      %3336 = vmatprep.subr.mxu0 0.0
      %3337 = vmatpush1.msra.mxu0 0.0
      %3338 = vmatprep.subr.mxu0 0.0
      %3339 = vmatpush1.msra.mxu0 0.0
      %3340 = vmatprep.subr.mxu0 0.0
      %3341 = vmatpush1.msra.mxu0 0.0
      %3342 = vmatprep.subr.mxu0 0.0
      %3343 = vmatpush1.msra.mxu0 0.0
      %3344 = vmatprep.subr.mxu0 0.0
      %3345 = vmatpush1.msra.mxu0 0.0
      %3346 = vmatprep.subr.mxu0 0.0
      %3347 = vmatpush1.msra.mxu0 0.0
      %3348 = vmatprep.subr.mxu0 0.0
      %3349 = vmatpush1.msra.mxu0 0.0
      %3350 = vmatprep.subr.mxu0 0.0
      %3351 = vmatpush1.msra.mxu0 0.0
      %3352 = vmatprep.subr.mxu0 0.0
      %3353 = vmatpush1.msra.mxu0 0.0
      %3354 = vmatprep.subr.mxu0 0.0
      %3355 = vmatpush1.msra.mxu0 0.0
      %3356 = vmatprep.subr.mxu0 0.0
      %3357 = vmatpush1.msra.mxu0 0.0
      %3358 = vmatprep.subr.mxu0 0.0
      %3359 = vmatpush1.msra.mxu0 0.0
      %3360 = vmatprep.subr.mxu0 0.0
      %3361 = vmatpush1.msra.mxu0 0.0
      %3362 = vmatprep.subr.mxu0 0.0
      %3363 = vmatpush1.msra.mxu0 0.0
      %3364 = vmatprep.subr.mxu0 0.0
      %3365 = vmatpush1.msra.mxu0 0.0
      %3366 = vmatprep.subr.mxu0 0.0
      %3367 = vmatpush1.msra.mxu0 0.0
      %3368 = vmatprep.subr.mxu0 0.0
      %3369 = vmatpush1.msra.mxu0 0.0
      %3370 = vmatprep.subr.mxu0 0.0
      %3371 = vmatpush1.msra.mxu0 0.0
      %3372 = vmatprep.subr.mxu0 0.0
      %3373 = vmatpush1.msra.mxu0 0.0
      %3374 = vmatprep.subr.mxu0 0.0
      %3375 = vmatpush1.msra.mxu0 0.0
      %3376 = vmatprep.subr.mxu0 0.0
      %3377 = vmatpush1.msra.mxu0 0.0
      %3378 = vmatprep.subr.mxu0 0.0
      %3379 = vmatpush1.msra.mxu0 0.0
      %3380 = vmatprep.subr.mxu0 0.0
      %3381 = vmatpush1.msra.mxu0 0.0
      %3382 = vmatprep.subr.mxu0 0.0
      %3383 = vmatpush1.msra.mxu0 0.0
      %3384 = vmatprep.subr.mxu0 0.0
      %3385 = vmatpush1.msra.mxu0 0.0
      %3386 = vmatprep.mubr.f32.mxu0 0.0
      %3387 = vmatmul.mubr.f32.gmra.mrb[0].mxu0 %v3320
      %v3388 = vpop.f32.mrb[0].mxu0
      %v3389 = vadd.f32 0.0, %v3388
      %v3390 = vpop.f32.mrb[0].mxu0
      %3391 = vdwg.mxu0
      %v3393 = vsel %vm2873, %v2944, 0
      %3395 = vmatprep.subr.mxu0 0.0
      %3396 = vmatpush1.msra.mxu0 %v1567
      %3397 = vmatprep.subr.mxu0 0.0
      %3398 = vmatpush1.msra.mxu0 0.0
      %3399 = vmatprep.subr.mxu0 0.0
      %3400 = vmatpush1.msra.mxu0 0.0
      %3401 = vmatprep.subr.mxu0 0.0
      %3402 = vmatpush1.msra.mxu0 0.0
      %3403 = vmatprep.subr.mxu0 0.0
      %3404 = vmatpush1.msra.mxu0 0.0
      %3405 = vmatprep.subr.mxu0 0.0
      %3406 = vmatpush1.msra.mxu0 0.0
      %3407 = vmatprep.subr.mxu0 0.0
      %3408 = vmatpush1.msra.mxu0 0.0
      %3409 = vmatprep.subr.mxu0 0.0
      %3410 = vmatpush1.msra.mxu0 0.0
      %3411 = vmatprep.subr.mxu0 0.0
      %3412 = vmatpush1.msra.mxu0 0.0
      %3413 = vmatprep.subr.mxu0 0.0
      %3414 = vmatpush1.msra.mxu0 0.0
      %3415 = vmatprep.subr.mxu0 0.0
      %3416 = vmatpush1.msra.mxu0 0.0
      %3417 = vmatprep.subr.mxu0 0.0
      %3418 = vmatpush1.msra.mxu0 0.0
      %3419 = vmatprep.subr.mxu0 0.0
      %3420 = vmatpush1.msra.mxu0 0.0
      %3421 = vmatprep.subr.mxu0 0.0
      %3422 = vmatpush1.msra.mxu0 0.0
      %3423 = vmatprep.subr.mxu0 0.0
      %3424 = vmatpush1.msra.mxu0 0.0
      %3425 = vmatprep.subr.mxu0 0.0
      %3426 = vmatpush1.msra.mxu0 0.0
      %3427 = vmatprep.subr.mxu0 0.0
      %3428 = vmatpush1.msra.mxu0 0.0
      %3429 = vmatprep.subr.mxu0 0.0
      %3430 = vmatpush1.msra.mxu0 0.0
      %3431 = vmatprep.subr.mxu0 0.0
      %3432 = vmatpush1.msra.mxu0 0.0
      %3433 = vmatprep.subr.mxu0 0.0
      %3434 = vmatpush1.msra.mxu0 0.0
      %3435 = vmatprep.subr.mxu0 0.0
      %3436 = vmatpush1.msra.mxu0 0.0
      %3437 = vmatprep.subr.mxu0 0.0
      %3438 = vmatpush1.msra.mxu0 0.0
      %3439 = vmatprep.subr.mxu0 0.0
      %3440 = vmatpush1.msra.mxu0 0.0
      %3441 = vmatprep.subr.mxu0 0.0
      %3442 = vmatpush1.msra.mxu0 0.0
      %3443 = vmatprep.subr.mxu0 0.0
      %3444 = vmatpush1.msra.mxu0 0.0
      %3445 = vmatprep.subr.mxu0 0.0
      %3446 = vmatpush1.msra.mxu0 0.0
      %3447 = vmatprep.subr.mxu0 0.0
      %3448 = vmatpush1.msra.mxu0 0.0
      %3449 = vmatprep.subr.mxu0 0.0
      %3450 = vmatpush1.msra.mxu0 0.0
      %3451 = vmatprep.subr.mxu0 0.0
      %3452 = vmatpush1.msra.mxu0 0.0
      %3453 = vmatprep.subr.mxu0 0.0
      %3454 = vmatpush1.msra.mxu0 0.0
      %3455 = vmatprep.subr.mxu0 0.0
      %3456 = vmatpush1.msra.mxu0 0.0
      %3457 = vmatprep.subr.mxu0 0.0
      %3458 = vmatpush1.msra.mxu0 0.0
      %3459 = vmatprep.mubr.f32.mxu0 0.0
      %3460 = vmatmul.mubr.f32.gmra.mrb[0].mxu0 %v3393
      %v3461 = vpop.f32.mrb[0].mxu0
      %v3462 = vadd.f32 0.0, %v3461
      %v3463 = vpop.f32.mrb[0].mxu0
      %3464 = vdwg.mxu0
      %v3466 = vsel %vm2873, %v2945, 0
      %3468 = vmatprep.subr.mxu0 0.0
      %3469 = vmatpush1.msra.mxu0 %v1568
      %3470 = vmatprep.subr.mxu0 0.0
      %3471 = vmatpush1.msra.mxu0 0.0
      %3472 = vmatprep.subr.mxu0 0.0
      %3473 = vmatpush1.msra.mxu0 0.0
      %3474 = vmatprep.subr.mxu0 0.0
      %3475 = vmatpush1.msra.mxu0 0.0
      %3476 = vmatprep.subr.mxu0 0.0
      %3477 = vmatpush1.msra.mxu0 0.0
      %3478 = vmatprep.subr.mxu0 0.0
      %3479 = vmatpush1.msra.mxu0 0.0
      %3480 = vmatprep.subr.mxu0 0.0
      %3481 = vmatpush1.msra.mxu0 0.0
      %3482 = vmatprep.subr.mxu0 0.0
      %3483 = vmatpush1.msra.mxu0 0.0
      %3484 = vmatprep.subr.mxu0 0.0
      %3485 = vmatpush1.msra.mxu0 0.0
      %3486 = vmatprep.subr.mxu0 0.0
      %3487 = vmatpush1.msra.mxu0 0.0
      %3488 = vmatprep.subr.mxu0 0.0
      %3489 = vmatpush1.msra.mxu0 0.0
      %3490 = vmatprep.subr.mxu0 0.0
      %3491 = vmatpush1.msra.mxu0 0.0
      %3492 = vmatprep.subr.mxu0 0.0
      %3493 = vmatpush1.msra.mxu0 0.0
      %3494 = vmatprep.subr.mxu0 0.0
      %3495 = vmatpush1.msra.mxu0 0.0
      %3496 = vmatprep.subr.mxu0 0.0
      %3497 = vmatpush1.msra.mxu0 0.0
      %3498 = vmatprep.subr.mxu0 0.0
      %3499 = vmatpush1.msra.mxu0 0.0
      %3500 = vmatprep.subr.mxu0 0.0
      %3501 = vmatpush1.msra.mxu0 0.0
      %3502 = vmatprep.subr.mxu0 0.0
      %3503 = vmatpush1.msra.mxu0 0.0
      %3504 = vmatprep.subr.mxu0 0.0
      %3505 = vmatpush1.msra.mxu0 0.0
      %3506 = vmatprep.subr.mxu0 0.0
      %3507 = vmatpush1.msra.mxu0 0.0
      %3508 = vmatprep.subr.mxu0 0.0
      %3509 = vmatpush1.msra.mxu0 0.0
      %3510 = vmatprep.subr.mxu0 0.0
      %3511 = vmatpush1.msra.mxu0 0.0
      %3512 = vmatprep.subr.mxu0 0.0
      %3513 = vmatpush1.msra.mxu0 0.0
      %3514 = vmatprep.subr.mxu0 0.0
      %3515 = vmatpush1.msra.mxu0 0.0
      %3516 = vmatprep.subr.mxu0 0.0
      %3517 = vmatpush1.msra.mxu0 0.0
      %3518 = vmatprep.subr.mxu0 0.0
      %3519 = vmatpush1.msra.mxu0 0.0
      %3520 = vmatprep.subr.mxu0 0.0
      %3521 = vmatpush1.msra.mxu0 0.0
      %3522 = vmatprep.subr.mxu0 0.0
      %3523 = vmatpush1.msra.mxu0 0.0
      %3524 = vmatprep.subr.mxu0 0.0
      %3525 = vmatpush1.msra.mxu0 0.0
      %3526 = vmatprep.subr.mxu0 0.0
      %3527 = vmatpush1.msra.mxu0 0.0
      %3528 = vmatprep.subr.mxu0 0.0
      %3529 = vmatpush1.msra.mxu0 0.0
      %3530 = vmatprep.subr.mxu0 0.0
      %3531 = vmatpush1.msra.mxu0 0.0
      %3532 = vmatprep.mubr.f32.mxu0 0.0
      %3533 = vmatmul.mubr.f32.gmra.mrb[0].mxu0 %v3466
      %v3534 = vpop.f32.mrb[0].mxu0
      %v3535 = vadd.f32 0.0, %v3534
      %v3536 = vpop.f32.mrb[0].mxu0
      %3537 = vdwg.mxu0
      %v3539 = vsel %vm2873, %v2946, 0
      %3541 = vmatprep.subr.mxu0 0.0
      %3542 = vmatpush1.msra.mxu0 %v1569
      %3543 = vmatprep.subr.mxu0 0.0
      %3544 = vmatpush1.msra.mxu0 0.0
      %3545 = vmatprep.subr.mxu0 0.0
      %3546 = vmatpush1.msra.mxu0 0.0
      %3547 = vmatprep.subr.mxu0 0.0
      %3548 = vmatpush1.msra.mxu0 0.0
      %3549 = vmatprep.subr.mxu0 0.0
      %3550 = vmatpush1.msra.mxu0 0.0
      %3551 = vmatprep.subr.mxu0 0.0
      %3552 = vmatpush1.msra.mxu0 0.0
      %3553 = vmatprep.subr.mxu0 0.0
      %3554 = vmatpush1.msra.mxu0 0.0
      %3555 = vmatprep.subr.mxu0 0.0
      %3556 = vmatpush1.msra.mxu0 0.0
      %3557 = vmatprep.subr.mxu0 0.0
      %3558 = vmatpush1.msra.mxu0 0.0
      %3559 = vmatprep.subr.mxu0 0.0
      %3560 = vmatpush1.msra.mxu0 0.0
      %3561 = vmatprep.subr.mxu0 0.0
      %3562 = vmatpush1.msra.mxu0 0.0
      %3563 = vmatprep.subr.mxu0 0.0
      %3564 = vmatpush1.msra.mxu0 0.0
      %3565 = vmatprep.subr.mxu0 0.0
      %3566 = vmatpush1.msra.mxu0 0.0
      %3567 = vmatprep.subr.mxu0 0.0
      %3568 = vmatpush1.msra.mxu0 0.0
      %3569 = vmatprep.subr.mxu0 0.0
      %3570 = vmatpush1.msra.mxu0 0.0
      %3571 = vmatprep.subr.mxu0 0.0
      %3572 = vmatpush1.msra.mxu0 0.0
      %3573 = vmatprep.subr.mxu0 0.0
      %3574 = vmatpush1.msra.mxu0 0.0
      %3575 = vmatprep.subr.mxu0 0.0
      %3576 = vmatpush1.msra.mxu0 0.0
      %3577 = vmatprep.subr.mxu0 0.0
      %3578 = vmatpush1.msra.mxu0 0.0
      %3579 = vmatprep.subr.mxu0 0.0
      %3580 = vmatpush1.msra.mxu0 0.0
      %3581 = vmatprep.subr.mxu0 0.0
      %3582 = vmatpush1.msra.mxu0 0.0
      %3583 = vmatprep.subr.mxu0 0.0
      %3584 = vmatpush1.msra.mxu0 0.0
      %3585 = vmatprep.subr.mxu0 0.0
      %3586 = vmatpush1.msra.mxu0 0.0
      %3587 = vmatprep.subr.mxu0 0.0
      %3588 = vmatpush1.msra.mxu0 0.0
      %3589 = vmatprep.subr.mxu0 0.0
      %3590 = vmatpush1.msra.mxu0 0.0
      %3591 = vmatprep.subr.mxu0 0.0
      %3592 = vmatpush1.msra.mxu0 0.0
      %3593 = vmatprep.subr.mxu0 0.0
      %3594 = vmatpush1.msra.mxu0 0.0
      %3595 = vmatprep.subr.mxu0 0.0
      %3596 = vmatpush1.msra.mxu0 0.0
      %3597 = vmatprep.subr.mxu0 0.0
      %3598 = vmatpush1.msra.mxu0 0.0
      %3599 = vmatprep.subr.mxu0 0.0
      %3600 = vmatpush1.msra.mxu0 0.0
      %3601 = vmatprep.subr.mxu0 0.0
      %3602 = vmatpush1.msra.mxu0 0.0
      %3603 = vmatprep.subr.mxu0 0.0
      %3604 = vmatpush1.msra.mxu0 0.0
      %3605 = vmatprep.mubr.f32.mxu0 0.0
      %3606 = vmatmul.mubr.f32.gmra.mrb[0].mxu0 %v3539
      %v3607 = vpop.f32.mrb[0].mxu0
      %v3608 = vadd.f32 0.0, %v3607
      %v3609 = vpop.f32.mrb[0].mxu0
      %3610 = vdwg.mxu0
      %v3612 = vsel %vm2873, %v2947, 0
      %3614 = vmatprep.subr.mxu0 0.0
      %3615 = vmatpush1.msra.mxu0 %v1570
      %3616 = vmatprep.subr.mxu0 0.0
      %3617 = vmatpush1.msra.mxu0 0.0
      %3618 = vmatprep.subr.mxu0 0.0
      %3619 = vmatpush1.msra.mxu0 0.0
      %3620 = vmatprep.subr.mxu0 0.0
      %3621 = vmatpush1.msra.mxu0 0.0
      %3622 = vmatprep.subr.mxu0 0.0
      %3623 = vmatpush1.msra.mxu0 0.0
      %3624 = vmatprep.subr.mxu0 0.0
      %3625 = vmatpush1.msra.mxu0 0.0
      %3626 = vmatprep.subr.mxu0 0.0
      %3627 = vmatpush1.msra.mxu0 0.0
      %3628 = vmatprep.subr.mxu0 0.0
      %3629 = vmatpush1.msra.mxu0 0.0
      %3630 = vmatprep.subr.mxu0 0.0
      %3631 = vmatpush1.msra.mxu0 0.0
      %3632 = vmatprep.subr.mxu0 0.0
      %3633 = vmatpush1.msra.mxu0 0.0
      %3634 = vmatprep.subr.mxu0 0.0
      %3635 = vmatpush1.msra.mxu0 0.0
      %3636 = vmatprep.subr.mxu0 0.0
      %3637 = vmatpush1.msra.mxu0 0.0
      %3638 = vmatprep.subr.mxu0 0.0
      %3639 = vmatpush1.msra.mxu0 0.0
      %3640 = vmatprep.subr.mxu0 0.0
      %3641 = vmatpush1.msra.mxu0 0.0
      %3642 = vmatprep.subr.mxu0 0.0
      %3643 = vmatpush1.msra.mxu0 0.0
      %3644 = vmatprep.subr.mxu0 0.0
      %3645 = vmatpush1.msra.mxu0 0.0
      %3646 = vmatprep.subr.mxu0 0.0
      %3647 = vmatpush1.msra.mxu0 0.0
      %3648 = vmatprep.subr.mxu0 0.0
      %3649 = vmatpush1.msra.mxu0 0.0
      %3650 = vmatprep.subr.mxu0 0.0
      %3651 = vmatpush1.msra.mxu0 0.0
      %3652 = vmatprep.subr.mxu0 0.0
      %3653 = vmatpush1.msra.mxu0 0.0
      %3654 = vmatprep.subr.mxu0 0.0
      %3655 = vmatpush1.msra.mxu0 0.0
      %3656 = vmatprep.subr.mxu0 0.0
      %3657 = vmatpush1.msra.mxu0 0.0
      %3658 = vmatprep.subr.mxu0 0.0
      %3659 = vmatpush1.msra.mxu0 0.0
      %3660 = vmatprep.subr.mxu0 0.0
      %3661 = vmatpush1.msra.mxu0 0.0
      %3662 = vmatprep.subr.mxu0 0.0
      %3663 = vmatpush1.msra.mxu0 0.0
      %3664 = vmatprep.subr.mxu0 0.0
      %3665 = vmatpush1.msra.mxu0 0.0
      %3666 = vmatprep.subr.mxu0 0.0
      %3667 = vmatpush1.msra.mxu0 0.0
      %3668 = vmatprep.subr.mxu0 0.0
      %3669 = vmatpush1.msra.mxu0 0.0
      %3670 = vmatprep.subr.mxu0 0.0
      %3671 = vmatpush1.msra.mxu0 0.0
      %3672 = vmatprep.subr.mxu0 0.0
      %3673 = vmatpush1.msra.mxu0 0.0
      %3674 = vmatprep.subr.mxu0 0.0
      %3675 = vmatpush1.msra.mxu0 0.0
      %3676 = vmatprep.subr.mxu0 0.0
      %3677 = vmatpush1.msra.mxu0 0.0
      %3678 = vmatprep.mubr.f32.mxu0 0.0
      %3679 = vmatmul.mubr.f32.gmra.mrb[0].mxu0 %v3612
      %v3680 = vpop.f32.mrb[0].mxu0
      %v3681 = vadd.f32 0.0, %v3680
      %v3682 = vpop.f32.mrb[0].mxu0
      %3683 = vdwg.mxu0
      %v3685 = vsel %vm2873, %v2948, 0
      %3687 = vmatprep.subr.mxu0 0.0
      %3688 = vmatpush1.msra.mxu0 %v1571
      %3689 = vmatprep.subr.mxu0 0.0
      %3690 = vmatpush1.msra.mxu0 0.0
      %3691 = vmatprep.subr.mxu0 0.0
      %3692 = vmatpush1.msra.mxu0 0.0
      %3693 = vmatprep.subr.mxu0 0.0
      %3694 = vmatpush1.msra.mxu0 0.0
      %3695 = vmatprep.subr.mxu0 0.0
      %3696 = vmatpush1.msra.mxu0 0.0
      %3697 = vmatprep.subr.mxu0 0.0
      %3698 = vmatpush1.msra.mxu0 0.0
      %3699 = vmatprep.subr.mxu0 0.0
      %3700 = vmatpush1.msra.mxu0 0.0
      %3701 = vmatprep.subr.mxu0 0.0
      %3702 = vmatpush1.msra.mxu0 0.0
      %3703 = vmatprep.subr.mxu0 0.0
      %3704 = vmatpush1.msra.mxu0 0.0
      %3705 = vmatprep.subr.mxu0 0.0
      %3706 = vmatpush1.msra.mxu0 0.0
      %3707 = vmatprep.subr.mxu0 0.0
      %3708 = vmatpush1.msra.mxu0 0.0
      %3709 = vmatprep.subr.mxu0 0.0
      %3710 = vmatpush1.msra.mxu0 0.0
      %3711 = vmatprep.subr.mxu0 0.0
      %3712 = vmatpush1.msra.mxu0 0.0
      %3713 = vmatprep.subr.mxu0 0.0
      %3714 = vmatpush1.msra.mxu0 0.0
      %3715 = vmatprep.subr.mxu0 0.0
      %3716 = vmatpush1.msra.mxu0 0.0
      %3717 = vmatprep.subr.mxu0 0.0
      %3718 = vmatpush1.msra.mxu0 0.0
      %3719 = vmatprep.subr.mxu0 0.0
      %3720 = vmatpush1.msra.mxu0 0.0
      %3721 = vmatprep.subr.mxu0 0.0
      %3722 = vmatpush1.msra.mxu0 0.0
      %3723 = vmatprep.subr.mxu0 0.0
      %3724 = vmatpush1.msra.mxu0 0.0
      %3725 = vmatprep.subr.mxu0 0.0
      %3726 = vmatpush1.msra.mxu0 0.0
      %3727 = vmatprep.subr.mxu0 0.0
      %3728 = vmatpush1.msra.mxu0 0.0
      %3729 = vmatprep.subr.mxu0 0.0
      %3730 = vmatpush1.msra.mxu0 0.0
      %3731 = vmatprep.subr.mxu0 0.0
      %3732 = vmatpush1.msra.mxu0 0.0
      %3733 = vmatprep.subr.mxu0 0.0
      %3734 = vmatpush1.msra.mxu0 0.0
      %3735 = vmatprep.subr.mxu0 0.0
      %3736 = vmatpush1.msra.mxu0 0.0
      %3737 = vmatprep.subr.mxu0 0.0
      %3738 = vmatpush1.msra.mxu0 0.0
      %3739 = vmatprep.subr.mxu0 0.0
      %3740 = vmatpush1.msra.mxu0 0.0
      %3741 = vmatprep.subr.mxu0 0.0
      %3742 = vmatpush1.msra.mxu0 0.0
      %3743 = vmatprep.subr.mxu0 0.0
      %3744 = vmatpush1.msra.mxu0 0.0
      %3745 = vmatprep.subr.mxu0 0.0
      %3746 = vmatpush1.msra.mxu0 0.0
      %3747 = vmatprep.subr.mxu0 0.0
      %3748 = vmatpush1.msra.mxu0 0.0
      %3749 = vmatprep.subr.mxu0 0.0
      %3750 = vmatpush1.msra.mxu0 0.0
      %3751 = vmatprep.mubr.f32.mxu0 0.0
      %3752 = vmatmul.mubr.f32.gmra.mrb[0].mxu0 %v3685
      %v3753 = vpop.f32.mrb[0].mxu0
      %v3754 = vadd.f32 0.0, %v3753
      %v3755 = vpop.f32.mrb[0].mxu0
      %3756 = vdwg.mxu0
      %v3758 = vsel %vm2873, %v2949, 0
      %3760 = vmatprep.subr.mxu0 0.0
      %3761 = vmatpush1.msra.mxu0 %v1572
      %3762 = vmatprep.subr.mxu0 0.0
      %3763 = vmatpush1.msra.mxu0 0.0
      %3764 = vmatprep.subr.mxu0 0.0
      %3765 = vmatpush1.msra.mxu0 0.0
      %3766 = vmatprep.subr.mxu0 0.0
      %3767 = vmatpush1.msra.mxu0 0.0
      %3768 = vmatprep.subr.mxu0 0.0
      %3769 = vmatpush1.msra.mxu0 0.0
      %3770 = vmatprep.subr.mxu0 0.0
      %3771 = vmatpush1.msra.mxu0 0.0
      %3772 = vmatprep.subr.mxu0 0.0
      %3773 = vmatpush1.msra.mxu0 0.0
      %3774 = vmatprep.subr.mxu0 0.0
      %3775 = vmatpush1.msra.mxu0 0.0
      %3776 = vmatprep.subr.mxu0 0.0
      %3777 = vmatpush1.msra.mxu0 0.0
      %3778 = vmatprep.subr.mxu0 0.0
      %3779 = vmatpush1.msra.mxu0 0.0
      %3780 = vmatprep.subr.mxu0 0.0
      %3781 = vmatpush1.msra.mxu0 0.0
      %3782 = vmatprep.subr.mxu0 0.0
      %3783 = vmatpush1.msra.mxu0 0.0
      %3784 = vmatprep.subr.mxu0 0.0
      %3785 = vmatpush1.msra.mxu0 0.0
      %3786 = vmatprep.subr.mxu0 0.0
      %3787 = vmatpush1.msra.mxu0 0.0
      %3788 = vmatprep.subr.mxu0 0.0
      %3789 = vmatpush1.msra.mxu0 0.0
      %3790 = vmatprep.subr.mxu0 0.0
      %3791 = vmatpush1.msra.mxu0 0.0
      %3792 = vmatprep.subr.mxu0 0.0
      %3793 = vmatpush1.msra.mxu0 0.0
      %3794 = vmatprep.subr.mxu0 0.0
      %3795 = vmatpush1.msra.mxu0 0.0
      %3796 = vmatprep.subr.mxu0 0.0
      %3797 = vmatpush1.msra.mxu0 0.0
      %3798 = vmatprep.subr.mxu0 0.0
      %3799 = vmatpush1.msra.mxu0 0.0
      %3800 = vmatprep.subr.mxu0 0.0
      %3801 = vmatpush1.msra.mxu0 0.0
      %3802 = vmatprep.subr.mxu0 0.0
      %3803 = vmatpush1.msra.mxu0 0.0
      %3804 = vmatprep.subr.mxu0 0.0
      %3805 = vmatpush1.msra.mxu0 0.0
      %3806 = vmatprep.subr.mxu0 0.0
      %3807 = vmatpush1.msra.mxu0 0.0
      %3808 = vmatprep.subr.mxu0 0.0
      %3809 = vmatpush1.msra.mxu0 0.0
      %3810 = vmatprep.subr.mxu0 0.0
      %3811 = vmatpush1.msra.mxu0 0.0
      %3812 = vmatprep.subr.mxu0 0.0
      %3813 = vmatpush1.msra.mxu0 0.0
      %3814 = vmatprep.subr.mxu0 0.0
      %3815 = vmatpush1.msra.mxu0 0.0
      %3816 = vmatprep.subr.mxu0 0.0
      %3817 = vmatpush1.msra.mxu0 0.0
      %3818 = vmatprep.subr.mxu0 0.0
      %3819 = vmatpush1.msra.mxu0 0.0
      %3820 = vmatprep.subr.mxu0 0.0
      %3821 = vmatpush1.msra.mxu0 0.0
      %3822 = vmatprep.subr.mxu0 0.0
      %3823 = vmatpush1.msra.mxu0 0.0
      %3824 = vmatprep.mubr.f32.mxu0 0.0
      %3825 = vmatmul.mubr.f32.gmra.mrb[0].mxu0 %v3758
      %v3826 = vpop.f32.mrb[0].mxu0
      %v3827 = vadd.f32 0.0, %v3826
      %v3828 = vpop.f32.mrb[0].mxu0
      %3829 = vdwg.mxu0
      %v3831 = vsel %vm2873, %v2950, 0
      %3833 = vmatprep.subr.mxu0 0.0
      %3834 = vmatpush1.msra.mxu0 %v1573
      %3835 = vmatprep.subr.mxu0 0.0
      %3836 = vmatpush1.msra.mxu0 0.0
      %3837 = vmatprep.subr.mxu0 0.0
      %3838 = vmatpush1.msra.mxu0 0.0
      %3839 = vmatprep.subr.mxu0 0.0
      %3840 = vmatpush1.msra.mxu0 0.0
      %3841 = vmatprep.subr.mxu0 0.0
      %3842 = vmatpush1.msra.mxu0 0.0
      %3843 = vmatprep.subr.mxu0 0.0
      %3844 = vmatpush1.msra.mxu0 0.0
      %3845 = vmatprep.subr.mxu0 0.0
      %3846 = vmatpush1.msra.mxu0 0.0
      %3847 = vmatprep.subr.mxu0 0.0
      %3848 = vmatpush1.msra.mxu0 0.0
      %3849 = vmatprep.subr.mxu0 0.0
      %3850 = vmatpush1.msra.mxu0 0.0
      %3851 = vmatprep.subr.mxu0 0.0
      %3852 = vmatpush1.msra.mxu0 0.0
      %3853 = vmatprep.subr.mxu0 0.0
      %3854 = vmatpush1.msra.mxu0 0.0
      %3855 = vmatprep.subr.mxu0 0.0
      %3856 = vmatpush1.msra.mxu0 0.0
      %3857 = vmatprep.subr.mxu0 0.0
      %3858 = vmatpush1.msra.mxu0 0.0
      %3859 = vmatprep.subr.mxu0 0.0
      %3860 = vmatpush1.msra.mxu0 0.0
      %3861 = vmatprep.subr.mxu0 0.0
      %3862 = vmatpush1.msra.mxu0 0.0
      %3863 = vmatprep.subr.mxu0 0.0
      %3864 = vmatpush1.msra.mxu0 0.0
      %3865 = vmatprep.subr.mxu0 0.0
      %3866 = vmatpush1.msra.mxu0 0.0
      %3867 = vmatprep.subr.mxu0 0.0
      %3868 = vmatpush1.msra.mxu0 0.0
      %3869 = vmatprep.subr.mxu0 0.0
      %3870 = vmatpush1.msra.mxu0 0.0
      %3871 = vmatprep.subr.mxu0 0.0
      %3872 = vmatpush1.msra.mxu0 0.0
      %3873 = vmatprep.subr.mxu0 0.0
      %3874 = vmatpush1.msra.mxu0 0.0
      %3875 = vmatprep.subr.mxu0 0.0
      %3876 = vmatpush1.msra.mxu0 0.0
      %3877 = vmatprep.subr.mxu0 0.0
      %3878 = vmatpush1.msra.mxu0 0.0
      %3879 = vmatprep.subr.mxu0 0.0
      %3880 = vmatpush1.msra.mxu0 0.0
      %3881 = vmatprep.subr.mxu0 0.0
      %3882 = vmatpush1.msra.mxu0 0.0
      %3883 = vmatprep.subr.mxu0 0.0
      %3884 = vmatpush1.msra.mxu0 0.0
      %3885 = vmatprep.subr.mxu0 0.0
      %3886 = vmatpush1.msra.mxu0 0.0
      %3887 = vmatprep.subr.mxu0 0.0
      %3888 = vmatpush1.msra.mxu0 0.0
      %3889 = vmatprep.subr.mxu0 0.0
      %3890 = vmatpush1.msra.mxu0 0.0
      %3891 = vmatprep.subr.mxu0 0.0
      %3892 = vmatpush1.msra.mxu0 0.0
      %3893 = vmatprep.subr.mxu0 0.0
      %3894 = vmatpush1.msra.mxu0 0.0
      %3895 = vmatprep.subr.mxu0 0.0
      %3896 = vmatpush1.msra.mxu0 0.0
      %3897 = vmatprep.mubr.f32.mxu0 0.0
      %3898 = vmatmul.mubr.f32.gmra.mrb[0].mxu0 %v3831
      %v3899 = vpop.f32.mrb[0].mxu0
      %v3900 = vadd.f32 0.0, %v3899
      %v3901 = vpop.f32.mrb[0].mxu0
      %3902 = vdwg.mxu0
      %v3904 = vsel %vm2873, %v2951, 0
      %3906 = vmatprep.subr.mxu0 0.0
      %3907 = vmatpush1.msra.mxu0 %v1574
      %3908 = vmatprep.subr.mxu0 0.0
      %3909 = vmatpush1.msra.mxu0 0.0
      %3910 = vmatprep.subr.mxu0 0.0
      %3911 = vmatpush1.msra.mxu0 0.0
      %3912 = vmatprep.subr.mxu0 0.0
      %3913 = vmatpush1.msra.mxu0 0.0
      %3914 = vmatprep.subr.mxu0 0.0
      %3915 = vmatpush1.msra.mxu0 0.0
      %3916 = vmatprep.subr.mxu0 0.0
      %3917 = vmatpush1.msra.mxu0 0.0
      %3918 = vmatprep.subr.mxu0 0.0
      %3919 = vmatpush1.msra.mxu0 0.0
      %3920 = vmatprep.subr.mxu0 0.0
      %3921 = vmatpush1.msra.mxu0 0.0
      %3922 = vmatprep.subr.mxu0 0.0
      %3923 = vmatpush1.msra.mxu0 0.0
      %3924 = vmatprep.subr.mxu0 0.0
      %3925 = vmatpush1.msra.mxu0 0.0
      %3926 = vmatprep.subr.mxu0 0.0
      %3927 = vmatpush1.msra.mxu0 0.0
      %3928 = vmatprep.subr.mxu0 0.0
      %3929 = vmatpush1.msra.mxu0 0.0
      %3930 = vmatprep.subr.mxu0 0.0
      %3931 = vmatpush1.msra.mxu0 0.0
      %3932 = vmatprep.subr.mxu0 0.0
      %3933 = vmatpush1.msra.mxu0 0.0
      %3934 = vmatprep.subr.mxu0 0.0
      %3935 = vmatpush1.msra.mxu0 0.0
      %3936 = vmatprep.subr.mxu0 0.0
      %3937 = vmatpush1.msra.mxu0 0.0
      %3938 = vmatprep.subr.mxu0 0.0
      %3939 = vmatpush1.msra.mxu0 0.0
      %3940 = vmatprep.subr.mxu0 0.0
      %3941 = vmatpush1.msra.mxu0 0.0
      %3942 = vmatprep.subr.mxu0 0.0
      %3943 = vmatpush1.msra.mxu0 0.0
      %3944 = vmatprep.subr.mxu0 0.0
      %3945 = vmatpush1.msra.mxu0 0.0
      %3946 = vmatprep.subr.mxu0 0.0
      %3947 = vmatpush1.msra.mxu0 0.0
      %3948 = vmatprep.subr.mxu0 0.0
      %3949 = vmatpush1.msra.mxu0 0.0
      %3950 = vmatprep.subr.mxu0 0.0
      %3951 = vmatpush1.msra.mxu0 0.0
      %3952 = vmatprep.subr.mxu0 0.0
      %3953 = vmatpush1.msra.mxu0 0.0
      %3954 = vmatprep.subr.mxu0 0.0
      %3955 = vmatpush1.msra.mxu0 0.0
      %3956 = vmatprep.subr.mxu0 0.0
      %3957 = vmatpush1.msra.mxu0 0.0
      %3958 = vmatprep.subr.mxu0 0.0
      %3959 = vmatpush1.msra.mxu0 0.0
      %3960 = vmatprep.subr.mxu0 0.0
      %3961 = vmatpush1.msra.mxu0 0.0
      %3962 = vmatprep.subr.mxu0 0.0
      %3963 = vmatpush1.msra.mxu0 0.0
      %3964 = vmatprep.subr.mxu0 0.0
      %3965 = vmatpush1.msra.mxu0 0.0
      %3966 = vmatprep.subr.mxu0 0.0
      %3967 = vmatpush1.msra.mxu0 0.0
      %3968 = vmatprep.subr.mxu0 0.0
      %3969 = vmatpush1.msra.mxu0 0.0
      %3970 = vmatprep.mubr.f32.mxu0 0.0
      %3971 = vmatmul.mubr.f32.gmra.mrb[0].mxu0 %v3904
      %v3972 = vpop.f32.mrb[0].mxu0
      %v3973 = vadd.f32 0.0, %v3972
      %v3974 = vpop.f32.mrb[0].mxu0
      %3975 = vdwg.mxu0
      %v3977 = vsel %vm2873, %v2952, 0
      %3979 = vmatprep.subr.mxu0 0.0
      %3980 = vmatpush1.msra.mxu0 %v1575
      %3981 = vmatprep.subr.mxu0 0.0
      %3982 = vmatpush1.msra.mxu0 0.0
      %3983 = vmatprep.subr.mxu0 0.0
      %3984 = vmatpush1.msra.mxu0 0.0
      %3985 = vmatprep.subr.mxu0 0.0
      %3986 = vmatpush1.msra.mxu0 0.0
      %3987 = vmatprep.subr.mxu0 0.0
      %3988 = vmatpush1.msra.mxu0 0.0
      %3989 = vmatprep.subr.mxu0 0.0
      %3990 = vmatpush1.msra.mxu0 0.0
      %3991 = vmatprep.subr.mxu0 0.0
      %3992 = vmatpush1.msra.mxu0 0.0
      %3993 = vmatprep.subr.mxu0 0.0
      %3994 = vmatpush1.msra.mxu0 0.0
      %3995 = vmatprep.subr.mxu0 0.0
      %3996 = vmatpush1.msra.mxu0 0.0
      %3997 = vmatprep.subr.mxu0 0.0
      %3998 = vmatpush1.msra.mxu0 0.0
      %3999 = vmatprep.subr.mxu0 0.0
      %4000 = vmatpush1.msra.mxu0 0.0
      %4001 = vmatprep.subr.mxu0 0.0
      %4002 = vmatpush1.msra.mxu0 0.0
      %4003 = vmatprep.subr.mxu0 0.0
      %4004 = vmatpush1.msra.mxu0 0.0
      %4005 = vmatprep.subr.mxu0 0.0
      %4006 = vmatpush1.msra.mxu0 0.0
      %4007 = vmatprep.subr.mxu0 0.0
      %4008 = vmatpush1.msra.mxu0 0.0
      %4009 = vmatprep.subr.mxu0 0.0
      %4010 = vmatpush1.msra.mxu0 0.0
      %4011 = vmatprep.subr.mxu0 0.0
      %4012 = vmatpush1.msra.mxu0 0.0
      %4013 = vmatprep.subr.mxu0 0.0
      %4014 = vmatpush1.msra.mxu0 0.0
      %4015 = vmatprep.subr.mxu0 0.0
      %4016 = vmatpush1.msra.mxu0 0.0
      %4017 = vmatprep.subr.mxu0 0.0
      %4018 = vmatpush1.msra.mxu0 0.0
      %4019 = vmatprep.subr.mxu0 0.0
      %4020 = vmatpush1.msra.mxu0 0.0
      %4021 = vmatprep.subr.mxu0 0.0
      %4022 = vmatpush1.msra.mxu0 0.0
      %4023 = vmatprep.subr.mxu0 0.0
      %4024 = vmatpush1.msra.mxu0 0.0
      %4025 = vmatprep.subr.mxu0 0.0
      %4026 = vmatpush1.msra.mxu0 0.0
      %4027 = vmatprep.subr.mxu0 0.0
      %4028 = vmatpush1.msra.mxu0 0.0
      %4029 = vmatprep.subr.mxu0 0.0
      %4030 = vmatpush1.msra.mxu0 0.0
      %4031 = vmatprep.subr.mxu0 0.0
      %4032 = vmatpush1.msra.mxu0 0.0
      %4033 = vmatprep.subr.mxu0 0.0
      %4034 = vmatpush1.msra.mxu0 0.0
      %4035 = vmatprep.subr.mxu0 0.0
      %4036 = vmatpush1.msra.mxu0 0.0
      %4037 = vmatprep.subr.mxu0 0.0
      %4038 = vmatpush1.msra.mxu0 0.0
      %4039 = vmatprep.subr.mxu0 0.0
      %4040 = vmatpush1.msra.mxu0 0.0
      %4041 = vmatprep.subr.mxu0 0.0
      %4042 = vmatpush1.msra.mxu0 0.0
      %4043 = vmatprep.mubr.f32.mxu0 0.0
      %4044 = vmatmul.mubr.f32.gmra.mrb[0].mxu0 %v3977
      %v4045 = vpop.f32.mrb[0].mxu0
      %v4046 = vadd.f32 0.0, %v4045
      %v4047 = vpop.f32.mrb[0].mxu0
      %4048 = vdwg.mxu0
      %v4050 = vsel %vm2873, %v2953, 0
      %4052 = vmatprep.subr.mxu0 0.0
      %4053 = vmatpush1.msra.mxu0 %v1576
      %4054 = vmatprep.subr.mxu0 0.0
      %4055 = vmatpush1.msra.mxu0 0.0
      %4056 = vmatprep.subr.mxu0 0.0
      %4057 = vmatpush1.msra.mxu0 0.0
      %4058 = vmatprep.subr.mxu0 0.0
      %4059 = vmatpush1.msra.mxu0 0.0
      %4060 = vmatprep.subr.mxu0 0.0
      %4061 = vmatpush1.msra.mxu0 0.0
      %4062 = vmatprep.subr.mxu0 0.0
      %4063 = vmatpush1.msra.mxu0 0.0
      %4064 = vmatprep.subr.mxu0 0.0
      %4065 = vmatpush1.msra.mxu0 0.0
      %4066 = vmatprep.subr.mxu0 0.0
      %4067 = vmatpush1.msra.mxu0 0.0
      %4068 = vmatprep.subr.mxu0 0.0
      %4069 = vmatpush1.msra.mxu0 0.0
      %4070 = vmatprep.subr.mxu0 0.0
      %4071 = vmatpush1.msra.mxu0 0.0
      %4072 = vmatprep.subr.mxu0 0.0
      %4073 = vmatpush1.msra.mxu0 0.0
      %4074 = vmatprep.subr.mxu0 0.0
      %4075 = vmatpush1.msra.mxu0 0.0
      %4076 = vmatprep.subr.mxu0 0.0
      %4077 = vmatpush1.msra.mxu0 0.0
      %4078 = vmatprep.subr.mxu0 0.0
      %4079 = vmatpush1.msra.mxu0 0.0
      %4080 = vmatprep.subr.mxu0 0.0
      %4081 = vmatpush1.msra.mxu0 0.0
      %4082 = vmatprep.subr.mxu0 0.0
      %4083 = vmatpush1.msra.mxu0 0.0
      %4084 = vmatprep.subr.mxu0 0.0
      %4085 = vmatpush1.msra.mxu0 0.0
      %4086 = vmatprep.subr.mxu0 0.0
      %4087 = vmatpush1.msra.mxu0 0.0
      %4088 = vmatprep.subr.mxu0 0.0
      %4089 = vmatpush1.msra.mxu0 0.0
      %4090 = vmatprep.subr.mxu0 0.0
      %4091 = vmatpush1.msra.mxu0 0.0
      %4092 = vmatprep.subr.mxu0 0.0
      %4093 = vmatpush1.msra.mxu0 0.0
      %4094 = vmatprep.subr.mxu0 0.0
      %4095 = vmatpush1.msra.mxu0 0.0
      %4096 = vmatprep.subr.mxu0 0.0
      %4097 = vmatpush1.msra.mxu0 0.0
      %4098 = vmatprep.subr.mxu0 0.0
      %4099 = vmatpush1.msra.mxu0 0.0
      %4100 = vmatprep.subr.mxu0 0.0
      %4101 = vmatpush1.msra.mxu0 0.0
      %4102 = vmatprep.subr.mxu0 0.0
      %4103 = vmatpush1.msra.mxu0 0.0
      %4104 = vmatprep.subr.mxu0 0.0
      %4105 = vmatpush1.msra.mxu0 0.0
      %4106 = vmatprep.subr.mxu0 0.0
      %4107 = vmatpush1.msra.mxu0 0.0
      %4108 = vmatprep.subr.mxu0 0.0
      %4109 = vmatpush1.msra.mxu0 0.0
      %4110 = vmatprep.subr.mxu0 0.0
      %4111 = vmatpush1.msra.mxu0 0.0
      %4112 = vmatprep.subr.mxu0 0.0
      %4113 = vmatpush1.msra.mxu0 0.0
      %4114 = vmatprep.subr.mxu0 0.0
      %4115 = vmatpush1.msra.mxu0 0.0
      %4116 = vmatprep.mubr.f32.mxu0 0.0
      %4117 = vmatmul.mubr.f32.gmra.mrb[0].mxu0 %v4050
      %v4118 = vpop.f32.mrb[0].mxu0
      %v4119 = vadd.f32 0.0, %v4118
      %v4120 = vpop.f32.mrb[0].mxu0
      %4121 = vdwg.mxu0
      %v4122 = vld [vmem:[%s8] sm:$0xff]
      %v4123 = vld [vmem:[%s8 + $0x8] sm:$0xff]
      %v4124 = vld [vmem:[%s8 + $0x10] sm:$0xff]
      %v4125 = vld [vmem:[%s8 + $0x18] sm:$0xff]
      %v4126 = vld [vmem:[%s8 + $0x20] sm:$0xff]
      %v4127 = vld [vmem:[%s8 + $0x28] sm:$0xff]
      %v4128 = vld [vmem:[%s8 + $0x30] sm:$0xff]
      %v4129 = vld [vmem:[%s8 + $0x38] sm:$0xff]
      %v4130 = vld [vmem:[%s9] sm:$0x1]
      %v4132 = vlaneseq
      %v4133 = vshrl.u32 %v4132, 7
      %v4134 = vsub.s32 0, %v4133
      %v4135 = vrot.slane %v4130, %v4134
      %v4138 = vsel %vm1208, %v3024, 0
      %v4141 = vsel %vm1208, %v3097, 0
      %v4144 = vsel %vm1208, %v3170, 0
      %v4147 = vsel %vm1208, %v3243, 0
      %v4150 = vsel %vm1208, %v3316, 0
      %v4153 = vsel %vm1208, %v3389, 0
      %v4156 = vsel %vm1208, %v3462, 0
      %v4159 = vsel %vm1208, %v3535, 0
      %v4162 = vsel %vm1208, %v3608, 0
      %v4165 = vsel %vm1208, %v3681, 0
      %v4168 = vsel %vm1208, %v3754, 0
      %v4171 = vsel %vm1208, %v3827, 0
      %v4174 = vsel %vm1208, %v3900, 0
      %v4177 = vsel %vm1208, %v3973, 0
      %v4180 = vsel %vm1208, %v4046, 0
      %v4183 = vsel %vm1208, %v4119, 0
      %4185 = vmatprep.subr.mxu0 0.0
      %4186 = vmatpush1.msra.mxu0 %v4122
      %4187 = vmatprep.subr.mxu0 0.0
      %4188 = vmatpush1.msra.mxu0 %v4123
      %4189 = vmatprep.subr.mxu0 0.0
      %4190 = vmatpush1.msra.mxu0 %v4124
      %4191 = vmatprep.subr.mxu0 0.0
      %4192 = vmatpush1.msra.mxu0 %v4125
      %4193 = vmatprep.subr.mxu0 0.0
      %4194 = vmatpush1.msra.mxu0 %v4126
      %4195 = vmatprep.subr.mxu0 0.0
      %4196 = vmatpush1.msra.mxu0 %v4127
      %4197 = vmatprep.subr.mxu0 0.0
      %4198 = vmatpush1.msra.mxu0 %v4128
      %4199 = vmatprep.subr.mxu0 0.0
      %4200 = vmatpush1.msra.mxu0 %v4129
      %4201 = vmatprep.subr.mxu0 0.0
      %4202 = vmatpush1.msra.mxu0 0.0
      %4203 = vmatprep.subr.mxu0 0.0
      %4204 = vmatpush1.msra.mxu0 0.0
      %4205 = vmatprep.subr.mxu0 0.0
      %4206 = vmatpush1.msra.mxu0 0.0
      %4207 = vmatprep.subr.mxu0 0.0
      %4208 = vmatpush1.msra.mxu0 0.0
      %4209 = vmatprep.subr.mxu0 0.0
      %4210 = vmatpush1.msra.mxu0 0.0
      %4211 = vmatprep.subr.mxu0 0.0
      %4212 = vmatpush1.msra.mxu0 0.0
      %4213 = vmatprep.subr.mxu0 0.0
      %4214 = vmatpush1.msra.mxu0 0.0
      %4215 = vmatprep.subr.mxu0 0.0
      %4216 = vmatpush1.msra.mxu0 0.0
      %4217 = vmatprep.subr.mxu0 0.0
      %4218 = vmatpush1.msra.mxu0 0.0
      %4219 = vmatprep.subr.mxu0 0.0
      %4220 = vmatpush1.msra.mxu0 0.0
      %4221 = vmatprep.subr.mxu0 0.0
      %4222 = vmatpush1.msra.mxu0 0.0
      %4223 = vmatprep.subr.mxu0 0.0
      %4224 = vmatpush1.msra.mxu0 0.0
      %4225 = vmatprep.subr.mxu0 0.0
      %4226 = vmatpush1.msra.mxu0 0.0
      %4227 = vmatprep.subr.mxu0 0.0
      %4228 = vmatpush1.msra.mxu0 0.0
      %4229 = vmatprep.subr.mxu0 0.0
      %4230 = vmatpush1.msra.mxu0 0.0
      %4231 = vmatprep.subr.mxu0 0.0
      %4232 = vmatpush1.msra.mxu0 0.0
      %4233 = vmatprep.subr.mxu0 0.0
      %4234 = vmatpush1.msra.mxu0 0.0
      %4235 = vmatprep.subr.mxu0 0.0
      %4236 = vmatpush1.msra.mxu0 0.0
      %4237 = vmatprep.subr.mxu0 0.0
      %4238 = vmatpush1.msra.mxu0 0.0
      %4239 = vmatprep.subr.mxu0 0.0
      %4240 = vmatpush1.msra.mxu0 0.0
      %4241 = vmatprep.subr.mxu0 0.0
      %4242 = vmatpush1.msra.mxu0 0.0
      %4243 = vmatprep.subr.mxu0 0.0
      %4244 = vmatpush1.msra.mxu0 0.0
      %4245 = vmatprep.subr.mxu0 0.0
      %4246 = vmatpush1.msra.mxu0 0.0
      %4247 = vmatprep.subr.mxu0 0.0
      %4248 = vmatpush1.msra.mxu0 0.0
      %4249 = vmatprep.mubr.f32.mxu0 0.0
      %4250 = vmatmul.mubr.f32.gmra.mrb[0].mxu0 %v4138
      %v4251 = vpop.f32.mrb[0].mxu0
      %v4252 = vadd.f32 %v4135, %v4251
      %v4253 = vpop.f32.mrb[0].mxu0
      %4254 = vmatprep.mubr.f32.mxu0 0.0
      %4255 = vmatmul.mubr.f32.gmra.mrb[0].mxu0 %v4141
      %v4256 = vpop.f32.mrb[0].mxu0
      %v4257 = vadd.f32 %v4135, %v4256
      %v4258 = vpop.f32.mrb[0].mxu0
      %4259 = vmatprep.mubr.f32.mxu0 0.0
      %4260 = vmatmul.mubr.f32.gmra.mrb[0].mxu0 %v4144
      %v4261 = vpop.f32.mrb[0].mxu0
      %v4262 = vadd.f32 %v4135, %v4261
      %v4263 = vpop.f32.mrb[0].mxu0
      %4264 = vmatprep.mubr.f32.mxu0 0.0
      %4265 = vmatmul.mubr.f32.gmra.mrb[0].mxu0 %v4147
      %v4266 = vpop.f32.mrb[0].mxu0
      %v4267 = vadd.f32 %v4135, %v4266
      %v4268 = vpop.f32.mrb[0].mxu0
      %4269 = vmatprep.mubr.f32.mxu0 0.0
      %4270 = vmatmul.mubr.f32.gmra.mrb[0].mxu0 %v4150
      %v4271 = vpop.f32.mrb[0].mxu0
      %v4272 = vadd.f32 %v4135, %v4271
      %v4273 = vpop.f32.mrb[0].mxu0
      %4274 = vmatprep.mubr.f32.mxu0 0.0
      %4275 = vmatmul.mubr.f32.gmra.mrb[0].mxu0 %v4153
      %v4276 = vpop.f32.mrb[0].mxu0
      %v4277 = vadd.f32 %v4135, %v4276
      %v4278 = vpop.f32.mrb[0].mxu0
      %4279 = vmatprep.mubr.f32.mxu0 0.0
      %4280 = vmatmul.mubr.f32.gmra.mrb[0].mxu0 %v4156
      %v4281 = vpop.f32.mrb[0].mxu0
      %v4282 = vadd.f32 %v4135, %v4281
      %v4283 = vpop.f32.mrb[0].mxu0
      %4284 = vmatprep.mubr.f32.mxu0 0.0
      %4285 = vmatmul.mubr.f32.gmra.mrb[0].mxu0 %v4159
      %v4286 = vpop.f32.mrb[0].mxu0
      %v4287 = vadd.f32 %v4135, %v4286
      %v4288 = vpop.f32.mrb[0].mxu0
      %4289 = vmatprep.mubr.f32.mxu0 0.0
      %4290 = vmatmul.mubr.f32.gmra.mrb[0].mxu0 %v4162
      %v4291 = vpop.f32.mrb[0].mxu0
      %v4292 = vadd.f32 %v4135, %v4291
      %v4293 = vpop.f32.mrb[0].mxu0
      %4294 = vmatprep.mubr.f32.mxu0 0.0
      %4295 = vmatmul.mubr.f32.gmra.mrb[0].mxu0 %v4165
      %v4296 = vpop.f32.mrb[0].mxu0
      %v4297 = vadd.f32 %v4135, %v4296
      %v4298 = vpop.f32.mrb[0].mxu0
      %4299 = vmatprep.mubr.f32.mxu0 0.0
      %4300 = vmatmul.mubr.f32.gmra.mrb[0].mxu0 %v4168
      %v4301 = vpop.f32.mrb[0].mxu0
      %v4302 = vadd.f32 %v4135, %v4301
      %v4303 = vpop.f32.mrb[0].mxu0
      %4304 = vmatprep.mubr.f32.mxu0 0.0
      %4305 = vmatmul.mubr.f32.gmra.mrb[0].mxu0 %v4171
      %v4306 = vpop.f32.mrb[0].mxu0
      %v4307 = vadd.f32 %v4135, %v4306
      %v4308 = vpop.f32.mrb[0].mxu0
      %4309 = vmatprep.mubr.f32.mxu0 0.0
      %4310 = vmatmul.mubr.f32.gmra.mrb[0].mxu0 %v4174
      %v4311 = vpop.f32.mrb[0].mxu0
      %v4312 = vadd.f32 %v4135, %v4311
      %v4313 = vpop.f32.mrb[0].mxu0
      %4314 = vmatprep.mubr.f32.mxu0 0.0
      %4315 = vmatmul.mubr.f32.gmra.mrb[0].mxu0 %v4177
      %v4316 = vpop.f32.mrb[0].mxu0
      %v4317 = vadd.f32 %v4135, %v4316
      %v4318 = vpop.f32.mrb[0].mxu0
      %4319 = vmatprep.mubr.f32.mxu0 0.0
      %4320 = vmatmul.mubr.f32.gmra.mrb[0].mxu0 %v4180
      %v4321 = vpop.f32.mrb[0].mxu0
      %v4322 = vadd.f32 %v4135, %v4321
      %v4323 = vpop.f32.mrb[0].mxu0
      %4324 = vmatprep.mubr.f32.mxu0 0.0
      %4325 = vmatmul.mubr.f32.gmra.mrb[0].mxu0 %v4183
      %v4326 = vpop.f32.mrb[0].mxu0
      %v4327 = vadd.f32 %v4135, %v4326
      %v4328 = vpop.f32.mrb[0].mxu0
      %4329 = vdwg.mxu0
      %v4330 = vadd.f32 %v4252, %v947
      %v4331 = vadd.f32 %v4257, %v948
      %v4332 = vadd.f32 %v4262, %v949
      %v4333 = vadd.f32 %v4267, %v950
      %v4334 = vadd.f32 %v4272, %v951
      %v4335 = vadd.f32 %v4277, %v952
      %v4336 = vadd.f32 %v4282, %v953
      %v4337 = vadd.f32 %v4287, %v954
      %v4338 = vadd.f32 %v4292, %v955
      %v4339 = vadd.f32 %v4297, %v956
      %v4340 = vadd.f32 %v4302, %v957
      %v4341 = vadd.f32 %v4307, %v958
      %v4342 = vadd.f32 %v4312, %v959
      %v4343 = vadd.f32 %v4317, %v960
      %v4344 = vadd.f32 %v4322, %v961
      %v4345 = vadd.f32 %v4327, %v962
      %v4346 = vadd.f32 %v4330, %v930
      %v4347 = vadd.f32 %v4331, %v931
      %v4348 = vadd.f32 %v4332, %v932
      %v4349 = vadd.f32 %v4333, %v933
      %v4350 = vadd.f32 %v4334, %v934
      %v4351 = vadd.f32 %v4335, %v935
      %v4352 = vadd.f32 %v4336, %v936
      %v4353 = vadd.f32 %v4337, %v937
      %v4354 = vadd.f32 %v4338, %v938
      %v4355 = vadd.f32 %v4339, %v939
      %v4356 = vadd.f32 %v4340, %v940
      %v4357 = vadd.f32 %v4341, %v941
      %v4358 = vadd.f32 %v4342, %v942
      %v4359 = vadd.f32 %v4343, %v943
      %v4360 = vadd.f32 %v4344, %v944
      %v4361 = vadd.f32 %v4345, %v945
      %v4362 = vld [vmem:[%s10] sm:$0x1]
      %v4363 = vld [vmem:[%s11] sm:$0x1]
      %v4364 = vsel %vm692, %v4346, 0.0
      %4365 = vadd.xlane.f32.xlu0 %v4364
      %v4366 = vpop.xlane.xlu0 %4365
      %v4367 = vsel %vm692, %v4347, 0.0
      %4368 = vadd.xlane.f32.xlu0 %v4367
      %v4369 = vpop.xlane.xlu0 %4368
      %v4370 = vsel %vm692, %v4348, 0.0
      %4371 = vadd.xlane.f32.xlu0 %v4370
      %v4372 = vpop.xlane.xlu0 %4371
      %v4373 = vsel %vm692, %v4349, 0.0
      %4374 = vadd.xlane.f32.xlu0 %v4373
      %v4375 = vpop.xlane.xlu0 %4374
      %v4376 = vsel %vm692, %v4350, 0.0
      %4377 = vadd.xlane.f32.xlu0 %v4376
      %v4378 = vpop.xlane.xlu0 %4377
      %v4379 = vsel %vm692, %v4351, 0.0
      %4380 = vadd.xlane.f32.xlu0 %v4379
      %v4381 = vpop.xlane.xlu0 %4380
      %v4382 = vsel %vm692, %v4352, 0.0
      %4383 = vadd.xlane.f32.xlu0 %v4382
      %v4384 = vpop.xlane.xlu0 %4383
      %v4385 = vsel %vm692, %v4353, 0.0
      %4386 = vadd.xlane.f32.xlu0 %v4385
      %v4387 = vpop.xlane.xlu0 %4386
      %v4388 = vsel %vm692, %v4354, 0.0
      %4389 = vadd.xlane.f32.xlu0 %v4388
      %v4390 = vpop.xlane.xlu0 %4389
      %v4391 = vsel %vm692, %v4355, 0.0
      %4392 = vadd.xlane.f32.xlu0 %v4391
      %v4393 = vpop.xlane.xlu0 %4392
      %v4394 = vsel %vm692, %v4356, 0.0
      %4395 = vadd.xlane.f32.xlu0 %v4394
      %v4396 = vpop.xlane.xlu0 %4395
      %v4397 = vsel %vm692, %v4357, 0.0
      %4398 = vadd.xlane.f32.xlu0 %v4397
      %v4399 = vpop.xlane.xlu0 %4398
      %v4400 = vsel %vm692, %v4358, 0.0
      %4401 = vadd.xlane.f32.xlu0 %v4400
      %v4402 = vpop.xlane.xlu0 %4401
      %v4403 = vsel %vm692, %v4359, 0.0
      %4404 = vadd.xlane.f32.xlu0 %v4403
      %v4405 = vpop.xlane.xlu0 %4404
      %v4406 = vsel %vm692, %v4360, 0.0
      %4407 = vadd.xlane.f32.xlu0 %v4406
      %v4408 = vpop.xlane.xlu0 %4407
      %v4409 = vsel %vm692, %v4361, 0.0
      %4410 = vadd.xlane.f32.xlu0 %v4409
      %v4411 = vpop.xlane.xlu0 %4410
      %v4412 = vmul.f32 %v4366, %v741
      %v4413 = vmul.f32 %v4369, %v741
      %v4414 = vmul.f32 %v4372, %v741
      %v4415 = vmul.f32 %v4375, %v741
      %v4416 = vmul.f32 %v4378, %v741
      %v4417 = vmul.f32 %v4381, %v741
      %v4418 = vmul.f32 %v4384, %v741
      %v4419 = vmul.f32 %v4387, %v741
      %v4420 = vmul.f32 %v4390, %v741
      %v4421 = vmul.f32 %v4393, %v741
      %v4422 = vmul.f32 %v4396, %v741
      %v4423 = vmul.f32 %v4399, %v741
      %v4424 = vmul.f32 %v4402, %v741
      %v4425 = vmul.f32 %v4405, %v741
      %v4426 = vmul.f32 %v4408, %v741
      %v4427 = vmul.f32 %v4411, %v741
      %v4428 = vsub.f32 %v4346, %v4412
      %v4429 = vsub.f32 %v4347, %v4413
      %v4430 = vsub.f32 %v4348, %v4414
      %v4431 = vsub.f32 %v4349, %v4415
      %v4432 = vsub.f32 %v4350, %v4416
      %v4433 = vsub.f32 %v4351, %v4417
      %v4434 = vsub.f32 %v4352, %v4418
      %v4435 = vsub.f32 %v4353, %v4419
      %v4436 = vsub.f32 %v4354, %v4420
      %v4437 = vsub.f32 %v4355, %v4421
      %v4438 = vsub.f32 %v4356, %v4422
      %v4439 = vsub.f32 %v4357, %v4423
      %v4440 = vsub.f32 %v4358, %v4424
      %v4441 = vsub.f32 %v4359, %v4425
      %v4442 = vsub.f32 %v4360, %v4426
      %v4443 = vsub.f32 %v4361, %v4427
      %v4444 = vmul.f32 %v4428, %v4428
      %v4445 = vmul.f32 %v4429, %v4429
      %v4446 = vmul.f32 %v4430, %v4430
      %v4447 = vmul.f32 %v4431, %v4431
      %v4448 = vmul.f32 %v4432, %v4432
      %v4449 = vmul.f32 %v4433, %v4433
      %v4450 = vmul.f32 %v4434, %v4434
      %v4451 = vmul.f32 %v4435, %v4435
      %v4452 = vmul.f32 %v4436, %v4436
      %v4453 = vmul.f32 %v4437, %v4437
      %v4454 = vmul.f32 %v4438, %v4438
      %v4455 = vmul.f32 %v4439, %v4439
      %v4456 = vmul.f32 %v4440, %v4440
      %v4457 = vmul.f32 %v4441, %v4441
      %v4458 = vmul.f32 %v4442, %v4442
      %v4459 = vmul.f32 %v4443, %v4443
      %v4460 = vsel %vm692, %v4444, 0.0
      %4461 = vadd.xlane.f32.xlu0 %v4460
      %v4462 = vpop.xlane.xlu0 %4461
      %v4463 = vsel %vm692, %v4445, 0.0
      %4464 = vadd.xlane.f32.xlu0 %v4463
      %v4465 = vpop.xlane.xlu0 %4464
      %v4466 = vsel %vm692, %v4446, 0.0
      %4467 = vadd.xlane.f32.xlu0 %v4466
      %v4468 = vpop.xlane.xlu0 %4467
      %v4469 = vsel %vm692, %v4447, 0.0
      %4470 = vadd.xlane.f32.xlu0 %v4469
      %v4471 = vpop.xlane.xlu0 %4470
      %v4472 = vsel %vm692, %v4448, 0.0
      %4473 = vadd.xlane.f32.xlu0 %v4472
      %v4474 = vpop.xlane.xlu0 %4473
      %v4475 = vsel %vm692, %v4449, 0.0
      %4476 = vadd.xlane.f32.xlu0 %v4475
      %v4477 = vpop.xlane.xlu0 %4476
      %v4478 = vsel %vm692, %v4450, 0.0
      %4479 = vadd.xlane.f32.xlu0 %v4478
      %v4480 = vpop.xlane.xlu0 %4479
      %v4481 = vsel %vm692, %v4451, 0.0
      %4482 = vadd.xlane.f32.xlu0 %v4481
      %v4483 = vpop.xlane.xlu0 %4482
      %v4484 = vsel %vm692, %v4452, 0.0
      %4485 = vadd.xlane.f32.xlu0 %v4484
      %v4486 = vpop.xlane.xlu0 %4485
      %v4487 = vsel %vm692, %v4453, 0.0
      %4488 = vadd.xlane.f32.xlu0 %v4487
      %v4489 = vpop.xlane.xlu0 %4488
      %v4490 = vsel %vm692, %v4454, 0.0
      %4491 = vadd.xlane.f32.xlu0 %v4490
      %v4492 = vpop.xlane.xlu0 %4491
      %v4493 = vsel %vm692, %v4455, 0.0
      %4494 = vadd.xlane.f32.xlu0 %v4493
      %v4495 = vpop.xlane.xlu0 %4494
      %v4496 = vsel %vm692, %v4456, 0.0
      %4497 = vadd.xlane.f32.xlu0 %v4496
      %v4498 = vpop.xlane.xlu0 %4497
      %v4499 = vsel %vm692, %v4457, 0.0
      %4500 = vadd.xlane.f32.xlu0 %v4499
      %v4501 = vpop.xlane.xlu0 %4500
      %v4502 = vsel %vm692, %v4458, 0.0
      %4503 = vadd.xlane.f32.xlu0 %v4502
      %v4504 = vpop.xlane.xlu0 %4503
      %v4505 = vsel %vm692, %v4459, 0.0
      %4506 = vadd.xlane.f32.xlu0 %v4505
      %v4507 = vpop.xlane.xlu0 %4506
      %v4508 = vmul.f32 %v4462, %v741
      %v4509 = vmul.f32 %v4465, %v741
      %v4510 = vmul.f32 %v4468, %v741
      %v4511 = vmul.f32 %v4471, %v741
      %v4512 = vmul.f32 %v4474, %v741
      %v4513 = vmul.f32 %v4477, %v741
      %v4514 = vmul.f32 %v4480, %v741
      %v4515 = vmul.f32 %v4483, %v741
      %v4516 = vmul.f32 %v4486, %v741
      %v4517 = vmul.f32 %v4489, %v741
      %v4518 = vmul.f32 %v4492, %v741
      %v4519 = vmul.f32 %v4495, %v741
      %v4520 = vmul.f32 %v4498, %v741
      %v4521 = vmul.f32 %v4501, %v741
      %v4522 = vmul.f32 %v4504, %v741
      %v4523 = vmul.f32 %v4507, %v741
      %v4524 = vadd.f32 %v4508, 1e-05
      %v4525 = vadd.f32 %v4509, 1e-05
      %v4526 = vadd.f32 %v4510, 1e-05
      %v4527 = vadd.f32 %v4511, 1e-05
      %v4528 = vadd.f32 %v4512, 1e-05
      %v4529 = vadd.f32 %v4513, 1e-05
      %v4530 = vadd.f32 %v4514, 1e-05
      %v4531 = vadd.f32 %v4515, 1e-05
      %v4532 = vadd.f32 %v4516, 1e-05
      %v4533 = vadd.f32 %v4517, 1e-05
      %v4534 = vadd.f32 %v4518, 1e-05
      %v4535 = vadd.f32 %v4519, 1e-05
      %v4536 = vadd.f32 %v4520, 1e-05
      %v4537 = vadd.f32 %v4521, 1e-05
      %v4538 = vadd.f32 %v4522, 1e-05
      %v4539 = vadd.f32 %v4523, 1e-05
      %v4540 = vrsqrt.pop %v4524
      %v4541 = vrsqrt.pop %v4525
      %v4542 = vrsqrt.pop %v4526
      %v4543 = vrsqrt.pop %v4527
      %v4544 = vrsqrt.pop %v4528
      %v4545 = vrsqrt.pop %v4529
      %v4546 = vrsqrt.pop %v4530
      %v4547 = vrsqrt.pop %v4531
      %v4548 = vrsqrt.pop %v4532
      %v4549 = vrsqrt.pop %v4533
      %v4550 = vrsqrt.pop %v4534
      %v4551 = vrsqrt.pop %v4535
      %v4552 = vrsqrt.pop %v4536
      %v4553 = vrsqrt.pop %v4537
      %v4554 = vrsqrt.pop %v4538
      %v4555 = vrsqrt.pop %v4539
      %v4556 = vmul.f32 %v4428, %v4540
      %v4557 = vmul.f32 %v4429, %v4541
      %v4558 = vmul.f32 %v4430, %v4542
      %v4559 = vmul.f32 %v4431, %v4543
      %v4560 = vmul.f32 %v4432, %v4544
      %v4561 = vmul.f32 %v4433, %v4545
      %v4562 = vmul.f32 %v4434, %v4546
      %v4563 = vmul.f32 %v4435, %v4547
      %v4564 = vmul.f32 %v4436, %v4548
      %v4565 = vmul.f32 %v4437, %v4549
      %v4566 = vmul.f32 %v4438, %v4550
      %v4567 = vmul.f32 %v4439, %v4551
      %v4568 = vmul.f32 %v4440, %v4552
      %v4569 = vmul.f32 %v4441, %v4553
      %v4570 = vmul.f32 %v4442, %v4554
      %v4571 = vmul.f32 %v4443, %v4555
      %v4573 = vlaneseq
      %v4574 = vshrl.u32 %v4573, 7
      %v4575 = vsub.s32 0, %v4574
      %v4576 = vrot.slane %v4362, %v4575
      %v4578 = vmul.f32 %v4556, %v4576
      %v4579 = vmul.f32 %v4557, %v4576
      %v4580 = vmul.f32 %v4558, %v4576
      %v4581 = vmul.f32 %v4559, %v4576
      %v4582 = vmul.f32 %v4560, %v4576
      %v4583 = vmul.f32 %v4561, %v4576
      %v4584 = vmul.f32 %v4562, %v4576
      %v4585 = vmul.f32 %v4563, %v4576
      %v4586 = vmul.f32 %v4564, %v4576
      %v4587 = vmul.f32 %v4565, %v4576
      %v4588 = vmul.f32 %v4566, %v4576
      %v4589 = vmul.f32 %v4567, %v4576
      %v4590 = vmul.f32 %v4568, %v4576
      %v4591 = vmul.f32 %v4569, %v4576
      %v4592 = vmul.f32 %v4570, %v4576
      %v4593 = vmul.f32 %v4571, %v4576
      %v4595 = vlaneseq
      %v4596 = vshrl.u32 %v4595, 7
      %v4597 = vsub.s32 0, %v4596
      %v4598 = vrot.slane %v4363, %v4597
      %v4600 = vadd.f32 %v4578, %v4598
      %v4601 = vadd.f32 %v4579, %v4598
      %v4602 = vadd.f32 %v4580, %v4598
      %v4603 = vadd.f32 %v4581, %v4598
      %v4604 = vadd.f32 %v4582, %v4598
      %v4605 = vadd.f32 %v4583, %v4598
      %v4606 = vadd.f32 %v4584, %v4598
      %v4607 = vadd.f32 %v4585, %v4598
      %v4608 = vadd.f32 %v4586, %v4598
      %v4609 = vadd.f32 %v4587, %v4598
      %v4610 = vadd.f32 %v4588, %v4598
      %v4611 = vadd.f32 %v4589, %v4598
      %v4612 = vadd.f32 %v4590, %v4598
      %v4613 = vadd.f32 %v4591, %v4598
      %v4614 = vadd.f32 %v4592, %v4598
      %v4615 = vadd.f32 %v4593, %v4598
      %v4616 = vld [vmem:[%s12] sm:$0xff]
      %v4617 = vld [vmem:[%s12 + $0x8] sm:$0xff]
      %v4618 = vld [vmem:[%s12 + $0x10] sm:$0xff]
      %v4619 = vld [vmem:[%s12 + $0x18] sm:$0xff]
      %v4620 = vld [vmem:[%s13] sm:$0x1]
      %v4622 = vlaneseq
      %v4623 = vshrl.u32 %v4622, 7
      %v4624 = vsub.s32 0, %v4623
      %v4625 = vrot.slane %v4620, %v4624
      %v4628 = vsel %vm692, %v4600, 0
      %v4631 = vsel %vm692, %v4601, 0
      %v4634 = vsel %vm692, %v4602, 0
      %v4637 = vsel %vm692, %v4603, 0
      %v4640 = vsel %vm692, %v4604, 0
      %v4643 = vsel %vm692, %v4605, 0
      %v4646 = vsel %vm692, %v4606, 0
      %v4649 = vsel %vm692, %v4607, 0
      %v4652 = vsel %vm692, %v4608, 0
      %v4655 = vsel %vm692, %v4609, 0
      %v4658 = vsel %vm692, %v4610, 0
      %v4661 = vsel %vm692, %v4611, 0
      %v4664 = vsel %vm692, %v4612, 0
      %v4667 = vsel %vm692, %v4613, 0
      %v4670 = vsel %vm692, %v4614, 0
      %v4673 = vsel %vm692, %v4615, 0
      %4675 = vmatprep.subr.mxu0 0.0
      %4676 = vmatpush1.msra.mxu0 %v4616
      %4677 = vmatprep.subr.mxu0 0.0
      %4678 = vmatpush1.msra.mxu0 %v4617
      %4679 = vmatprep.subr.mxu0 0.0
      %4680 = vmatpush1.msra.mxu0 %v4618
      %4681 = vmatprep.subr.mxu0 0.0
      %4682 = vmatpush1.msra.mxu0 %v4619
      %4683 = vmatprep.subr.mxu0 0.0
      %4684 = vmatpush1.msra.mxu0 0.0
      %4685 = vmatprep.subr.mxu0 0.0
      %4686 = vmatpush1.msra.mxu0 0.0
      %4687 = vmatprep.subr.mxu0 0.0
      %4688 = vmatpush1.msra.mxu0 0.0
      %4689 = vmatprep.subr.mxu0 0.0
      %4690 = vmatpush1.msra.mxu0 0.0
      %4691 = vmatprep.subr.mxu0 0.0
      %4692 = vmatpush1.msra.mxu0 0.0
      %4693 = vmatprep.subr.mxu0 0.0
      %4694 = vmatpush1.msra.mxu0 0.0
      %4695 = vmatprep.subr.mxu0 0.0
      %4696 = vmatpush1.msra.mxu0 0.0
      %4697 = vmatprep.subr.mxu0 0.0
      %4698 = vmatpush1.msra.mxu0 0.0
      %4699 = vmatprep.subr.mxu0 0.0
      %4700 = vmatpush1.msra.mxu0 0.0
      %4701 = vmatprep.subr.mxu0 0.0
      %4702 = vmatpush1.msra.mxu0 0.0
      %4703 = vmatprep.subr.mxu0 0.0
      %4704 = vmatpush1.msra.mxu0 0.0
      %4705 = vmatprep.subr.mxu0 0.0
      %4706 = vmatpush1.msra.mxu0 0.0
      %4707 = vmatprep.subr.mxu0 0.0
      %4708 = vmatpush1.msra.mxu0 0.0
      %4709 = vmatprep.subr.mxu0 0.0
      %4710 = vmatpush1.msra.mxu0 0.0
      %4711 = vmatprep.subr.mxu0 0.0
      %4712 = vmatpush1.msra.mxu0 0.0
      %4713 = vmatprep.subr.mxu0 0.0
      %4714 = vmatpush1.msra.mxu0 0.0
      %4715 = vmatprep.subr.mxu0 0.0
      %4716 = vmatpush1.msra.mxu0 0.0
      %4717 = vmatprep.subr.mxu0 0.0
      %4718 = vmatpush1.msra.mxu0 0.0
      %4719 = vmatprep.subr.mxu0 0.0
      %4720 = vmatpush1.msra.mxu0 0.0
      %4721 = vmatprep.subr.mxu0 0.0
      %4722 = vmatpush1.msra.mxu0 0.0
      %4723 = vmatprep.subr.mxu0 0.0
      %4724 = vmatpush1.msra.mxu0 0.0
      %4725 = vmatprep.subr.mxu0 0.0
      %4726 = vmatpush1.msra.mxu0 0.0
      %4727 = vmatprep.subr.mxu0 0.0
      %4728 = vmatpush1.msra.mxu0 0.0
      %4729 = vmatprep.subr.mxu0 0.0
      %4730 = vmatpush1.msra.mxu0 0.0
      %4731 = vmatprep.subr.mxu0 0.0
      %4732 = vmatpush1.msra.mxu0 0.0
      %4733 = vmatprep.subr.mxu0 0.0
      %4734 = vmatpush1.msra.mxu0 0.0
      %4735 = vmatprep.subr.mxu0 0.0
      %4736 = vmatpush1.msra.mxu0 0.0
      %4737 = vmatprep.subr.mxu0 0.0
      %4738 = vmatpush1.msra.mxu0 0.0
      %4739 = vmatprep.mubr.f32.mxu0 0.0
      %4740 = vmatmul.mubr.f32.gmra.mrb[0].mxu0 %v4628
      %v4741 = vpop.f32.mrb[0].mxu0
      %v4742 = vadd.f32 %v4625, %v4741
      %v4743 = vpop.f32.mrb[0].mxu0
      %4744 = vmatprep.mubr.f32.mxu0 0.0
      %4745 = vmatmul.mubr.f32.gmra.mrb[0].mxu0 %v4631
      %v4746 = vpop.f32.mrb[0].mxu0
      %v4747 = vadd.f32 %v4625, %v4746
      %v4748 = vpop.f32.mrb[0].mxu0
      %4749 = vmatprep.mubr.f32.mxu0 0.0
      %4750 = vmatmul.mubr.f32.gmra.mrb[0].mxu0 %v4634
      %v4751 = vpop.f32.mrb[0].mxu0
      %v4752 = vadd.f32 %v4625, %v4751
      %v4753 = vpop.f32.mrb[0].mxu0
      %4754 = vmatprep.mubr.f32.mxu0 0.0
      %4755 = vmatmul.mubr.f32.gmra.mrb[0].mxu0 %v4637
      %v4756 = vpop.f32.mrb[0].mxu0
      %v4757 = vadd.f32 %v4625, %v4756
      %v4758 = vpop.f32.mrb[0].mxu0
      %4759 = vmatprep.mubr.f32.mxu0 0.0
      %4760 = vmatmul.mubr.f32.gmra.mrb[0].mxu0 %v4640
      %v4761 = vpop.f32.mrb[0].mxu0
      %v4762 = vadd.f32 %v4625, %v4761
      %v4763 = vpop.f32.mrb[0].mxu0
      %4764 = vmatprep.mubr.f32.mxu0 0.0
      %4765 = vmatmul.mubr.f32.gmra.mrb[0].mxu0 %v4643
      %v4766 = vpop.f32.mrb[0].mxu0
      %v4767 = vadd.f32 %v4625, %v4766
      %v4768 = vpop.f32.mrb[0].mxu0
      %4769 = vmatprep.mubr.f32.mxu0 0.0
      %4770 = vmatmul.mubr.f32.gmra.mrb[0].mxu0 %v4646
      %v4771 = vpop.f32.mrb[0].mxu0
      %v4772 = vadd.f32 %v4625, %v4771
      %v4773 = vpop.f32.mrb[0].mxu0
      %4774 = vmatprep.mubr.f32.mxu0 0.0
      %4775 = vmatmul.mubr.f32.gmra.mrb[0].mxu0 %v4649
      %v4776 = vpop.f32.mrb[0].mxu0
      %v4777 = vadd.f32 %v4625, %v4776
      %v4778 = vpop.f32.mrb[0].mxu0
      %4779 = vmatprep.mubr.f32.mxu0 0.0
      %4780 = vmatmul.mubr.f32.gmra.mrb[0].mxu0 %v4652
      %v4781 = vpop.f32.mrb[0].mxu0
      %v4782 = vadd.f32 %v4625, %v4781
      %v4783 = vpop.f32.mrb[0].mxu0
      %4784 = vmatprep.mubr.f32.mxu0 0.0
      %4785 = vmatmul.mubr.f32.gmra.mrb[0].mxu0 %v4655
      %v4786 = vpop.f32.mrb[0].mxu0
      %v4787 = vadd.f32 %v4625, %v4786
      %v4788 = vpop.f32.mrb[0].mxu0
      %4789 = vmatprep.mubr.f32.mxu0 0.0
      %4790 = vmatmul.mubr.f32.gmra.mrb[0].mxu0 %v4658
      %v4791 = vpop.f32.mrb[0].mxu0
      %v4792 = vadd.f32 %v4625, %v4791
      %v4793 = vpop.f32.mrb[0].mxu0
      %4794 = vmatprep.mubr.f32.mxu0 0.0
      %4795 = vmatmul.mubr.f32.gmra.mrb[0].mxu0 %v4661
      %v4796 = vpop.f32.mrb[0].mxu0
      %v4797 = vadd.f32 %v4625, %v4796
      %v4798 = vpop.f32.mrb[0].mxu0
      %4799 = vmatprep.mubr.f32.mxu0 0.0
      %4800 = vmatmul.mubr.f32.gmra.mrb[0].mxu0 %v4664
      %v4801 = vpop.f32.mrb[0].mxu0
      %v4802 = vadd.f32 %v4625, %v4801
      %v4803 = vpop.f32.mrb[0].mxu0
      %4804 = vmatprep.mubr.f32.mxu0 0.0
      %4805 = vmatmul.mubr.f32.gmra.mrb[0].mxu0 %v4667
      %v4806 = vpop.f32.mrb[0].mxu0
      %v4807 = vadd.f32 %v4625, %v4806
      %v4808 = vpop.f32.mrb[0].mxu0
      %4809 = vmatprep.mubr.f32.mxu0 0.0
      %4810 = vmatmul.mubr.f32.gmra.mrb[0].mxu0 %v4670
      %v4811 = vpop.f32.mrb[0].mxu0
      %v4812 = vadd.f32 %v4625, %v4811
      %v4813 = vpop.f32.mrb[0].mxu0
      %4814 = vmatprep.mubr.f32.mxu0 0.0
      %4815 = vmatmul.mubr.f32.gmra.mrb[0].mxu0 %v4673
      %v4816 = vpop.f32.mrb[0].mxu0
      %v4817 = vadd.f32 %v4625, %v4816
      %v4818 = vpop.f32.mrb[0].mxu0
      %4819 = vdwg.mxu0
      %4820 = vst.msk [vmem:[%s469] sm:$0xff] %vm496, %v4742
      %4821 = vst.msk [vmem:[%s469 + $0x8] sm:$0xff] %vm496, %v4747
      %4822 = vst.msk [vmem:[%s469 + $0x10] sm:$0xff] %vm496, %v4752
      %4823 = vst.msk [vmem:[%s469 + $0x18] sm:$0xff] %vm496, %v4757
      %4824 = vst.msk [vmem:[%s469 + $0x20] sm:$0xff] %vm496, %v4762
      %4825 = vst.msk [vmem:[%s469 + $0x28] sm:$0xff] %vm496, %v4767
      %4826 = vst.msk [vmem:[%s469 + $0x30] sm:$0xff] %vm496, %v4772
      %4827 = vst.msk [vmem:[%s469 + $0x38] sm:$0xff] %vm496, %v4777
      %4828 = vst.msk [vmem:[%s469 + $0x40] sm:$0xff] %vm496, %v4782
      %4829 = vst.msk [vmem:[%s469 + $0x48] sm:$0xff] %vm496, %v4787
      %4830 = vst.msk [vmem:[%s469 + $0x50] sm:$0xff] %vm496, %v4792
      %4831 = vst.msk [vmem:[%s469 + $0x58] sm:$0xff] %vm496, %v4797
      %4832 = vst.msk [vmem:[%s469 + $0x60] sm:$0xff] %vm496, %v4802
      %4833 = vst.msk [vmem:[%s469 + $0x68] sm:$0xff] %vm496, %v4807
      %4834 = vst.msk [vmem:[%s469 + $0x70] sm:$0xff] %vm496, %v4812
      %4835 = vst.msk [vmem:[%s469 + $0x78] sm:$0xff] %vm496, %v4817
      %s4836 = smul.u32 16, %s25
      %p4837 = scmp.lt.s32.totalorder %s4836, 31
      %s4838 = scalar_select %p4837, %s4836, 31
      %s4839 = smul.addr %s4838, 8
      %s4840 = scalar_lea.vmem %s14, %s4839
      // Predicated region
      $region77: #{tpu_custom_call.1} parent=75 // pred_check
        %p4841 = pneg %p342
      $region78: #{tpu_custom_call.1} parent=75 // pred_check_branch
        %4843 = sbr.rel (%p4841) target = $region80
      $region79: #{tpu_custom_call.1} parent=75 // pred_region
        %s4844 = smul.u32 16, %s25
      $region80: #{tpu_custom_call.1} parent=75 // pred_fallthru
        _
    $region76: #{tpu_custom_call.1} parent=5 // pred_fallthru
      _
    %p4845 = scmp.le.s32.totalorder 2, %s20
    // Predicated region
    $region81: #{tpu_custom_call.1} parent=5 // pred_check
      %p4846 = pneg %p4845
    $region82: #{tpu_custom_call.1} parent=5 // pred_check_branch
      %4848 = sbr.rel (%p4846) target = $region84
    $region83: #{tpu_custom_call.1} parent=5 // pred_region
      %s4849 = ssub.s32 %s20, 2
      // Predicated region
      $region85: #{tpu_custom_call.1} parent=83 // pred_check
        %p4850 = pneg %p348
      $region86: #{tpu_custom_call.1} parent=83 // pred_check_branch
        %4852 = sbr.rel (%p4850) target = $region88
      $region87: #{tpu_custom_call.1} parent=83 // pred_region
        %s4853 = smul.u32 16, %s26
        %p4854 = scmp.lt.s32.totalorder %s4853, 31
        %s4855 = scalar_select %p4854, %s4853, 31
        %s4856 = smul.addr %s4855, 8
        %s4857 = scalar_lea.vmem %s14, %s4856
      $region88: #{tpu_custom_call.1} parent=83 // pred_fallthru
        _
    $region84: #{tpu_custom_call.1} parent=5 // pred_fallthru
      _
  $region6: #{tpu_custom_call.1} parent=0 // loop_footer
    %s24 = sadd.s32 1, %s20
  $region7: #{tpu_custom_call.1} parent=0 // loop_footer_branch
    %19 = sbr.rel target = $region3
  $region8: #{tpu_custom_call.1} parent=0 // loop_exit
    _

</llo_original>
